<compile_context>
chip_gen: v7x
topology: tpu7x:2x2x1
jax: 0.10.0
libtpu: 0.0.40
codegen_flags: <defaults>
</compile_context>

<pallas_src>
import functools

import jax
import jax.numpy as jnp
import numpy as np
from jax.experimental import pallas as pl
from jax.experimental.pallas import tpu as pltpu


# ----------------------------------------------------------------------------
# Fused Residual kernel
# ----------------------------------------------------------------------------
def _residual_kernel(x_ref, w1_ref, s1_ref, b1_ref, w2_ref, s2_ref, b2_ref,
                     o_ref, *, TH, H, W, K):
    """Fused  x + SiLU(BN(conv2( SiLU(BN(conv1(x))) )))  for one row slab.

    x_ref  : (1, H+4, W+4, Cin)  zero-padded (pad=2) input image, VMEM resident
    w1_ref : (K*K*Cin, Hid)      conv1 weights (bf16), taps folded into K dim
    w2_ref : (K*K*Hid, Cout)     conv2 weights (bf16), Cout == Cin
    s*_ref, b*_ref : (1, C)      folded BatchNorm affine (f32)
    o_ref  : (1, TH, W, Cout)    output row slab
    """
    r = pl.program_id(1)
    rstart = pl.multiple_of(r * TH, TH)

    cin = x_ref.shape[-1]
    hid = w1_ref.shape[-1]
    cout = w2_ref.shape[-1]

    # Input slab covering the combined halo of both chained 3x3 convs:
    # padded rows [rstart, rstart + TH + 4).
    xs = x_ref[0, pl.ds(rstart, TH + 4), :, :]            # (TH+4, W+4, Cin)
    xs_b = xs.astype(jnp.bfloat16)                        # bf16 MXU operands

    # ---- conv1 + BN + SiLU on TH+2 "extended" rows (1-row halo for conv2) ---
    # im2col: concat the 9 taps along the lane (channel) axis, ONE reshape
    # (second-minor W is sublane-aligned so the collapse is layout-preserving),
    # single bf16 MXU contraction with f32 accumulation.
    taps1 = [xs_b[ky:ky + TH + 2, kx + 1:kx + 1 + W, :]   # (TH+2, W, Cin) each
             for ky in range(K) for kx in range(K)]
    cols1 = jnp.concatenate(taps1, axis=-1)               # (TH+2, W, K*K*Cin)
    cols1 = cols1.reshape((TH + 2) * W, K * K * cin)
    y1 = jnp.dot(cols1, w1_ref[...], preferred_element_type=jnp.float32)
    y1 = y1 * s1_ref[...] + b1_ref[...]                   # folded BN (f32)
    # SiLU; jax.nn.sigmoid lowers to the EUP tanh path on TPU.  If profiling
    # ever shows a VPU divide, switch to y * pl.reciprocal(1+exp(-y), approx=True).
    y1 = y1 * jax.nn.sigmoid(y1)
    y1 = y1.reshape(TH + 2, W, hid)

    # Halo rows outside [0, H) must be conv2's zero padding, not conv1 output
    # (conv1 of zero-padded rows is SiLU(bias) != 0).
    he = rstart - 1 + jax.lax.broadcasted_iota(jnp.int32, (TH + 2, W, hid), 0)
    y1 = jnp.where((he >= 0) & (he < H), y1, 0.0)

    # Inter-conv activation kept in bf16 (halves conv2 im2col traffic).
    # W zero padding built in registers: no scratch memset, no sublane-offset
    # masked store, no scratch reload.
    y1b = y1.astype(jnp.bfloat16)
    zcol = jnp.zeros((TH + 2, 1, hid), jnp.bfloat16)
    y1p = jnp.concatenate([zcol, y1b, zcol], axis=1)      # (TH+2, W+2, Hid)

    # ---- conv2 + BN + SiLU + fused residual skip-add ------------------------
    taps2 = [y1p[ky:ky + TH, kx:kx + W, :]                # (TH, W, Hid) each
             for ky in range(K) for kx in range(K)]
    cols2 = jnp.concatenate(taps2, axis=-1)               # (TH, W, K*K*Hid)
    cols2 = cols2.reshape(TH * W, K * K * hid)
    y2 = jnp.dot(cols2, w2_ref[...], preferred_element_type=jnp.float32)
    y2 = y2 * s2_ref[...] + b2_ref[...]
    y2 = y2 * jax.nn.sigmoid(y2)

    # Residual add stays exact f32 (skip taken from the un-cast input slab).
    skip = xs[2:2 + TH, 2:2 + W, :].reshape(TH * W, cout).astype(jnp.float32)
    o_ref[0] = (y2 + skip).reshape(TH, W, cout).astype(o_ref.dtype)


# ----------------------------------------------------------------------------
# Wrapper: padding, weight flattening, grid / BlockSpecs
# ----------------------------------------------------------------------------
def residual_forward(params, x, *, row_tile=None):
    """x: (N, H, W, C) NHWC.  Returns x + conv2(conv1(x)), BN(eval)+SiLU."""
    N, H, W, C = x.shape
    p1, p2 = params["conv1"], params["conv2"]
    K = p1["w"].shape[0]
    hid = p1["w"].shape[-1]

    # Row tile: smallest divisor of H giving conv2 dot M = TH*W >= 256 rows
    # (fills the 256-deep v6e/v7x MXU, amortizes the ~0.35us per-step overhead)
    # while keeping per-step VMEM O(TH*W*C) for large feature maps.
    if row_tile is None:
        TH = H
        for cand in range(1, H + 1):
            if H % cand == 0 and cand * W >= 256:
                TH = cand
                break
    else:
        TH = row_tile if (H % row_tile == 0 and H >= row_tile) else H
    grid = (N, H // TH)
    # TODO(synk): on single-TC chips (v5e/v6e) with small N, fold the batch
    # into the dot's M dimension instead of a batch grid axis.

    # Single pad (pad=2 covers the halo of both 3x3 convs).  No 9x im2col
    # duplication ever touches HBM.
    xp = jnp.pad(x, ((0, 0), (2, 2), (2, 2), (0, 0)))
    Hp, Wp = H + 4, W + 4

    # Weights flattened to a single contraction dim and cast to bf16: native
    # MXU dtype on v5e/v6e/v7x (f32 matmul is multi-pass emulated), half the
    # weight VMEM traffic.  Accumulation stays f32 in-kernel.
    w1f = p1["w"].reshape(K * K * C, hid).astype(jnp.bfloat16)
    w2f = p2["w"].reshape(K * K * hid, C).astype(jnp.bfloat16)

    itemsize = jnp.dtype(x.dtype).itemsize
    flops = 4 * N * H * W * K * K * C * hid + 4 * N * H * W * (hid + C)
    transcendentals = N * H * W * (hid + C)
    bytes_accessed = (xp.size + x.size) * itemsize + (w1f.size + w2f.size) * 2

    kernel = functools.partial(_residual_kernel, TH=TH, H=H, W=W, K=K)
    return pl.pallas_call(
        kernel,
        out_shape=jax.ShapeDtypeStruct((N, H, W, C), x.dtype),
        grid_spec=pltpu.PrefetchScalarGridSpec(
            num_scalar_prefetch=0,
            grid=grid,
            in_specs=[
                # Padded image: block index constant along the row axis, so it
                # is DMA'd once per batch element and stays VMEM-resident.
                # TODO(synk): for large H*W (e.g. 160x160 YOLO maps) switch to
                # a halo'd row-slab DMA (memory_space=pl.ANY + manual
                # make_async_copy double buffer) so VMEM is O(TH*W*C).
                pl.BlockSpec((1, Hp, Wp, C), lambda b, r: (b, 0, 0, 0)),
                pl.BlockSpec((K * K * C, hid), lambda b, r: (0, 0)),
                pl.BlockSpec((1, hid), lambda b, r: (0, 0)),
                pl.BlockSpec((1, hid), lambda b, r: (0, 0)),
                pl.BlockSpec((K * K * hid, C), lambda b, r: (0, 0)),
                pl.BlockSpec((1, C), lambda b, r: (0, 0)),
                pl.BlockSpec((1, C), lambda b, r: (0, 0)),
            ],
            # Lane-dense (TH, W, C=128) output slabs.
            out_specs=pl.BlockSpec((1, TH, W, C), lambda b, r: (b, r, 0, 0)),
        ),
        compiler_params=pltpu.CompilerParams(
            # Disjoint output blocks, no cross-step accumulator: both axes
            # parallel so v7x's two TensorCores are used even when N == 1.
            dimension_semantics=("parallel", "parallel"),
            vmem_limit_bytes=64 * 1024 * 1024),
        cost_estimate=pl.CostEstimate(
            flops=flops, transcendentals=transcendentals,
            bytes_accessed=bytes_accessed),
    )(xp, w1f, p1["scale"], p1["bias"], w2f, p2["scale"], p2["bias"])


# ----------------------------------------------------------------------------
# Deterministic parameters (mirrors Conv(in,out,k=3,p=1) + BatchNorm2d eval)
# ----------------------------------------------------------------------------
def make_conv_params(key, in_ch, out_ch, k=3):
    kw, kg, kb, km, kv = jax.random.split(key, 5)
    fan_in = k * k * in_ch
    w = jax.random.normal(kw, (k, k, in_ch, out_ch), jnp.float32) / np.sqrt(fan_in)
    gamma = jax.random.uniform(kg, (out_ch,), minval=0.5, maxval=1.5)
    beta = 0.1 * jax.random.normal(kb, (out_ch,))
    r_mean = 0.1 * jax.random.normal(km, (out_ch,))
    r_var = jax.random.uniform(kv, (out_ch,), minval=0.5, maxval=1.5)
    eps = 1e-3
    scale = gamma / jnp.sqrt(r_var + eps)       # BN (eval) folded to affine
    bias = beta - r_mean * scale
    return {"w": w,
            "scale": scale.reshape(1, out_ch).astype(jnp.float32),
            "bias": bias.reshape(1, out_ch).astype(jnp.float32)}


def make_residual_params(key, ch, e=0.5):
    k1, k2 = jax.random.split(key)
    hid = int(ch * e)
    return {"conv1": make_conv_params(k1, ch, hid, k=3),
            "conv2": make_conv_params(k2, hid, ch, k=3)}


# ----------------------------------------------------------------------------
# Pure-JAX reference (for correctness check)
# ----------------------------------------------------------------------------
def _conv_bn_silu_ref(p, x):
    y = jax.lax.conv_general_dilated(
        x, p["w"], window_strides=(1, 1), padding=((1, 1), (1, 1)),
        dimension_numbers=("NHWC", "HWIO", "NHWC"),
        precision=jax.lax.Precision.HIGHEST)
    y = y * p["scale"][0] + p["bias"][0]
    return y * jax.nn.sigmoid(y)


def residual_ref(params, x):
    x = x.astype(jnp.float32)
    return x + _conv_bn_silu_ref(params["conv2"],
                                 _conv_bn_silu_ref(params["conv1"], x))


# ----------------------------------------------------------------------------
if __name__ == "__main__":
    key = jax.random.PRNGKey(0)
    kp, kx = jax.random.split(key)

    # Small NHWC input (== torch NCHW (2, 128, 16, 16)); Residual(ch=128, e=0.5)
    N, H, W, CH = 2, 16, 16, 128
    params = make_residual_params(kp, CH, e=0.5)
    x = jax.random.normal(kx, (N, H, W, CH), jnp.float32)

    fwd = jax.jit(residual_forward)
    out = jax.block_until_ready(fwd(params, x))

    ref = jax.block_until_ready(residual_ref(params, x))
    assert out.shape == x.shape and out.dtype == x.dtype
    # Tolerance reflects bf16 MXU operands + bf16 inter-conv activation vs the
    # HIGHEST-precision f32 reference (accumulation/epilogue are f32).
    np.testing.assert_allclose(np.asarray(out), np.asarray(ref),
                               atol=3e-2, rtol=2e-2)

    # bf16 I/O path (bf16 MXU operands, f32 accumulation + f32 BN/SiLU epilogue).
    xb = x.astype(jnp.bfloat16)
    outb = jax.block_until_ready(fwd(params, xb))
    assert outb.shape == x.shape and outb.dtype == jnp.bfloat16
    assert bool(jnp.all(jnp.isfinite(outb.astype(jnp.float32))))

    print("KERNEL_OK")
</pallas_src>

<mosaic_0001>
module attributes {stable_mosaic.version = 11 : i64} {
  func.func @_residual_kernel(%arg0: i32, %arg1: i32, %arg2: memref<1x20x20x128xf32, #tpu.memory_space<vmem>>, %arg3: memref<1152x64xbf16, #tpu.memory_space<vmem>>, %arg4: memref<1x64xf32, #tpu.memory_space<vmem>>, %arg5: memref<1x64xf32, #tpu.memory_space<vmem>>, %arg6: memref<576x128xbf16, #tpu.memory_space<vmem>>, %arg7: memref<1x128xf32, #tpu.memory_space<vmem>>, %arg8: memref<1x128xf32, #tpu.memory_space<vmem>>, %arg9: memref<1x16x16x128xf32, #tpu.memory_space<vmem>>) attributes {dimension_semantics = [#tpu.dimension_semantics<parallel>, #tpu.dimension_semantics<parallel>], iteration_bounds = array<i64: 2, 1>, scalar_prefetch = 0 : i64, scratch_operands = 0 : i64, tpu.core_type = #tpu.core_type<tc>, window_params = [{transform_indices = @transform_0, window_bounds = array<i64: 1, 20, 20, 128>}, {pipeline_mode = #tpu.pipeline_mode<synchronous>, transform_indices = @transform_1, window_bounds = array<i64: 1152, 64>}, {pipeline_mode = #tpu.pipeline_mode<synchronous>, transform_indices = @transform_2, window_bounds = array<i64: 1, 64>}, {pipeline_mode = #tpu.pipeline_mode<synchronous>, transform_indices = @transform_3, window_bounds = array<i64: 1, 64>}, {pipeline_mode = #tpu.pipeline_mode<synchronous>, transform_indices = @transform_4, window_bounds = array<i64: 576, 128>}, {pipeline_mode = #tpu.pipeline_mode<synchronous>, transform_indices = @transform_5, window_bounds = array<i64: 1, 128>}, {pipeline_mode = #tpu.pipeline_mode<synchronous>, transform_indices = @transform_6, window_bounds = array<i64: 1, 128>}, {transform_indices = @transform_7, window_bounds = array<i64: 1, 16, 16, 128>}]} {
    %c16_i32 = arith.constant 16 : i32
    %0 = arith.muli %arg1, %c16_i32 : i32
    %1 = tpu.assume_multiple %0, 16 : i32
    %c0 = arith.constant 0 : index
    %2 = arith.index_cast %1 : i32 to index
    %c0_0 = arith.constant 0 : index
    %c0_1 = arith.constant 0 : index
    %3 = vector.load %arg2[%c0, %2, %c0_0, %c0_1] : memref<1x20x20x128xf32, #tpu.memory_space<vmem>>, vector<1x20x20x128xf32>
    %4 = vector.shape_cast %3 : vector<1x20x20x128xf32> to vector<20x20x128xf32>
    %5 = arith.truncf %4 : vector<20x20x128xf32> to vector<20x20x128xbf16>
    %6 = vector.extract_strided_slice %5 {offsets = [0, 1, 0], sizes = [18, 16, 128], strides = [1, 1, 1]} : vector<20x20x128xbf16> to vector<18x16x128xbf16>
    %7 = vector.extract_strided_slice %5 {offsets = [0, 2, 0], sizes = [18, 16, 128], strides = [1, 1, 1]} : vector<20x20x128xbf16> to vector<18x16x128xbf16>
    %8 = vector.extract_strided_slice %5 {offsets = [0, 3, 0], sizes = [18, 16, 128], strides = [1, 1, 1]} : vector<20x20x128xbf16> to vector<18x16x128xbf16>
    %9 = vector.extract_strided_slice %5 {offsets = [1, 1, 0], sizes = [18, 16, 128], strides = [1, 1, 1]} : vector<20x20x128xbf16> to vector<18x16x128xbf16>
    %10 = vector.extract_strided_slice %5 {offsets = [1, 2, 0], sizes = [18, 16, 128], strides = [1, 1, 1]} : vector<20x20x128xbf16> to vector<18x16x128xbf16>
    %11 = vector.extract_strided_slice %5 {offsets = [1, 3, 0], sizes = [18, 16, 128], strides = [1, 1, 1]} : vector<20x20x128xbf16> to vector<18x16x128xbf16>
    %12 = vector.extract_strided_slice %5 {offsets = [2, 1, 0], sizes = [18, 16, 128], strides = [1, 1, 1]} : vector<20x20x128xbf16> to vector<18x16x128xbf16>
    %13 = vector.extract_strided_slice %5 {offsets = [2, 2, 0], sizes = [18, 16, 128], strides = [1, 1, 1]} : vector<20x20x128xbf16> to vector<18x16x128xbf16>
    %14 = vector.extract_strided_slice %5 {offsets = [2, 3, 0], sizes = [18, 16, 128], strides = [1, 1, 1]} : vector<20x20x128xbf16> to vector<18x16x128xbf16>
    %15 = tpu.concatenate %6, %7, %8, %9, %10, %11, %12, %13, %14 in 2 : vector<18x16x128xbf16>, vector<18x16x128xbf16>, vector<18x16x128xbf16>, vector<18x16x128xbf16>, vector<18x16x128xbf16>, vector<18x16x128xbf16>, vector<18x16x128xbf16>, vector<18x16x128xbf16>, vector<18x16x128xbf16> -> vector<18x16x1152xbf16>
    %16 = vector.shape_cast %15 : vector<18x16x1152xbf16> to vector<288x1152xbf16>
    %c0_2 = arith.constant 0 : index
    %c0_3 = arith.constant 0 : index
    %17 = vector.load %arg3[%c0_2, %c0_3] : memref<1152x64xbf16, #tpu.memory_space<vmem>>, vector<1152x64xbf16>
    %cst = arith.constant dense<0.000000e+00> : vector<288x64xf32>
    %18 = tpu.matmul %16, %17, %cst {dimension_numbers = #tpu.dot_dimension_numbers<[1], [0], [0], [1], [0, 0, 1, 1], [], []>} : vector<288x1152xbf16>, vector<1152x64xbf16>, vector<288x64xf32> -> vector<288x64xf32>
    %c0_4 = arith.constant 0 : index
    %c0_5 = arith.constant 0 : index
    %19 = vector.load %arg4[%c0_4, %c0_5] : memref<1x64xf32, #tpu.memory_space<vmem>>, vector<1x64xf32>
    %20 = vector.broadcast %19 : vector<1x64xf32> to vector<288x64xf32>
    %21 = arith.mulf %18, %20 : vector<288x64xf32>
    %c0_6 = arith.constant 0 : index
    %c0_7 = arith.constant 0 : index
    %22 = vector.load %arg5[%c0_6, %c0_7] : memref<1x64xf32, #tpu.memory_space<vmem>>, vector<1x64xf32>
    %23 = vector.broadcast %22 : vector<1x64xf32> to vector<288x64xf32>
    %24 = arith.addf %21, %23 : vector<288x64xf32>
    %25 = arith.negf %24 : vector<288x64xf32>
    %26 = math.exp %25 : vector<288x64xf32>
    %cst_8 = arith.constant 1.000000e+00 : f32
    %27 = vector.broadcast %cst_8 : f32 to vector<288x64xf32>
    %28 = arith.addf %27, %26 : vector<288x64xf32>
    %29 = arith.divf %27, %28 : vector<288x64xf32>
    %30 = arith.mulf %24, %29 : vector<288x64xf32>
    %31 = vector.shape_cast %30 : vector<288x64xf32> to vector<18x16x64xf32>
    %c1_i32 = arith.constant 1 : i32
    %32 = arith.subi %1, %c1_i32 : i32
    %33 = tpu.iota {dimensions = array<i32: 0>} : vector<18x16x64xi32>
    %34 = vector.broadcast %32 : i32 to vector<18x16x64xi32>
    %35 = arith.addi %34, %33 : vector<18x16x64xi32>
    %c0_i32 = arith.constant 0 : i32
    %36 = vector.broadcast %c0_i32 : i32 to vector<18x16x64xi32>
    %37 = arith.cmpi sge, %35, %36 : vector<18x16x64xi32>
    %c16_i32_9 = arith.constant 16 : i32
    %38 = vector.broadcast %c16_i32_9 : i32 to vector<18x16x64xi32>
    %39 = arith.cmpi slt, %35, %38 : vector<18x16x64xi32>
    %40 = arith.andi %37, %39 : vector<18x16x64xi1>
    %cst_10 = arith.constant 0.000000e+00 : f32
    %41 = vector.broadcast %cst_10 : f32 to vector<18x16x64xf32>
    %42 = arith.select %40, %31, %41 : vector<18x16x64xi1>, vector<18x16x64xf32>
    %43 = arith.truncf %42 : vector<18x16x64xf32> to vector<18x16x64xbf16>
    %cst_11 = arith.constant 0.000000e+00 : bf16
    %44 = vector.broadcast %cst_11 : bf16 to vector<18x1x64xbf16>
    %45 = tpu.concatenate %44, %43, %44 in 1 : vector<18x1x64xbf16>, vector<18x16x64xbf16>, vector<18x1x64xbf16> -> vector<18x18x64xbf16>
    %46 = vector.extract_strided_slice %45 {offsets = [0, 0, 0], sizes = [16, 16, 64], strides = [1, 1, 1]} : vector<18x18x64xbf16> to vector<16x16x64xbf16>
    %47 = vector.extract_strided_slice %45 {offsets = [0, 1, 0], sizes = [16, 16, 64], strides = [1, 1, 1]} : vector<18x18x64xbf16> to vector<16x16x64xbf16>
    %48 = vector.extract_strided_slice %45 {offsets = [0, 2, 0], sizes = [16, 16, 64], strides = [1, 1, 1]} : vector<18x18x64xbf16> to vector<16x16x64xbf16>
    %49 = vector.extract_strided_slice %45 {offsets = [1, 0, 0], sizes = [16, 16, 64], strides = [1, 1, 1]} : vector<18x18x64xbf16> to vector<16x16x64xbf16>
    %50 = vector.extract_strided_slice %45 {offsets = [1, 1, 0], sizes = [16, 16, 64], strides = [1, 1, 1]} : vector<18x18x64xbf16> to vector<16x16x64xbf16>
    %51 = vector.extract_strided_slice %45 {offsets = [1, 2, 0], sizes = [16, 16, 64], strides = [1, 1, 1]} : vector<18x18x64xbf16> to vector<16x16x64xbf16>
    %52 = vector.extract_strided_slice %45 {offsets = [2, 0, 0], sizes = [16, 16, 64], strides = [1, 1, 1]} : vector<18x18x64xbf16> to vector<16x16x64xbf16>
    %53 = vector.extract_strided_slice %45 {offsets = [2, 1, 0], sizes = [16, 16, 64], strides = [1, 1, 1]} : vector<18x18x64xbf16> to vector<16x16x64xbf16>
    %54 = vector.extract_strided_slice %45 {offsets = [2, 2, 0], sizes = [16, 16, 64], strides = [1, 1, 1]} : vector<18x18x64xbf16> to vector<16x16x64xbf16>
    %55 = tpu.concatenate %46, %47, %48, %49, %50, %51, %52, %53, %54 in 2 : vector<16x16x64xbf16>, vector<16x16x64xbf16>, vector<16x16x64xbf16>, vector<16x16x64xbf16>, vector<16x16x64xbf16>, vector<16x16x64xbf16>, vector<16x16x64xbf16>, vector<16x16x64xbf16>, vector<16x16x64xbf16> -> vector<16x16x576xbf16>
    %56 = vector.shape_cast %55 : vector<16x16x576xbf16> to vector<256x576xbf16>
    %c0_12 = arith.constant 0 : index
    %c0_13 = arith.constant 0 : index
    %57 = vector.load %arg6[%c0_12, %c0_13] : memref<576x128xbf16, #tpu.memory_space<vmem>>, vector<576x128xbf16>
    %cst_14 = arith.constant dense<0.000000e+00> : vector<256x128xf32>
    %58 = tpu.matmul %56, %57, %cst_14 {dimension_numbers = #tpu.dot_dimension_numbers<[1], [0], [0], [1], [0, 0, 1, 1], [], []>} : vector<256x576xbf16>, vector<576x128xbf16>, vector<256x128xf32> -> vector<256x128xf32>
    %c0_15 = arith.constant 0 : index
    %c0_16 = arith.constant 0 : index
    %59 = vector.load %arg7[%c0_15, %c0_16] : memref<1x128xf32, #tpu.memory_space<vmem>>, vector<1x128xf32>
    %60 = vector.broadcast %59 : vector<1x128xf32> to vector<256x128xf32>
    %61 = arith.mulf %58, %60 : vector<256x128xf32>
    %c0_17 = arith.constant 0 : index
    %c0_18 = arith.constant 0 : index
    %62 = vector.load %arg8[%c0_17, %c0_18] : memref<1x128xf32, #tpu.memory_space<vmem>>, vector<1x128xf32>
    %63 = vector.broadcast %62 : vector<1x128xf32> to vector<256x128xf32>
    %64 = arith.addf %61, %63 : vector<256x128xf32>
    %65 = arith.negf %64 : vector<256x128xf32>
    %66 = math.exp %65 : vector<256x128xf32>
    %cst_19 = arith.constant 1.000000e+00 : f32
    %67 = vector.broadcast %cst_19 : f32 to vector<256x128xf32>
    %68 = arith.addf %67, %66 : vector<256x128xf32>
    %69 = arith.divf %67, %68 : vector<256x128xf32>
    %70 = arith.mulf %64, %69 : vector<256x128xf32>
    %71 = vector.extract_strided_slice %4 {offsets = [2, 2, 0], sizes = [16, 16, 128], strides = [1, 1, 1]} : vector<20x20x128xf32> to vector<16x16x128xf32>
    %72 = vector.shape_cast %71 : vector<16x16x128xf32> to vector<256x128xf32>
    %73 = arith.addf %70, %72 : vector<256x128xf32>
    %74 = vector.shape_cast %73 : vector<256x128xf32> to vector<16x16x128xf32>
    %c0_20 = arith.constant 0 : index
    %c0_21 = arith.constant 0 : index
    %c0_22 = arith.constant 0 : index
    %c0_23 = arith.constant 0 : index
    %75 = vector.load %arg9[%c0_20, %c0_21, %c0_22, %c0_23] : memref<1x16x16x128xf32, #tpu.memory_space<vmem>>, vector<1x16x16x128xf32>
    %76 = vector.shape_cast %75 : vector<1x16x16x128xf32> to vector<16x16x128xf32>
    %77 = vector.shape_cast %74 : vector<16x16x128xf32> to vector<1x16x16x128xf32>
    tpu.vector_store %arg9[%c0_20, %c0_21, %c0_22, %c0_23], %77 {strides = array<i32>} : memref<1x16x16x128xf32, #tpu.memory_space<vmem>>, vector<1x16x16x128xf32>,
    return
  }
  func.func @transform_0(%arg0: i32, %arg1: i32) -> (i32, i32, i32, i32) {
    %c0_i32 = arith.constant 0 : i32
    %c0_i32_0 = arith.constant 0 : i32
    %c0_i32_1 = arith.constant 0 : i32
    %c0_i32_2 = arith.constant 0 : i32
    return %arg0, %c0_i32, %c0_i32_0, %c0_i32_1 : i32, i32, i32, i32
  }
  func.func @transform_1(%arg0: i32, %arg1: i32) -> (i32, i32) {
    %c0_i32 = arith.constant 0 : i32
    %c0_i32_0 = arith.constant 0 : i32
    %c0_i32_1 = arith.constant 0 : i32
    return %c0_i32, %c0_i32_0 : i32, i32
  }
  func.func @transform_2(%arg0: i32, %arg1: i32) -> (i32, i32) {
    %c0_i32 = arith.constant 0 : i32
    %c0_i32_0 = arith.constant 0 : i32
    %c0_i32_1 = arith.constant 0 : i32
    return %c0_i32, %c0_i32_0 : i32, i32
  }
  func.func @transform_3(%arg0: i32, %arg1: i32) -> (i32, i32) {
    %c0_i32 = arith.constant 0 : i32
    %c0_i32_0 = arith.constant 0 : i32
    %c0_i32_1 = arith.constant 0 : i32
    return %c0_i32, %c0_i32_0 : i32, i32
  }
  func.func @transform_4(%arg0: i32, %arg1: i32) -> (i32, i32) {
    %c0_i32 = arith.constant 0 : i32
    %c0_i32_0 = arith.constant 0 : i32
    %c0_i32_1 = arith.constant 0 : i32
    return %c0_i32, %c0_i32_0 : i32, i32
  }
  func.func @transform_5(%arg0: i32, %arg1: i32) -> (i32, i32) {
    %c0_i32 = arith.constant 0 : i32
    %c0_i32_0 = arith.constant 0 : i32
    %c0_i32_1 = arith.constant 0 : i32
    return %c0_i32, %c0_i32_0 : i32, i32
  }
  func.func @transform_6(%arg0: i32, %arg1: i32) -> (i32, i32) {
    %c0_i32 = arith.constant 0 : i32
    %c0_i32_0 = arith.constant 0 : i32
    %c0_i32_1 = arith.constant 0 : i32
    return %c0_i32, %c0_i32_0 : i32, i32
  }
  func.func @transform_7(%arg0: i32, %arg1: i32) -> (i32, i32, i32, i32) {
    %c0_i32 = arith.constant 0 : i32
    %c0_i32_0 = arith.constant 0 : i32
    %c0_i32_1 = arith.constant 0 : i32
    return %arg0, %arg1, %c0_i32, %c0_i32_0 : i32, i32, i32, i32
  }
}

</mosaic_0001>

<llo_original>
// kernel: residual_forward.1
$region0: #{residual_forward.1}
  #allocation0 [shape = 'u32[]', space=smem, size = 0x4, offset = 0x4, fixed_abs, tag = 'smem constant byte address 0x4 - core index']
  #allocation1 [shape = 'u32[144,128]{1,0:T(1,128)}', space=vmem, size = 0x12000, scoped, tag = 'internal scratch']
  %s0 = inlined_call_operand.hbm [shape: f32[2,20,20,128], index: 0, kind: input, shape index: {}]
  %s1 = inlined_call_operand.hbm [shape: bf16[1152,64], index: 1, kind: input, shape index: {}]
  %s2 = inlined_call_operand.hbm [shape: f32[1,64], index: 2, kind: input, shape index: {}]
  %s3 = inlined_call_operand.hbm [shape: f32[1,64], index: 3, kind: input, shape index: {}]
  %s4 = inlined_call_operand.hbm [shape: bf16[576,128], index: 4, kind: input, shape index: {}]
  %s5 = inlined_call_operand.hbm [shape: f32[1,128], index: 5, kind: input, shape index: {}]
  %s6 = inlined_call_operand.hbm [shape: f32[1,128], index: 6, kind: input, shape index: {}]
  %s7 = inlined_call_operand.hbm [shape: f32[2,16,16,128], index: 7, kind: output, shape index: {}]
  %s8 = sld [smem:[#allocation0]]
  $region89: #{residual_forward.1} parent=0
    _
  %s10 = ssub.s32 1, %s8
  %s11 = scalar_select 0, %s10, %s8
  $region1: #{residual_forward.1} parent=0
    #allocation2 [shape = 'u8[491520]{0}', space=vmem, size = 0x78000, scoped, tag = 'input window, operand 0']
    #allocation3 [shape = 's32[2]{0}', space=sflag, size = 0x8, scoped, tag = 'scoped memory for residual_forward.1']
    #allocation4 [shape = 's32[2]{0}', space=sflag, size = 0x8, scoped, tag = 'scoped memory for residual_forward.1']
    #allocation5 [shape = 'u8[294912]{0}', space=vmem, size = 0x48000, scoped, tag = 'input window, operand 1, single buffered']
    #allocation6 [shape = 's32[1]{0}', space=sflag, size = 0x4, scoped, tag = 'scoped memory for residual_forward.1']
    #allocation7 [shape = 'u8[512]{0}', space=vmem, size = 0x400, scoped, tag = 'input window, operand 2, single buffered']
    #allocation8 [shape = 'u8[512]{0}', space=vmem, size = 0x400, scoped, tag = 'input window, operand 3, single buffered']
    #allocation9 [shape = 's32[1]{0}', space=sflag, size = 0x4, scoped, tag = 'scoped memory for residual_forward.1']
    #allocation10 [shape = 'u8[147456]{0}', space=vmem, size = 0x24000, scoped, tag = 'input window, operand 4, single buffered']
    #allocation11 [shape = 'u8[512]{0}', space=vmem, size = 0x400, scoped, tag = 'input window, operand 5, single buffered']
    #allocation12 [shape = 's32[1]{0}', space=sflag, size = 0x4, scoped, tag = 'scoped memory for residual_forward.1']
    #allocation13 [shape = 'u8[512]{0}', space=vmem, size = 0x400, scoped, tag = 'input window, operand 6, single buffered']
    #allocation14 [shape = 'u8[262144]{0}', space=vmem, size = 0x40000, scoped, tag = 'output window, operand 0']
    %12 = vsyncpa [#allocation3], 0
    %s13 = scalar_lea.sflag [#allocation3], 1
    %14 = vsyncpa %s13, 0
    %15 = vsyncpa [#allocation6], 0
    %16 = vsyncpa [#allocation9], 0
    %17 = vsyncpa [#allocation12], 0
    %18 = vsyncpa [#allocation4], 0
    %s19 = scalar_lea.sflag [#allocation4], 1
    %20 = vsyncpa %s19, 0
    loop: start=0, step=1, limit=4
    $region2: #{residual_forward.1} parent=1 // loop_pre_header
      _
    $region3: #{residual_forward.1} parent=1 // loop_header
      %s22 = sphi 0, %s26
      %p23 = scmp.ge.s32.totalorder %s22, 4
      %s29 = sphi 0, %s41
      %s30 = sphi 0, %s37
      %s31 = sphi 0, %s29
      %s32 = sphi 0, %s30
      %s33 = sphi 0, %s31
      %s34 = sphi 0, %s32
      %s44 = sphi 0, %s46
      %s47 = sphi 0, %s44
      %s48 = sphi 0, %s47
      %s64 = sphi 0, %s48
      %s68 = sphi 0, %s68
      %s70 = sphi 0, %s68
      %s71 = sphi 0, %s70
      %s85 = sphi 0, %s71
      %s89 = sphi 0, %s89
      %s91 = sphi 0, %s89
      %s92 = sphi 0, %s91
      %s106 = sphi 0, %s92
      %s110 = sphi 0, %s110
      %s112 = sphi 0, %s110
      %s113 = sphi 0, %s112
      %s127 = sphi 0, %s113
      %s131 = sphi 0, %s131
      %s133 = sphi 0, %s131
      %s134 = sphi 0, %s133
      %s148 = sphi 0, %s134
      %s152 = sphi 0, %s152
      %s154 = sphi 0, %s152
      %s155 = sphi 0, %s154
      %s169 = sphi 0, %s155
      %s173 = sphi 0, %s173
      %s175 = sphi 0, %s173
      %s176 = sphi 0, %s175
      %s190 = sphi 0, %s176
      %s198 = sphi 0, %s200
      %s201 = sphi 0, %s198
      %s202 = sphi 0, %s201
      %s218 = sphi 0, %s202
    $region4: #{residual_forward.1} parent=1 // loop_header_branch
      %25 = sbr.rel (%p23) target = $region8
    $region5: #{residual_forward.1} parent=1 // loop_body
      %s27 = ssub.s32 %s22, 1
      %s28 = ssub.s32 %s22, 2
      %s35 = sadd.s32 1, %s30
      %p36 = scmp.ge.s32.totalorder %s35, 1
      %s37 = scalar_select %p36, 0, %s35
      %s38 = sadd.s32 1, %s29
      %s39 = scalar_select %p36, %s38, %s29
      %p40 = scmp.ge.s32.totalorder %s39, 2
      %s41 = scalar_select %p40, 0, %s39
      %s42 = ssub.s32 %s29, %s41
      %p43 = scmp.eq.s32.totalorder %s42, 0
      %s45 = sadd.s32 %s44, 1
      %s46 = scalar_select %p43, %s44, %s45
      %p49 = pneg %p43
      %p50 = scmp.eq.s32.totalorder %s22, 1
      %p51 = por %p49, %p50
      %p52 = scmp.ne.s32.totalorder %s44, %s47
      %p53 = scmp.eq.s32.totalorder %s22, 0
      %p54 = por %p52, %p53
      %p55 = scmp.ne.s32.totalorder %s44, %s47
      %p56 = scmp.eq.s32.totalorder %s27, 1
      %p57 = por %p55, %p56
      %p58 = scmp.ne.s32.totalorder %s47, %s48
      %p59 = scmp.eq.s32.totalorder %s27, 0
      %p60 = por %p58, %p59
      %p61 = scmp.ne.s32.totalorder %s47, %s48
      %p62 = scmp.eq.s32.totalorder %s28, 1
      %p63 = por %p61, %p62
      %p65 = scmp.ne.s32.totalorder %s48, %s64
      %p66 = scmp.eq.s32.totalorder %s28, 0
      %p67 = por %p65, %p66
      %s69 = sadd.s32 %s68, 1
      %p72 = scmp.eq.s32.totalorder %s22, 1
      %p73 = scmp.ne.s32.totalorder %s68, %s70
      %p74 = scmp.eq.s32.totalorder %s22, 0
      %p75 = por %p73, %p74
      %p76 = scmp.ne.s32.totalorder %s68, %s70
      %p77 = scmp.eq.s32.totalorder %s27, 1
      %p78 = por %p76, %p77
      %p79 = scmp.ne.s32.totalorder %s70, %s71
      %p80 = scmp.eq.s32.totalorder %s27, 0
      %p81 = por %p79, %p80
      %p82 = scmp.ne.s32.totalorder %s70, %s71
      %p83 = scmp.eq.s32.totalorder %s28, 1
      %p84 = por %p82, %p83
      %p86 = scmp.ne.s32.totalorder %s71, %s85
      %p87 = scmp.eq.s32.totalorder %s28, 0
      %p88 = por %p86, %p87
      %s90 = sadd.s32 %s89, 1
      %p93 = scmp.eq.s32.totalorder %s22, 1
      %p94 = scmp.ne.s32.totalorder %s89, %s91
      %p95 = scmp.eq.s32.totalorder %s22, 0
      %p96 = por %p94, %p95
      %p97 = scmp.ne.s32.totalorder %s89, %s91
      %p98 = scmp.eq.s32.totalorder %s27, 1
      %p99 = por %p97, %p98
      %p100 = scmp.ne.s32.totalorder %s91, %s92
      %p101 = scmp.eq.s32.totalorder %s27, 0
      %p102 = por %p100, %p101
      %p103 = scmp.ne.s32.totalorder %s91, %s92
      %p104 = scmp.eq.s32.totalorder %s28, 1
      %p105 = por %p103, %p104
      %p107 = scmp.ne.s32.totalorder %s92, %s106
      %p108 = scmp.eq.s32.totalorder %s28, 0
      %p109 = por %p107, %p108
      %s111 = sadd.s32 %s110, 1
      %p114 = scmp.eq.s32.totalorder %s22, 1
      %p115 = scmp.ne.s32.totalorder %s110, %s112
      %p116 = scmp.eq.s32.totalorder %s22, 0
      %p117 = por %p115, %p116
      %p118 = scmp.ne.s32.totalorder %s110, %s112
      %p119 = scmp.eq.s32.totalorder %s27, 1
      %p120 = por %p118, %p119
      %p121 = scmp.ne.s32.totalorder %s112, %s113
      %p122 = scmp.eq.s32.totalorder %s27, 0
      %p123 = por %p121, %p122
      %p124 = scmp.ne.s32.totalorder %s112, %s113
      %p125 = scmp.eq.s32.totalorder %s28, 1
      %p126 = por %p124, %p125
      %p128 = scmp.ne.s32.totalorder %s113, %s127
      %p129 = scmp.eq.s32.totalorder %s28, 0
      %p130 = por %p128, %p129
      %s132 = sadd.s32 %s131, 1
      %p135 = scmp.eq.s32.totalorder %s22, 1
      %p136 = scmp.ne.s32.totalorder %s131, %s133
      %p137 = scmp.eq.s32.totalorder %s22, 0
      %p138 = por %p136, %p137
      %p139 = scmp.ne.s32.totalorder %s131, %s133
      %p140 = scmp.eq.s32.totalorder %s27, 1
      %p141 = por %p139, %p140
      %p142 = scmp.ne.s32.totalorder %s133, %s134
      %p143 = scmp.eq.s32.totalorder %s27, 0
      %p144 = por %p142, %p143
      %p145 = scmp.ne.s32.totalorder %s133, %s134
      %p146 = scmp.eq.s32.totalorder %s28, 1
      %p147 = por %p145, %p146
      %p149 = scmp.ne.s32.totalorder %s134, %s148
      %p150 = scmp.eq.s32.totalorder %s28, 0
      %p151 = por %p149, %p150
      %s153 = sadd.s32 %s152, 1
      %p156 = scmp.eq.s32.totalorder %s22, 1
      %p157 = scmp.ne.s32.totalorder %s152, %s154
      %p158 = scmp.eq.s32.totalorder %s22, 0
      %p159 = por %p157, %p158
      %p160 = scmp.ne.s32.totalorder %s152, %s154
      %p161 = scmp.eq.s32.totalorder %s27, 1
      %p162 = por %p160, %p161
      %p163 = scmp.ne.s32.totalorder %s154, %s155
      %p164 = scmp.eq.s32.totalorder %s27, 0
      %p165 = por %p163, %p164
      %p166 = scmp.ne.s32.totalorder %s154, %s155
      %p167 = scmp.eq.s32.totalorder %s28, 1
      %p168 = por %p166, %p167
      %p170 = scmp.ne.s32.totalorder %s155, %s169
      %p171 = scmp.eq.s32.totalorder %s28, 0
      %p172 = por %p170, %p171
      %s174 = sadd.s32 %s173, 1
      %p177 = scmp.eq.s32.totalorder %s22, 1
      %p178 = scmp.ne.s32.totalorder %s173, %s175
      %p179 = scmp.eq.s32.totalorder %s22, 0
      %p180 = por %p178, %p179
      %p181 = scmp.ne.s32.totalorder %s173, %s175
      %p182 = scmp.eq.s32.totalorder %s27, 1
      %p183 = por %p181, %p182
      %p184 = scmp.ne.s32.totalorder %s175, %s176
      %p185 = scmp.eq.s32.totalorder %s27, 0
      %p186 = por %p184, %p185
      %p187 = scmp.ne.s32.totalorder %s175, %s176
      %p188 = scmp.eq.s32.totalorder %s28, 1
      %p189 = por %p187, %p188
      %p191 = scmp.ne.s32.totalorder %s176, %s190
      %p192 = scmp.eq.s32.totalorder %s28, 0
      %p193 = por %p191, %p192
      %s194 = ssub.s32 %s29, %s41
      %s195 = ssub.s32 %s30, %s37
      %s196 = sor.u32 %s194, %s195
      %p197 = scmp.eq.s32.totalorder %s196, 0
      %s199 = sadd.s32 %s198, 1
      %s200 = scalar_select %p197, %s198, %s199
      %p203 = pneg %p197
      %p204 = scmp.eq.s32.totalorder %s22, 1
      %p205 = por %p203, %p204
      %p206 = scmp.ne.s32.totalorder %s198, %s201
      %p207 = scmp.eq.s32.totalorder %s22, 0
      %p208 = por %p206, %p207
      %p209 = scmp.ne.s32.totalorder %s198, %s201
      %p210 = scmp.eq.s32.totalorder %s27, 1
      %p211 = por %p209, %p210
      %p212 = scmp.ne.s32.totalorder %s201, %s202
      %p213 = scmp.eq.s32.totalorder %s27, 0
      %p214 = por %p212, %p213
      %p215 = scmp.ne.s32.totalorder %s201, %s202
      %p216 = scmp.eq.s32.totalorder %s28, 1
      %p217 = por %p215, %p216
      %p219 = scmp.ne.s32.totalorder %s202, %s218
      %p220 = scmp.eq.s32.totalorder %s28, 0
      %p221 = por %p219, %p220
      %p222 = scmp.le.s32.totalorder 1, %s22
      %p223 = scmp.lt.s32.totalorder %s22, 3
      %p224 = pnand %p222, %p223
      %p225 = pneg %p224
      // Predicated region
      $region9: #{residual_forward.1} parent=5 // pred_check
        _
      $region10: #{residual_forward.1} parent=5 // pred_check_branch
        %227 = sbr.rel (%p224) target = $region12
      $region11: #{residual_forward.1} parent=5 // pred_region
        %s228 = ssub.s32 %s22, 1
        // Predicated region
        $region13: #{residual_forward.1} parent=11 // pred_check
          %p229 = pneg %p81
        $region14: #{residual_forward.1} parent=11 // pred_check_branch
          %231 = sbr.rel (%p229) target = $region16
        $region15: #{residual_forward.1} parent=11 // pred_region
          %s233 = ssub.s32 9216, 9216
          %234 = vsyncadd [#allocation6], %s233
          %s235 = sshll.u32 [#allocation5], 4
          %s236 = int_to_ptr.vmem [resolvable:$true] %s235
          %241 = dma.hbm_to_vmem [thread:$0]  %s1, 9216, %s236, [#allocation6], 64, 64, 4
        $region16: #{residual_forward.1} parent=11 // pred_fallthru
          _
        // Predicated region
        $region17: #{residual_forward.1} parent=11 // pred_check
          %p242 = pneg %p102
        $region18: #{residual_forward.1} parent=11 // pred_check_branch
          %244 = sbr.rel (%p242) target = $region20
        $region19: #{residual_forward.1} parent=11 // pred_region
          %s246 = ssub.s32 16, 16
          %247 = vsyncadd [#allocation6], %s246
          %s249 = sshll.u32 [#allocation7], 4
          %s250 = int_to_ptr.vmem [resolvable:$true] %s249
          %252 = dma.hbm_to_vmem [thread:$0]  %s2, 16, %s250, [#allocation6]
        $region20: #{residual_forward.1} parent=11 // pred_fallthru
          _
        // Predicated region
        $region21: #{residual_forward.1} parent=11 // pred_check
          %p253 = pneg %p123
        $region22: #{residual_forward.1} parent=11 // pred_check_branch
          %255 = sbr.rel (%p253) target = $region24
        $region23: #{residual_forward.1} parent=11 // pred_region
          %s257 = ssub.s32 16, 16
          %258 = vsyncadd [#allocation9], %s257
          %s260 = sshll.u32 [#allocation8], 4
          %s261 = int_to_ptr.vmem [resolvable:$true] %s260
          %263 = dma.hbm_to_vmem [thread:$0]  %s3, 16, %s261, [#allocation9]
        $region24: #{residual_forward.1} parent=11 // pred_fallthru
          _
        // Predicated region
        $region25: #{residual_forward.1} parent=11 // pred_check
          %p264 = pneg %p144
        $region26: #{residual_forward.1} parent=11 // pred_check_branch
          %266 = sbr.rel (%p264) target = $region28
        $region27: #{residual_forward.1} parent=11 // pred_region
          %s268 = ssub.s32 4608, 4608
          %269 = vsyncadd [#allocation9], %s268
          %s270 = sshll.u32 [#allocation10], 4
          %s271 = int_to_ptr.vmem [resolvable:$true] %s270
          %276 = dma.hbm_to_vmem [thread:$0]  %s4, 4608, %s271, [#allocation9], 64, 64, 4
        $region28: #{residual_forward.1} parent=11 // pred_fallthru
          _
        // Predicated region
        $region29: #{residual_forward.1} parent=11 // pred_check
          %p277 = pneg %p165
        $region30: #{residual_forward.1} parent=11 // pred_check_branch
          %279 = sbr.rel (%p277) target = $region32
        $region31: #{residual_forward.1} parent=11 // pred_region
          %s281 = ssub.s32 16, 16
          %282 = vsyncadd [#allocation12], %s281
          %s284 = sshll.u32 [#allocation11], 4
          %s285 = int_to_ptr.vmem [resolvable:$true] %s284
          %287 = dma.hbm_to_vmem [thread:$0]  %s5, 16, %s285, [#allocation12]
        $region32: #{residual_forward.1} parent=11 // pred_fallthru
          _
        // Predicated region
        $region33: #{residual_forward.1} parent=11 // pred_check
          %p288 = pneg %p186
        $region34: #{residual_forward.1} parent=11 // pred_check_branch
          %290 = sbr.rel (%p288) target = $region36
        $region35: #{residual_forward.1} parent=11 // pred_region
          %s292 = ssub.s32 16, 16
          %293 = vsyncadd [#allocation12], %s292
          %s295 = sshll.u32 [#allocation13], 4
          %s296 = int_to_ptr.vmem [resolvable:$true] %s295
          %298 = dma.hbm_to_vmem [thread:$0]  %s6, 16, %s296, [#allocation12]
        $region36: #{residual_forward.1} parent=11 // pred_fallthru
          _
      $region12: #{residual_forward.1} parent=5 // pred_fallthru
        _
      %p299 = scmp.lt.s32.totalorder %s22, 2
      // Predicated region
      $region37: #{residual_forward.1} parent=5 // pred_check
        %p300 = pneg %p299
      $region38: #{residual_forward.1} parent=5 // pred_check_branch
        %302 = sbr.rel (%p300) target = $region40
      $region39: #{residual_forward.1} parent=5 // pred_region
        // Predicated region
        $region41: #{residual_forward.1} parent=39 // pred_check
          %p303 = pneg %p54
        $region42: #{residual_forward.1} parent=39 // pred_check_branch
          %305 = sbr.rel (%p303) target = $region44
        $region43: #{residual_forward.1} parent=39 // pred_region
          %s306 = sand.u32 %s44, 1
          %s307 = scalar_lea.sflag [#allocation3], %s306
          %s308 = sand.u32 %s44, 1
          %s309 = smul.addr %s308, 480
          %s310 = scalar_lea.vmem [#allocation2], %s309
          %s312 = ssub.s32 7680, 7680
          %313 = vsyncadd %s307, %s312
          %s314 = smul.addr %s29, 60
          %s315 = smul.addr %s314, 128
          %s316 = scalar_lea.hbm %s0, %s315
          %s317 = sshll.u32 %s310, 4
          %s318 = int_to_ptr.vmem [resolvable:$true] %s317
          %323 = dma.hbm_to_vmem [thread:$0]  %s316, 7680, %s318, %s307, 128, 128, 8
        $region44: #{residual_forward.1} parent=39 // pred_fallthru
          _
      $region40: #{residual_forward.1} parent=5 // pred_fallthru
        _
      %p324 = scmp.le.s32.totalorder 1, %s22
      %p325 = scmp.lt.s32.totalorder %s22, 3
      %p326 = pnand %p324, %p325
      %p327 = pneg %p326
      // Predicated region
      $region45: #{residual_forward.1} parent=5 // pred_check
        _
      $region46: #{residual_forward.1} parent=5 // pred_check_branch
        %329 = sbr.rel (%p326) target = $region48
      $region47: #{residual_forward.1} parent=5 // pred_region
        %s330 = ssub.s32 %s22, 1
        %s331 = sand.u32 %s47, 1
        %s332 = scalar_lea.sflag [#allocation3], %s331
        %s333 = sand.u32 %s47, 1
        %s334 = smul.addr %s333, 480
        %s335 = scalar_lea.vmem [#allocation2], %s334
        // Predicated region
        $region49: #{residual_forward.1} parent=47 // pred_check
          %p336 = pneg %p60
        $region50: #{residual_forward.1} parent=47 // pred_check_branch
          %338 = sbr.rel (%p336) target = $region52
        $region51: #{residual_forward.1} parent=47 // pred_region
          %339 = dma.done %s332, 7680
        $region52: #{residual_forward.1} parent=47 // pred_fallthru
          _
        // Predicated region
        $region53: #{residual_forward.1} parent=47 // pred_check
          %p340 = pneg %p81
        $region54: #{residual_forward.1} parent=47 // pred_check_branch
          %342 = sbr.rel (%p340) target = $region56
        $region55: #{residual_forward.1} parent=47 // pred_region
          %343 = dma.done [#allocation6], 9216
        $region56: #{residual_forward.1} parent=47 // pred_fallthru
          _
        // Predicated region
        $region57: #{residual_forward.1} parent=47 // pred_check
          %p344 = pneg %p102
        $region58: #{residual_forward.1} parent=47 // pred_check_branch
          %346 = sbr.rel (%p344) target = $region60
        $region59: #{residual_forward.1} parent=47 // pred_region
          %347 = dma.done [#allocation6], 16
        $region60: #{residual_forward.1} parent=47 // pred_fallthru
          _
        // Predicated region
        $region61: #{residual_forward.1} parent=47 // pred_check
          %p348 = pneg %p123
        $region62: #{residual_forward.1} parent=47 // pred_check_branch
          %350 = sbr.rel (%p348) target = $region64
        $region63: #{residual_forward.1} parent=47 // pred_region
          %351 = dma.done [#allocation9], 16
        $region64: #{residual_forward.1} parent=47 // pred_fallthru
          _
        // Predicated region
        $region65: #{residual_forward.1} parent=47 // pred_check
          %p352 = pneg %p144
        $region66: #{residual_forward.1} parent=47 // pred_check_branch
          %354 = sbr.rel (%p352) target = $region68
        $region67: #{residual_forward.1} parent=47 // pred_region
          %355 = dma.done [#allocation9], 4608
        $region68: #{residual_forward.1} parent=47 // pred_fallthru
          _
        // Predicated region
        $region69: #{residual_forward.1} parent=47 // pred_check
          %p356 = pneg %p165
        $region70: #{residual_forward.1} parent=47 // pred_check_branch
          %358 = sbr.rel (%p356) target = $region72
        $region71: #{residual_forward.1} parent=47 // pred_region
          %359 = dma.done [#allocation12], 16
        $region72: #{residual_forward.1} parent=47 // pred_fallthru
          _
        // Predicated region
        $region73: #{residual_forward.1} parent=47 // pred_check
          %p360 = pneg %p186
        $region74: #{residual_forward.1} parent=47 // pred_check_branch
          %362 = sbr.rel (%p360) target = $region76
        $region75: #{residual_forward.1} parent=47 // pred_region
          %363 = dma.done [#allocation12], 16
        $region76: #{residual_forward.1} parent=47 // pred_fallthru
          _
        %s364 = sand.u32 %s47, 1
        %s365 = scalar_lea.sflag [#allocation3], %s364
        %s366 = sand.u32 %s47, 1
        %s367 = smul.addr %s366, 480
        %s368 = scalar_lea.vmem [#allocation2], %s367
        %p369 = pneg %p60
        %p370 = pneg %p57
        %p371 = pneg %p81
        %p372 = pneg %p78
        %p373 = pneg %p102
        %p374 = pneg %p99
        %p375 = pneg %p123
        %p376 = pneg %p120
        %p377 = pneg %p144
        %p378 = pneg %p141
        %p379 = pneg %p165
        %p380 = pneg %p162
        %p381 = pneg %p186
        %p382 = pneg %p183
        %p383 = pneg %p214
        %p384 = pneg %p211
        %s385 = sand.u32 %s201, 1
        %s386 = scalar_lea.sflag [#allocation4], %s385
        %s387 = sand.u32 %s201, 1
        %s388 = smul.addr %s387, 256
        %s389 = scalar_lea.vmem [#allocation14], %s388
        %s390 = smul.u32 16, %s32
        %s392 = smul.u32 %s32, 16
        %s393 = smul.u32 %s392, 24
        %s394 = scalar_lea.vmem %s335, %s393 [#allocation2]
        %v395 = vld [vmem:[%s394] sm:$0xff]
        %v396 = vld [vmem:[%s394 + $0x8] sm:$0xff]
        %v397 = vld [vmem:[%s394 + $0x10] sm:$0xf]
        %v398 = vld [vmem:[%s394 + $0x18] sm:$0xff]
        %v399 = vld [vmem:[%s394 + $0x20] sm:$0xff]
        %v400 = vld [vmem:[%s394 + $0x28] sm:$0xf]
        %v401 = vld [vmem:[%s394 + $0x30] sm:$0xff]
        %v402 = vld [vmem:[%s394 + $0x38] sm:$0xff]
        %v403 = vld [vmem:[%s394 + $0x40] sm:$0xf]
        %v404 = vld [vmem:[%s394 + $0x48] sm:$0xff]
        %v405 = vld [vmem:[%s394 + $0x50] sm:$0xff]
        %v406 = vld [vmem:[%s394 + $0x58] sm:$0xf]
        %v407 = vld [vmem:[%s394 + $0x60] sm:$0xff]
        %v408 = vld [vmem:[%s394 + $0x68] sm:$0xff]
        %v409 = vld [vmem:[%s394 + $0x70] sm:$0xf]
        %v410 = vld [vmem:[%s394 + $0x78] sm:$0xff]
        %v411 = vld [vmem:[%s394 + $0x80] sm:$0xff]
        %v412 = vld [vmem:[%s394 + $0x88] sm:$0xf]
        %v413 = vld [vmem:[%s394 + $0x90] sm:$0xff]
        %v414 = vld [vmem:[%s394 + $0x98] sm:$0xff]
        %v415 = vld [vmem:[%s394 + $0xa0] sm:$0xf]
        %v416 = vld [vmem:[%s394 + $0xa8] sm:$0xff]
        %v417 = vld [vmem:[%s394 + $0xb0] sm:$0xff]
        %v418 = vld [vmem:[%s394 + $0xb8] sm:$0xf]
        %v419 = vld [vmem:[%s394 + $0xc0] sm:$0xff]
        %v420 = vld [vmem:[%s394 + $0xc8] sm:$0xff]
        %v421 = vld [vmem:[%s394 + $0xd0] sm:$0xf]
        %v422 = vld [vmem:[%s394 + $0xd8] sm:$0xff]
        %v423 = vld [vmem:[%s394 + $0xe0] sm:$0xff]
        %v424 = vld [vmem:[%s394 + $0xe8] sm:$0xf]
        %v425 = vld [vmem:[%s394 + $0xf0] sm:$0xff]
        %v426 = vld [vmem:[%s394 + $0xf8] sm:$0xff]
        %v427 = vld [vmem:[%s394 + $0x100] sm:$0xf]
        %v428 = vld [vmem:[%s394 + $0x108] sm:$0xff]
        %v429 = vld [vmem:[%s394 + $0x110] sm:$0xff]
        %v430 = vld [vmem:[%s394 + $0x118] sm:$0xf]
        %v431 = vld [vmem:[%s394 + $0x120] sm:$0xff]
        %v432 = vld [vmem:[%s394 + $0x128] sm:$0xff]
        %v433 = vld [vmem:[%s394 + $0x130] sm:$0xf]
        %v434 = vld [vmem:[%s394 + $0x138] sm:$0xff]
        %v435 = vld [vmem:[%s394 + $0x140] sm:$0xff]
        %v436 = vld [vmem:[%s394 + $0x148] sm:$0xf]
        %v437 = vld [vmem:[%s394 + $0x150] sm:$0xff]
        %v438 = vld [vmem:[%s394 + $0x158] sm:$0xff]
        %v439 = vld [vmem:[%s394 + $0x160] sm:$0xf]
        %v440 = vld [vmem:[%s394 + $0x168] sm:$0xff]
        %v441 = vld [vmem:[%s394 + $0x170] sm:$0xff]
        %v442 = vld [vmem:[%s394 + $0x178] sm:$0xf]
        %v443 = vld [vmem:[%s394 + $0x180] sm:$0xff]
        %v444 = vld [vmem:[%s394 + $0x188] sm:$0xff]
        %v445 = vld [vmem:[%s394 + $0x190] sm:$0xf]
        %v446 = vld [vmem:[%s394 + $0x198] sm:$0xff]
        %v447 = vld [vmem:[%s394 + $0x1a0] sm:$0xff]
        %v448 = vld [vmem:[%s394 + $0x1a8] sm:$0xf]
        %v449 = vld [vmem:[%s394 + $0x1b0] sm:$0xff]
        %v450 = vld [vmem:[%s394 + $0x1b8] sm:$0xff]
        %v451 = vld [vmem:[%s394 + $0x1c0] sm:$0xf]
        %v452 = vld [vmem:[%s394 + $0x1c8] sm:$0xff]
        %v453 = vld [vmem:[%s394 + $0x1d0] sm:$0xff]
        %v454 = vld [vmem:[%s394 + $0x1d8] sm:$0xf]
        %v455 = vpack.c.bf16 %v396, %v395
        %v456 = vpack.c.bf16 %v397, %v397
        %v457 = vpack.c.bf16 %v399, %v398
        %v458 = vpack.c.bf16 %v400, %v400
        %v459 = vpack.c.bf16 %v402, %v401
        %v460 = vpack.c.bf16 %v403, %v403
        %v461 = vpack.c.bf16 %v405, %v404
        %v462 = vpack.c.bf16 %v406, %v406
        %v463 = vpack.c.bf16 %v408, %v407
        %v464 = vpack.c.bf16 %v409, %v409
        %v465 = vpack.c.bf16 %v411, %v410
        %v466 = vpack.c.bf16 %v412, %v412
        %v467 = vpack.c.bf16 %v414, %v413
        %v468 = vpack.c.bf16 %v415, %v415
        %v469 = vpack.c.bf16 %v417, %v416
        %v470 = vpack.c.bf16 %v418, %v418
        %v471 = vpack.c.bf16 %v420, %v419
        %v472 = vpack.c.bf16 %v421, %v421
        %v473 = vpack.c.bf16 %v423, %v422
        %v474 = vpack.c.bf16 %v424, %v424
        %v475 = vpack.c.bf16 %v426, %v425
        %v476 = vpack.c.bf16 %v427, %v427
        %v477 = vpack.c.bf16 %v429, %v428
        %v478 = vpack.c.bf16 %v430, %v430
        %v479 = vpack.c.bf16 %v432, %v431
        %v480 = vpack.c.bf16 %v433, %v433
        %v481 = vpack.c.bf16 %v435, %v434
        %v482 = vpack.c.bf16 %v436, %v436
        %v483 = vpack.c.bf16 %v438, %v437
        %v484 = vpack.c.bf16 %v439, %v439
        %v485 = vpack.c.bf16 %v441, %v440
        %v486 = vpack.c.bf16 %v442, %v442
        %v487 = vpack.c.bf16 %v444, %v443
        %v488 = vpack.c.bf16 %v445, %v445
        %v489 = vpack.c.bf16 %v447, %v446
        %v490 = vpack.c.bf16 %v448, %v448
        %v491 = vpack.c.bf16 %v450, %v449
        %v492 = vpack.c.bf16 %v451, %v451
        %v493 = vpack.c.bf16 %v453, %v452
        %v494 = vpack.c.bf16 %v454, %v454
        %vm495 = vsmask.f32 7424
        %v497 = vshrl.u32 %v455, 16
        %v499 = vshll.u32 %v455, 16
        %v501 = vrot.slane %v499, 1
        %v502 = vor.u32 %v497, %v501
        %v504 = vshll.u32 %v456, 16
        %v506 = vrot.slane %v504, 1
        %v507 = vsel %vm495, %v502, %v506
        %v508 = vshrl.u32 %v456, 16
        %v511 = vshrl.u32 %v457, 16
        %v513 = vshll.u32 %v457, 16
        %v515 = vrot.slane %v513, 1
        %v516 = vor.u32 %v511, %v515
        %v518 = vshll.u32 %v458, 16
        %v520 = vrot.slane %v518, 1
        %v521 = vsel %vm495, %v516, %v520
        %v522 = vshrl.u32 %v458, 16
        %v525 = vshrl.u32 %v459, 16
        %v527 = vshll.u32 %v459, 16
        %v529 = vrot.slane %v527, 1
        %v530 = vor.u32 %v525, %v529
        %v532 = vshll.u32 %v460, 16
        %v534 = vrot.slane %v532, 1
        %v535 = vsel %vm495, %v530, %v534
        %v536 = vshrl.u32 %v460, 16
        %v539 = vshrl.u32 %v461, 16
        %v541 = vshll.u32 %v461, 16
        %v543 = vrot.slane %v541, 1
        %v544 = vor.u32 %v539, %v543
        %v546 = vshll.u32 %v462, 16
        %v548 = vrot.slane %v546, 1
        %v549 = vsel %vm495, %v544, %v548
        %v550 = vshrl.u32 %v462, 16
        %v553 = vshrl.u32 %v463, 16
        %v555 = vshll.u32 %v463, 16
        %v557 = vrot.slane %v555, 1
        %v558 = vor.u32 %v553, %v557
        %v560 = vshll.u32 %v464, 16
        %v562 = vrot.slane %v560, 1
        %v563 = vsel %vm495, %v558, %v562
        %v564 = vshrl.u32 %v464, 16
        %v567 = vshrl.u32 %v465, 16
        %v569 = vshll.u32 %v465, 16
        %v571 = vrot.slane %v569, 1
        %v572 = vor.u32 %v567, %v571
        %v574 = vshll.u32 %v466, 16
        %v576 = vrot.slane %v574, 1
        %v577 = vsel %vm495, %v572, %v576
        %v578 = vshrl.u32 %v466, 16
        %v581 = vshrl.u32 %v467, 16
        %v583 = vshll.u32 %v467, 16
        %v585 = vrot.slane %v583, 1
        %v586 = vor.u32 %v581, %v585
        %v588 = vshll.u32 %v468, 16
        %v590 = vrot.slane %v588, 1
        %v591 = vsel %vm495, %v586, %v590
        %v592 = vshrl.u32 %v468, 16
        %v595 = vshrl.u32 %v469, 16
        %v597 = vshll.u32 %v469, 16
        %v599 = vrot.slane %v597, 1
        %v600 = vor.u32 %v595, %v599
        %v602 = vshll.u32 %v470, 16
        %v604 = vrot.slane %v602, 1
        %v605 = vsel %vm495, %v600, %v604
        %v606 = vshrl.u32 %v470, 16
        %v609 = vshrl.u32 %v471, 16
        %v611 = vshll.u32 %v471, 16
        %v613 = vrot.slane %v611, 1
        %v614 = vor.u32 %v609, %v613
        %v616 = vshll.u32 %v472, 16
        %v618 = vrot.slane %v616, 1
        %v619 = vsel %vm495, %v614, %v618
        %v620 = vshrl.u32 %v472, 16
        %v623 = vshrl.u32 %v473, 16
        %v625 = vshll.u32 %v473, 16
        %v627 = vrot.slane %v625, 1
        %v628 = vor.u32 %v623, %v627
        %v630 = vshll.u32 %v474, 16
        %v632 = vrot.slane %v630, 1
        %v633 = vsel %vm495, %v628, %v632
        %v634 = vshrl.u32 %v474, 16
        %v637 = vshrl.u32 %v475, 16
        %v639 = vshll.u32 %v475, 16
        %v641 = vrot.slane %v639, 1
        %v642 = vor.u32 %v637, %v641
        %v644 = vshll.u32 %v476, 16
        %v646 = vrot.slane %v644, 1
        %v647 = vsel %vm495, %v642, %v646
        %v648 = vshrl.u32 %v476, 16
        %v651 = vshrl.u32 %v477, 16
        %v653 = vshll.u32 %v477, 16
        %v655 = vrot.slane %v653, 1
        %v656 = vor.u32 %v651, %v655
        %v658 = vshll.u32 %v478, 16
        %v660 = vrot.slane %v658, 1
        %v661 = vsel %vm495, %v656, %v660
        %v662 = vshrl.u32 %v478, 16
        %v665 = vshrl.u32 %v479, 16
        %v667 = vshll.u32 %v479, 16
        %v669 = vrot.slane %v667, 1
        %v670 = vor.u32 %v665, %v669
        %v672 = vshll.u32 %v480, 16
        %v674 = vrot.slane %v672, 1
        %v675 = vsel %vm495, %v670, %v674
        %v676 = vshrl.u32 %v480, 16
        %v679 = vshrl.u32 %v481, 16
        %v681 = vshll.u32 %v481, 16
        %v683 = vrot.slane %v681, 1
        %v684 = vor.u32 %v679, %v683
        %v686 = vshll.u32 %v482, 16
        %v688 = vrot.slane %v686, 1
        %v689 = vsel %vm495, %v684, %v688
        %v690 = vshrl.u32 %v482, 16
        %v693 = vshrl.u32 %v483, 16
        %v695 = vshll.u32 %v483, 16
        %v697 = vrot.slane %v695, 1
        %v698 = vor.u32 %v693, %v697
        %v700 = vshll.u32 %v484, 16
        %v702 = vrot.slane %v700, 1
        %v703 = vsel %vm495, %v698, %v702
        %v704 = vshrl.u32 %v484, 16
        %v707 = vshrl.u32 %v485, 16
        %v709 = vshll.u32 %v485, 16
        %v711 = vrot.slane %v709, 1
        %v712 = vor.u32 %v707, %v711
        %v714 = vshll.u32 %v486, 16
        %v716 = vrot.slane %v714, 1
        %v717 = vsel %vm495, %v712, %v716
        %v718 = vshrl.u32 %v486, 16
        %v721 = vshrl.u32 %v487, 16
        %v723 = vshll.u32 %v487, 16
        %v725 = vrot.slane %v723, 1
        %v726 = vor.u32 %v721, %v725
        %v728 = vshll.u32 %v488, 16
        %v730 = vrot.slane %v728, 1
        %v731 = vsel %vm495, %v726, %v730
        %v732 = vshrl.u32 %v488, 16
        %v735 = vshrl.u32 %v489, 16
        %v737 = vshll.u32 %v489, 16
        %v739 = vrot.slane %v737, 1
        %v740 = vor.u32 %v735, %v739
        %v742 = vshll.u32 %v490, 16
        %v744 = vrot.slane %v742, 1
        %v745 = vsel %vm495, %v740, %v744
        %v746 = vshrl.u32 %v490, 16
        %vm784 = vcmask 1046528
        %v785 = vrot.slane %v455, 1
        %v786 = vrot.slane %v456, 1
        %v787 = vsel %vm784, %v785, %v786
        %v788 = vrot.slane %v457, 1
        %v789 = vrot.slane %v458, 1
        %v790 = vsel %vm784, %v788, %v789
        %v791 = vrot.slane %v459, 1
        %v792 = vrot.slane %v460, 1
        %v793 = vsel %vm784, %v791, %v792
        %v794 = vrot.slane %v461, 1
        %v795 = vrot.slane %v462, 1
        %v796 = vsel %vm784, %v794, %v795
        %v797 = vrot.slane %v463, 1
        %v798 = vrot.slane %v464, 1
        %v799 = vsel %vm784, %v797, %v798
        %v800 = vrot.slane %v465, 1
        %v801 = vrot.slane %v466, 1
        %v802 = vsel %vm784, %v800, %v801
        %v803 = vrot.slane %v467, 1
        %v804 = vrot.slane %v468, 1
        %v805 = vsel %vm784, %v803, %v804
        %v806 = vrot.slane %v469, 1
        %v807 = vrot.slane %v470, 1
        %v808 = vsel %vm784, %v806, %v807
        %v809 = vrot.slane %v471, 1
        %v810 = vrot.slane %v472, 1
        %v811 = vsel %vm784, %v809, %v810
        %v812 = vrot.slane %v473, 1
        %v813 = vrot.slane %v474, 1
        %v814 = vsel %vm784, %v812, %v813
        %v815 = vrot.slane %v475, 1
        %v816 = vrot.slane %v476, 1
        %v817 = vsel %vm784, %v815, %v816
        %v818 = vrot.slane %v477, 1
        %v819 = vrot.slane %v478, 1
        %v820 = vsel %vm784, %v818, %v819
        %v821 = vrot.slane %v479, 1
        %v822 = vrot.slane %v480, 1
        %v823 = vsel %vm784, %v821, %v822
        %v824 = vrot.slane %v481, 1
        %v825 = vrot.slane %v482, 1
        %v826 = vsel %vm784, %v824, %v825
        %v827 = vrot.slane %v483, 1
        %v828 = vrot.slane %v484, 1
        %v829 = vsel %vm784, %v827, %v828
        %v830 = vrot.slane %v485, 1
        %v831 = vrot.slane %v486, 1
        %v832 = vsel %vm784, %v830, %v831
        %v833 = vrot.slane %v487, 1
        %v834 = vrot.slane %v488, 1
        %v835 = vsel %vm784, %v833, %v834
        %v836 = vrot.slane %v489, 1
        %v837 = vrot.slane %v490, 1
        %v838 = vsel %vm784, %v836, %v837
        %v840 = vshrl.u32 %v491, 16
        %v842 = vshll.u32 %v491, 16
        %v844 = vrot.slane %v842, 1
        %v845 = vor.u32 %v840, %v844
        %v847 = vshll.u32 %v492, 16
        %v849 = vrot.slane %v847, 1
        %v850 = vsel %vm495, %v845, %v849
        %v851 = vshrl.u32 %v492, 16
        %v855 = vrot.slane %v491, 1
        %v856 = vrot.slane %v492, 1
        %v857 = vsel %vm784, %v855, %v856
        %v859 = vshrl.u32 %v493, 16
        %v861 = vshll.u32 %v493, 16
        %v863 = vrot.slane %v861, 1
        %v864 = vor.u32 %v859, %v863
        %v866 = vshll.u32 %v494, 16
        %v868 = vrot.slane %v866, 1
        %v869 = vsel %vm495, %v864, %v868
        %v870 = vshrl.u32 %v494, 16
        %v874 = vrot.slane %v493, 1
        %v875 = vrot.slane %v494, 1
        %v876 = vsel %vm784, %v874, %v875
        %v878 = vshrl.u32 %v507, 16
        %v880 = vshll.u32 %v507, 16
        %v882 = vrot.slane %v880, 1
        %v883 = vor.u32 %v878, %v882
        %v885 = vshll.u32 %v508, 16
        %v887 = vrot.slane %v885, 1
        %v888 = vsel %vm495, %v883, %v887
        %v890 = vshrl.u32 %v787, 16
        %v892 = vshll.u32 %v787, 16
        %v894 = vrot.slane %v892, 1
        %v895 = vor.u32 %v890, %v894
        %v897 = vshll.u32 %v786, 16
        %v899 = vrot.slane %v897, 1
        %v900 = vsel %vm495, %v895, %v899
        %v902 = vshrl.u32 %v521, 16
        %v904 = vshll.u32 %v521, 16
        %v906 = vrot.slane %v904, 1
        %v907 = vor.u32 %v902, %v906
        %v909 = vshll.u32 %v522, 16
        %v911 = vrot.slane %v909, 1
        %v912 = vsel %vm495, %v907, %v911
        %v914 = vshrl.u32 %v790, 16
        %v916 = vshll.u32 %v790, 16
        %v918 = vrot.slane %v916, 1
        %v919 = vor.u32 %v914, %v918
        %v921 = vshll.u32 %v789, 16
        %v923 = vrot.slane %v921, 1
        %v924 = vsel %vm495, %v919, %v923
        %v926 = vshrl.u32 %v535, 16
        %v928 = vshll.u32 %v535, 16
        %v930 = vrot.slane %v928, 1
        %v931 = vor.u32 %v926, %v930
        %v933 = vshll.u32 %v536, 16
        %v935 = vrot.slane %v933, 1
        %v936 = vsel %vm495, %v931, %v935
        %v938 = vshrl.u32 %v793, 16
        %v940 = vshll.u32 %v793, 16
        %v942 = vrot.slane %v940, 1
        %v943 = vor.u32 %v938, %v942
        %v945 = vshll.u32 %v792, 16
        %v947 = vrot.slane %v945, 1
        %v948 = vsel %vm495, %v943, %v947
        %v950 = vshrl.u32 %v549, 16
        %v952 = vshll.u32 %v549, 16
        %v954 = vrot.slane %v952, 1
        %v955 = vor.u32 %v950, %v954
        %v957 = vshll.u32 %v550, 16
        %v959 = vrot.slane %v957, 1
        %v960 = vsel %vm495, %v955, %v959
        %v962 = vshrl.u32 %v796, 16
        %v964 = vshll.u32 %v796, 16
        %v966 = vrot.slane %v964, 1
        %v967 = vor.u32 %v962, %v966
        %v969 = vshll.u32 %v795, 16
        %v971 = vrot.slane %v969, 1
        %v972 = vsel %vm495, %v967, %v971
        %v974 = vshrl.u32 %v563, 16
        %v976 = vshll.u32 %v563, 16
        %v978 = vrot.slane %v976, 1
        %v979 = vor.u32 %v974, %v978
        %v981 = vshll.u32 %v564, 16
        %v983 = vrot.slane %v981, 1
        %v984 = vsel %vm495, %v979, %v983
        %v986 = vshrl.u32 %v799, 16
        %v988 = vshll.u32 %v799, 16
        %v990 = vrot.slane %v988, 1
        %v991 = vor.u32 %v986, %v990
        %v993 = vshll.u32 %v798, 16
        %v995 = vrot.slane %v993, 1
        %v996 = vsel %vm495, %v991, %v995
        %v998 = vshrl.u32 %v577, 16
        %v1000 = vshll.u32 %v577, 16
        %v1002 = vrot.slane %v1000, 1
        %v1003 = vor.u32 %v998, %v1002
        %v1005 = vshll.u32 %v578, 16
        %v1007 = vrot.slane %v1005, 1
        %v1008 = vsel %vm495, %v1003, %v1007
        %v1010 = vshrl.u32 %v802, 16
        %v1012 = vshll.u32 %v802, 16
        %v1014 = vrot.slane %v1012, 1
        %v1015 = vor.u32 %v1010, %v1014
        %v1017 = vshll.u32 %v801, 16
        %v1019 = vrot.slane %v1017, 1
        %v1020 = vsel %vm495, %v1015, %v1019
        %v1022 = vshrl.u32 %v591, 16
        %v1024 = vshll.u32 %v591, 16
        %v1026 = vrot.slane %v1024, 1
        %v1027 = vor.u32 %v1022, %v1026
        %v1029 = vshll.u32 %v592, 16
        %v1031 = vrot.slane %v1029, 1
        %v1032 = vsel %vm495, %v1027, %v1031
        %v1034 = vshrl.u32 %v805, 16
        %v1036 = vshll.u32 %v805, 16
        %v1038 = vrot.slane %v1036, 1
        %v1039 = vor.u32 %v1034, %v1038
        %v1041 = vshll.u32 %v804, 16
        %v1043 = vrot.slane %v1041, 1
        %v1044 = vsel %vm495, %v1039, %v1043
        %v1046 = vshrl.u32 %v605, 16
        %v1048 = vshll.u32 %v605, 16
        %v1050 = vrot.slane %v1048, 1
        %v1051 = vor.u32 %v1046, %v1050
        %v1053 = vshll.u32 %v606, 16
        %v1055 = vrot.slane %v1053, 1
        %v1056 = vsel %vm495, %v1051, %v1055
        %v1058 = vshrl.u32 %v808, 16
        %v1060 = vshll.u32 %v808, 16
        %v1062 = vrot.slane %v1060, 1
        %v1063 = vor.u32 %v1058, %v1062
        %v1065 = vshll.u32 %v807, 16
        %v1067 = vrot.slane %v1065, 1
        %v1068 = vsel %vm495, %v1063, %v1067
        %v1070 = vshrl.u32 %v619, 16
        %v1072 = vshll.u32 %v619, 16
        %v1074 = vrot.slane %v1072, 1
        %v1075 = vor.u32 %v1070, %v1074
        %v1077 = vshll.u32 %v620, 16
        %v1079 = vrot.slane %v1077, 1
        %v1080 = vsel %vm495, %v1075, %v1079
        %v1082 = vshrl.u32 %v811, 16
        %v1084 = vshll.u32 %v811, 16
        %v1086 = vrot.slane %v1084, 1
        %v1087 = vor.u32 %v1082, %v1086
        %v1089 = vshll.u32 %v810, 16
        %v1091 = vrot.slane %v1089, 1
        %v1092 = vsel %vm495, %v1087, %v1091
        %v1094 = vshrl.u32 %v633, 16
        %v1096 = vshll.u32 %v633, 16
        %v1098 = vrot.slane %v1096, 1
        %v1099 = vor.u32 %v1094, %v1098
        %v1101 = vshll.u32 %v634, 16
        %v1103 = vrot.slane %v1101, 1
        %v1104 = vsel %vm495, %v1099, %v1103
        %v1106 = vshrl.u32 %v814, 16
        %v1108 = vshll.u32 %v814, 16
        %v1110 = vrot.slane %v1108, 1
        %v1111 = vor.u32 %v1106, %v1110
        %v1113 = vshll.u32 %v813, 16
        %v1115 = vrot.slane %v1113, 1
        %v1116 = vsel %vm495, %v1111, %v1115
        %v1118 = vshrl.u32 %v647, 16
        %v1120 = vshll.u32 %v647, 16
        %v1122 = vrot.slane %v1120, 1
        %v1123 = vor.u32 %v1118, %v1122
        %v1125 = vshll.u32 %v648, 16
        %v1127 = vrot.slane %v1125, 1
        %v1128 = vsel %vm495, %v1123, %v1127
        %v1130 = vshrl.u32 %v817, 16
        %v1132 = vshll.u32 %v817, 16
        %v1134 = vrot.slane %v1132, 1
        %v1135 = vor.u32 %v1130, %v1134
        %v1137 = vshll.u32 %v816, 16
        %v1139 = vrot.slane %v1137, 1
        %v1140 = vsel %vm495, %v1135, %v1139
        %v1142 = vshrl.u32 %v661, 16
        %v1144 = vshll.u32 %v661, 16
        %v1146 = vrot.slane %v1144, 1
        %v1147 = vor.u32 %v1142, %v1146
        %v1149 = vshll.u32 %v662, 16
        %v1151 = vrot.slane %v1149, 1
        %v1152 = vsel %vm495, %v1147, %v1151
        %v1154 = vshrl.u32 %v820, 16
        %v1156 = vshll.u32 %v820, 16
        %v1158 = vrot.slane %v1156, 1
        %v1159 = vor.u32 %v1154, %v1158
        %v1161 = vshll.u32 %v819, 16
        %v1163 = vrot.slane %v1161, 1
        %v1164 = vsel %vm495, %v1159, %v1163
        %v1166 = vshrl.u32 %v675, 16
        %v1168 = vshll.u32 %v675, 16
        %v1170 = vrot.slane %v1168, 1
        %v1171 = vor.u32 %v1166, %v1170
        %v1173 = vshll.u32 %v676, 16
        %v1175 = vrot.slane %v1173, 1
        %v1176 = vsel %vm495, %v1171, %v1175
        %v1178 = vshrl.u32 %v823, 16
        %v1180 = vshll.u32 %v823, 16
        %v1182 = vrot.slane %v1180, 1
        %v1183 = vor.u32 %v1178, %v1182
        %v1185 = vshll.u32 %v822, 16
        %v1187 = vrot.slane %v1185, 1
        %v1188 = vsel %vm495, %v1183, %v1187
        %v1190 = vshrl.u32 %v689, 16
        %v1192 = vshll.u32 %v689, 16
        %v1194 = vrot.slane %v1192, 1
        %v1195 = vor.u32 %v1190, %v1194
        %v1197 = vshll.u32 %v690, 16
        %v1199 = vrot.slane %v1197, 1
        %v1200 = vsel %vm495, %v1195, %v1199
        %v1202 = vshrl.u32 %v826, 16
        %v1204 = vshll.u32 %v826, 16
        %v1206 = vrot.slane %v1204, 1
        %v1207 = vor.u32 %v1202, %v1206
        %v1209 = vshll.u32 %v825, 16
        %v1211 = vrot.slane %v1209, 1
        %v1212 = vsel %vm495, %v1207, %v1211
        %v1214 = vshrl.u32 %v703, 16
        %v1216 = vshll.u32 %v703, 16
        %v1218 = vrot.slane %v1216, 1
        %v1219 = vor.u32 %v1214, %v1218
        %v1221 = vshll.u32 %v704, 16
        %v1223 = vrot.slane %v1221, 1
        %v1224 = vsel %vm495, %v1219, %v1223
        %v1226 = vshrl.u32 %v829, 16
        %v1228 = vshll.u32 %v829, 16
        %v1230 = vrot.slane %v1228, 1
        %v1231 = vor.u32 %v1226, %v1230
        %v1233 = vshll.u32 %v828, 16
        %v1235 = vrot.slane %v1233, 1
        %v1236 = vsel %vm495, %v1231, %v1235
        %v1238 = vshrl.u32 %v717, 16
        %v1240 = vshll.u32 %v717, 16
        %v1242 = vrot.slane %v1240, 1
        %v1243 = vor.u32 %v1238, %v1242
        %v1245 = vshll.u32 %v718, 16
        %v1247 = vrot.slane %v1245, 1
        %v1248 = vsel %vm495, %v1243, %v1247
        %v1250 = vshrl.u32 %v832, 16
        %v1252 = vshll.u32 %v832, 16
        %v1254 = vrot.slane %v1252, 1
        %v1255 = vor.u32 %v1250, %v1254
        %v1257 = vshll.u32 %v831, 16
        %v1259 = vrot.slane %v1257, 1
        %v1260 = vsel %vm495, %v1255, %v1259
        %v1262 = vshrl.u32 %v731, 16
        %v1264 = vshll.u32 %v731, 16
        %v1266 = vrot.slane %v1264, 1
        %v1267 = vor.u32 %v1262, %v1266
        %v1269 = vshll.u32 %v732, 16
        %v1271 = vrot.slane %v1269, 1
        %v1272 = vsel %vm495, %v1267, %v1271
        %v1274 = vshrl.u32 %v835, 16
        %v1276 = vshll.u32 %v835, 16
        %v1278 = vrot.slane %v1276, 1
        %v1279 = vor.u32 %v1274, %v1278
        %v1281 = vshll.u32 %v834, 16
        %v1283 = vrot.slane %v1281, 1
        %v1284 = vsel %vm495, %v1279, %v1283
        %v1286 = vshrl.u32 %v745, 16
        %v1288 = vshll.u32 %v745, 16
        %v1290 = vrot.slane %v1288, 1
        %v1291 = vor.u32 %v1286, %v1290
        %v1293 = vshll.u32 %v746, 16
        %v1295 = vrot.slane %v1293, 1
        %v1296 = vsel %vm495, %v1291, %v1295
        %v1298 = vshrl.u32 %v838, 16
        %v1300 = vshll.u32 %v838, 16
        %v1302 = vrot.slane %v1300, 1
        %v1303 = vor.u32 %v1298, %v1302
        %v1305 = vshll.u32 %v837, 16
        %v1307 = vrot.slane %v1305, 1
        %v1308 = vsel %vm495, %v1303, %v1307
        %v1310 = vshrl.u32 %v850, 16
        %v1312 = vshll.u32 %v850, 16
        %v1314 = vrot.slane %v1312, 1
        %v1315 = vor.u32 %v1310, %v1314
        %v1317 = vshll.u32 %v851, 16
        %v1319 = vrot.slane %v1317, 1
        %v1320 = vsel %vm495, %v1315, %v1319
        %v1322 = vshrl.u32 %v857, 16
        %v1324 = vshll.u32 %v857, 16
        %v1326 = vrot.slane %v1324, 1
        %v1327 = vor.u32 %v1322, %v1326
        %v1329 = vshll.u32 %v856, 16
        %v1331 = vrot.slane %v1329, 1
        %v1332 = vsel %vm495, %v1327, %v1331
        %v1334 = vshrl.u32 %v869, 16
        %v1336 = vshll.u32 %v869, 16
        %v1338 = vrot.slane %v1336, 1
        %v1339 = vor.u32 %v1334, %v1338
        %v1341 = vshll.u32 %v870, 16
        %v1343 = vrot.slane %v1341, 1
        %v1344 = vsel %vm495, %v1339, %v1343
        %v1346 = vshrl.u32 %v876, 16
        %v1348 = vshll.u32 %v876, 16
        %v1350 = vrot.slane %v1348, 1
        %v1351 = vor.u32 %v1346, %v1350
        %v1353 = vshll.u32 %v875, 16
        %v1355 = vrot.slane %v1353, 1
        %v1356 = vsel %vm495, %v1351, %v1355
        %v1417 = vld [vmem:[#allocation5] sm:$0xf]
        %v1418 = vld [vmem:[#allocation5 + $0x4] sm:$0xf]
        %v1419 = vld [vmem:[#allocation5 + $0x8] sm:$0xf]
        %v1420 = vld [vmem:[#allocation5 + $0xc] sm:$0xf]
        %v1421 = vld [vmem:[#allocation5 + $0x10] sm:$0xf]
        %v1422 = vld [vmem:[#allocation5 + $0x14] sm:$0xf]
        %v1423 = vld [vmem:[#allocation5 + $0x18] sm:$0xf]
        %v1424 = vld [vmem:[#allocation5 + $0x1c] sm:$0xf]
        %v1425 = vld [vmem:[#allocation5 + $0x20] sm:$0xf]
        %v1426 = vld [vmem:[#allocation5 + $0x24] sm:$0xf]
        %v1427 = vld [vmem:[#allocation5 + $0x28] sm:$0xf]
        %v1428 = vld [vmem:[#allocation5 + $0x2c] sm:$0xf]
        %v1429 = vld [vmem:[#allocation5 + $0x30] sm:$0xf]
        %v1430 = vld [vmem:[#allocation5 + $0x34] sm:$0xf]
        %v1431 = vld [vmem:[#allocation5 + $0x38] sm:$0xf]
        %v1432 = vld [vmem:[#allocation5 + $0x3c] sm:$0xf]
        %v1433 = vld [vmem:[#allocation5 + $0x40] sm:$0xf]
        %v1434 = vld [vmem:[#allocation5 + $0x44] sm:$0xf]
        %v1435 = vld [vmem:[#allocation5 + $0x48] sm:$0xf]
        %v1436 = vld [vmem:[#allocation5 + $0x4c] sm:$0xf]
        %v1437 = vld [vmem:[#allocation5 + $0x50] sm:$0xf]
        %v1438 = vld [vmem:[#allocation5 + $0x54] sm:$0xf]
        %v1439 = vld [vmem:[#allocation5 + $0x58] sm:$0xf]
        %v1440 = vld [vmem:[#allocation5 + $0x5c] sm:$0xf]
        %v1441 = vld [vmem:[#allocation5 + $0x60] sm:$0xf]
        %v1442 = vld [vmem:[#allocation5 + $0x64] sm:$0xf]
        %v1443 = vld [vmem:[#allocation5 + $0x68] sm:$0xf]
        %v1444 = vld [vmem:[#allocation5 + $0x6c] sm:$0xf]
        %v1445 = vld [vmem:[#allocation5 + $0x70] sm:$0xf]
        %v1446 = vld [vmem:[#allocation5 + $0x74] sm:$0xf]
        %v1447 = vld [vmem:[#allocation5 + $0x78] sm:$0xf]
        %v1448 = vld [vmem:[#allocation5 + $0x7c] sm:$0xf]
        %v1449 = vld [vmem:[#allocation5 + $0x80] sm:$0xf]
        %v1450 = vld [vmem:[#allocation5 + $0x84] sm:$0xf]
        %v1451 = vld [vmem:[#allocation5 + $0x88] sm:$0xf]
        %v1452 = vld [vmem:[#allocation5 + $0x8c] sm:$0xf]
        %v1453 = vld [vmem:[#allocation5 + $0x90] sm:$0xf]
        %v1454 = vld [vmem:[#allocation5 + $0x94] sm:$0xf]
        %v1455 = vld [vmem:[#allocation5 + $0x98] sm:$0xf]
        %v1456 = vld [vmem:[#allocation5 + $0x9c] sm:$0xf]
        %v1457 = vld [vmem:[#allocation5 + $0xa0] sm:$0xf]
        %v1458 = vld [vmem:[#allocation5 + $0xa4] sm:$0xf]
        %v1459 = vld [vmem:[#allocation5 + $0xa8] sm:$0xf]
        %v1460 = vld [vmem:[#allocation5 + $0xac] sm:$0xf]
        %v1461 = vld [vmem:[#allocation5 + $0xb0] sm:$0xf]
        %v1462 = vld [vmem:[#allocation5 + $0xb4] sm:$0xf]
        %v1463 = vld [vmem:[#allocation5 + $0xb8] sm:$0xf]
        %v1464 = vld [vmem:[#allocation5 + $0xbc] sm:$0xf]
        %v1465 = vld [vmem:[#allocation5 + $0xc0] sm:$0xf]
        %v1466 = vld [vmem:[#allocation5 + $0xc4] sm:$0xf]
        %v1467 = vld [vmem:[#allocation5 + $0xc8] sm:$0xf]
        %v1468 = vld [vmem:[#allocation5 + $0xcc] sm:$0xf]
        %v1469 = vld [vmem:[#allocation5 + $0xd0] sm:$0xf]
        %v1470 = vld [vmem:[#allocation5 + $0xd4] sm:$0xf]
        %v1471 = vld [vmem:[#allocation5 + $0xd8] sm:$0xf]
        %v1472 = vld [vmem:[#allocation5 + $0xdc] sm:$0xf]
        %v1473 = vld [vmem:[#allocation5 + $0xe0] sm:$0xf]
        %v1474 = vld [vmem:[#allocation5 + $0xe4] sm:$0xf]
        %v1475 = vld [vmem:[#allocation5 + $0xe8] sm:$0xf]
        %v1476 = vld [vmem:[#allocation5 + $0xec] sm:$0xf]
        %v1477 = vld [vmem:[#allocation5 + $0xf0] sm:$0xf]
        %v1478 = vld [vmem:[#allocation5 + $0xf4] sm:$0xf]
        %v1479 = vld [vmem:[#allocation5 + $0xf8] sm:$0xf]
        %v1480 = vld [vmem:[#allocation5 + $0xfc] sm:$0xf]
        %v1481 = vld [vmem:[#allocation5 + $0x100] sm:$0xf]
        %v1482 = vld [vmem:[#allocation5 + $0x104] sm:$0xf]
        %v1483 = vld [vmem:[#allocation5 + $0x108] sm:$0xf]
        %v1484 = vld [vmem:[#allocation5 + $0x10c] sm:$0xf]
        %v1485 = vld [vmem:[#allocation5 + $0x110] sm:$0xf]
        %v1486 = vld [vmem:[#allocation5 + $0x114] sm:$0xf]
        %v1487 = vld [vmem:[#allocation5 + $0x118] sm:$0xf]
        %v1488 = vld [vmem:[#allocation5 + $0x11c] sm:$0xf]
        %v1489 = vld [vmem:[#allocation5 + $0x120] sm:$0xf]
        %v1490 = vld [vmem:[#allocation5 + $0x124] sm:$0xf]
        %v1491 = vld [vmem:[#allocation5 + $0x128] sm:$0xf]
        %v1492 = vld [vmem:[#allocation5 + $0x12c] sm:$0xf]
        %v1493 = vld [vmem:[#allocation5 + $0x130] sm:$0xf]
        %v1494 = vld [vmem:[#allocation5 + $0x134] sm:$0xf]
        %v1495 = vld [vmem:[#allocation5 + $0x138] sm:$0xf]
        %v1496 = vld [vmem:[#allocation5 + $0x13c] sm:$0xf]
        %v1497 = vld [vmem:[#allocation5 + $0x140] sm:$0xf]
        %v1498 = vld [vmem:[#allocation5 + $0x144] sm:$0xf]
        %v1499 = vld [vmem:[#allocation5 + $0x148] sm:$0xf]
        %v1500 = vld [vmem:[#allocation5 + $0x14c] sm:$0xf]
        %v1501 = vld [vmem:[#allocation5 + $0x150] sm:$0xf]
        %v1502 = vld [vmem:[#allocation5 + $0x154] sm:$0xf]
        %v1503 = vld [vmem:[#allocation5 + $0x158] sm:$0xf]
        %v1504 = vld [vmem:[#allocation5 + $0x15c] sm:$0xf]
        %v1505 = vld [vmem:[#allocation5 + $0x160] sm:$0xf]
        %v1506 = vld [vmem:[#allocation5 + $0x164] sm:$0xf]
        %v1507 = vld [vmem:[#allocation5 + $0x168] sm:$0xf]
        %v1508 = vld [vmem:[#allocation5 + $0x16c] sm:$0xf]
        %v1509 = vld [vmem:[#allocation5 + $0x170] sm:$0xf]
        %v1510 = vld [vmem:[#allocation5 + $0x174] sm:$0xf]
        %v1511 = vld [vmem:[#allocation5 + $0x178] sm:$0xf]
        %v1512 = vld [vmem:[#allocation5 + $0x17c] sm:$0xf]
        %v1513 = vld [vmem:[#allocation5 + $0x180] sm:$0xf]
        %v1514 = vld [vmem:[#allocation5 + $0x184] sm:$0xf]
        %v1515 = vld [vmem:[#allocation5 + $0x188] sm:$0xf]
        %v1516 = vld [vmem:[#allocation5 + $0x18c] sm:$0xf]
        %v1517 = vld [vmem:[#allocation5 + $0x190] sm:$0xf]
        %v1518 = vld [vmem:[#allocation5 + $0x194] sm:$0xf]
        %v1519 = vld [vmem:[#allocation5 + $0x198] sm:$0xf]
        %v1520 = vld [vmem:[#allocation5 + $0x19c] sm:$0xf]
        %v1521 = vld [vmem:[#allocation5 + $0x1a0] sm:$0xf]
        %v1522 = vld [vmem:[#allocation5 + $0x1a4] sm:$0xf]
        %v1523 = vld [vmem:[#allocation5 + $0x1a8] sm:$0xf]
        %v1524 = vld [vmem:[#allocation5 + $0x1ac] sm:$0xf]
        %v1525 = vld [vmem:[#allocation5 + $0x1b0] sm:$0xf]
        %v1526 = vld [vmem:[#allocation5 + $0x1b4] sm:$0xf]
        %v1527 = vld [vmem:[#allocation5 + $0x1b8] sm:$0xf]
        %v1528 = vld [vmem:[#allocation5 + $0x1bc] sm:$0xf]
        %v1529 = vld [vmem:[#allocation5 + $0x1c0] sm:$0xf]
        %v1530 = vld [vmem:[#allocation5 + $0x1c4] sm:$0xf]
        %v1531 = vld [vmem:[#allocation5 + $0x1c8] sm:$0xf]
        %v1532 = vld [vmem:[#allocation5 + $0x1cc] sm:$0xf]
        %v1533 = vld [vmem:[#allocation5 + $0x1d0] sm:$0xf]
        %v1534 = vld [vmem:[#allocation5 + $0x1d4] sm:$0xf]
        %v1535 = vld [vmem:[#allocation5 + $0x1d8] sm:$0xf]
        %v1536 = vld [vmem:[#allocation5 + $0x1dc] sm:$0xf]
        %v1537 = vld [vmem:[#allocation5 + $0x1e0] sm:$0xf]
        %v1538 = vld [vmem:[#allocation5 + $0x1e4] sm:$0xf]
        %v1539 = vld [vmem:[#allocation5 + $0x1e8] sm:$0xf]
        %v1540 = vld [vmem:[#allocation5 + $0x1ec] sm:$0xf]
        %v1541 = vld [vmem:[#allocation5 + $0x1f0] sm:$0xf]
        %v1542 = vld [vmem:[#allocation5 + $0x1f4] sm:$0xf]
        %v1543 = vld [vmem:[#allocation5 + $0x1f8] sm:$0xf]
        %v1544 = vld [vmem:[#allocation5 + $0x1fc] sm:$0xf]
        %v1545 = vld [vmem:[#allocation5 + $0x200] sm:$0xf]
        %v1546 = vld [vmem:[#allocation5 + $0x204] sm:$0xf]
        %v1547 = vld [vmem:[#allocation5 + $0x208] sm:$0xf]
        %v1548 = vld [vmem:[#allocation5 + $0x20c] sm:$0xf]
        %v1549 = vld [vmem:[#allocation5 + $0x210] sm:$0xf]
        %v1550 = vld [vmem:[#allocation5 + $0x214] sm:$0xf]
        %v1551 = vld [vmem:[#allocation5 + $0x218] sm:$0xf]
        %v1552 = vld [vmem:[#allocation5 + $0x21c] sm:$0xf]
        %v1553 = vld [vmem:[#allocation5 + $0x220] sm:$0xf]
        %v1554 = vld [vmem:[#allocation5 + $0x224] sm:$0xf]
        %v1555 = vld [vmem:[#allocation5 + $0x228] sm:$0xf]
        %v1556 = vld [vmem:[#allocation5 + $0x22c] sm:$0xf]
        %v1557 = vld [vmem:[#allocation5 + $0x230] sm:$0xf]
        %v1558 = vld [vmem:[#allocation5 + $0x234] sm:$0xf]
        %v1559 = vld [vmem:[#allocation5 + $0x238] sm:$0xf]
        %v1560 = vld [vmem:[#allocation5 + $0x23c] sm:$0xf]
        %v1705 = vunpack.c.l.b16 %v1417
        %v1706 = vunpack.c.l.b16 %v1418
        %v1707 = vunpack.c.l.b16 %v1419
        %v1708 = vunpack.c.l.b16 %v1420
        %v1709 = vunpack.c.l.b16 %v1421
        %v1710 = vunpack.c.l.b16 %v1422
        %v1711 = vunpack.c.l.b16 %v1423
        %v1712 = vunpack.c.l.b16 %v1424
        %v1713 = vunpack.c.l.b16 %v1425
        %v1714 = vunpack.c.l.b16 %v1426
        %v1715 = vunpack.c.l.b16 %v1427
        %v1716 = vunpack.c.l.b16 %v1428
        %v1717 = vunpack.c.l.b16 %v1429
        %v1718 = vunpack.c.l.b16 %v1430
        %v1719 = vunpack.c.l.b16 %v1431
        %v1720 = vunpack.c.l.b16 %v1432
        %v1721 = vunpack.c.l.b16 %v1433
        %v1722 = vunpack.c.l.b16 %v1434
        %v1723 = vunpack.c.l.b16 %v1435
        %v1724 = vunpack.c.l.b16 %v1436
        %v1725 = vunpack.c.l.b16 %v1437
        %v1726 = vunpack.c.l.b16 %v1438
        %v1727 = vunpack.c.l.b16 %v1439
        %v1728 = vunpack.c.l.b16 %v1440
        %v1729 = vunpack.c.l.b16 %v1441
        %v1730 = vunpack.c.l.b16 %v1442
        %v1731 = vunpack.c.l.b16 %v1443
        %v1732 = vunpack.c.l.b16 %v1444
        %v1733 = vunpack.c.l.b16 %v1445
        %v1734 = vunpack.c.l.b16 %v1446
        %v1735 = vunpack.c.l.b16 %v1447
        %v1736 = vunpack.c.l.b16 %v1448
        %v1737 = vunpack.c.l.b16 %v1449
        %v1738 = vunpack.c.l.b16 %v1450
        %v1739 = vunpack.c.l.b16 %v1451
        %v1740 = vunpack.c.l.b16 %v1452
        %v1741 = vunpack.c.l.b16 %v1453
        %v1742 = vunpack.c.l.b16 %v1454
        %v1743 = vunpack.c.l.b16 %v1455
        %v1744 = vunpack.c.l.b16 %v1456
        %v1745 = vunpack.c.l.b16 %v1457
        %v1746 = vunpack.c.l.b16 %v1458
        %v1747 = vunpack.c.l.b16 %v1459
        %v1748 = vunpack.c.l.b16 %v1460
        %v1749 = vunpack.c.l.b16 %v1461
        %v1750 = vunpack.c.l.b16 %v1462
        %v1751 = vunpack.c.l.b16 %v1463
        %v1752 = vunpack.c.l.b16 %v1464
        %v1753 = vunpack.c.l.b16 %v1465
        %v1754 = vunpack.c.l.b16 %v1466
        %v1755 = vunpack.c.l.b16 %v1467
        %v1756 = vunpack.c.l.b16 %v1468
        %v1757 = vunpack.c.l.b16 %v1469
        %v1758 = vunpack.c.l.b16 %v1470
        %v1759 = vunpack.c.l.b16 %v1471
        %v1760 = vunpack.c.l.b16 %v1472
        %v1761 = vunpack.c.l.b16 %v1473
        %v1762 = vunpack.c.l.b16 %v1474
        %v1763 = vunpack.c.l.b16 %v1475
        %v1764 = vunpack.c.l.b16 %v1476
        %v1765 = vunpack.c.l.b16 %v1477
        %v1766 = vunpack.c.l.b16 %v1478
        %v1767 = vunpack.c.l.b16 %v1479
        %v1768 = vunpack.c.l.b16 %v1480
        %v1769 = vunpack.c.l.b16 %v1481
        %v1770 = vunpack.c.l.b16 %v1482
        %v1771 = vunpack.c.l.b16 %v1483
        %v1772 = vunpack.c.l.b16 %v1484
        %v1773 = vunpack.c.l.b16 %v1485
        %v1774 = vunpack.c.l.b16 %v1486
        %v1775 = vunpack.c.l.b16 %v1487
        %v1776 = vunpack.c.l.b16 %v1488
        %v1777 = vunpack.c.l.b16 %v1489
        %v1778 = vunpack.c.l.b16 %v1490
        %v1779 = vunpack.c.l.b16 %v1491
        %v1780 = vunpack.c.l.b16 %v1492
        %v1781 = vunpack.c.l.b16 %v1493
        %v1782 = vunpack.c.l.b16 %v1494
        %v1783 = vunpack.c.l.b16 %v1495
        %v1784 = vunpack.c.l.b16 %v1496
        %v1785 = vunpack.c.l.b16 %v1497
        %v1786 = vunpack.c.l.b16 %v1498
        %v1787 = vunpack.c.l.b16 %v1499
        %v1788 = vunpack.c.l.b16 %v1500
        %v1789 = vunpack.c.l.b16 %v1501
        %v1790 = vunpack.c.l.b16 %v1502
        %v1791 = vunpack.c.l.b16 %v1503
        %v1792 = vunpack.c.l.b16 %v1504
        %v1793 = vunpack.c.l.b16 %v1505
        %v1794 = vunpack.c.l.b16 %v1506
        %v1795 = vunpack.c.l.b16 %v1507
        %v1796 = vunpack.c.l.b16 %v1508
        %v1797 = vunpack.c.l.b16 %v1509
        %v1798 = vunpack.c.l.b16 %v1510
        %v1799 = vunpack.c.l.b16 %v1511
        %v1800 = vunpack.c.l.b16 %v1512
        %v1801 = vunpack.c.l.b16 %v1513
        %v1802 = vunpack.c.l.b16 %v1514
        %v1803 = vunpack.c.l.b16 %v1515
        %v1804 = vunpack.c.l.b16 %v1516
        %v1805 = vunpack.c.l.b16 %v1517
        %v1806 = vunpack.c.l.b16 %v1518
        %v1807 = vunpack.c.l.b16 %v1519
        %v1808 = vunpack.c.l.b16 %v1520
        %v1809 = vunpack.c.l.b16 %v1521
        %v1810 = vunpack.c.l.b16 %v1522
        %v1811 = vunpack.c.l.b16 %v1523
        %v1812 = vunpack.c.l.b16 %v1524
        %v1813 = vunpack.c.l.b16 %v1525
        %v1814 = vunpack.c.l.b16 %v1526
        %v1815 = vunpack.c.l.b16 %v1527
        %v1816 = vunpack.c.l.b16 %v1528
        %v1817 = vunpack.c.l.b16 %v1529
        %v1818 = vunpack.c.l.b16 %v1530
        %v1819 = vunpack.c.l.b16 %v1531
        %v1820 = vunpack.c.l.b16 %v1532
        %v1821 = vunpack.c.l.b16 %v1533
        %v1822 = vunpack.c.l.b16 %v1534
        %v1823 = vunpack.c.l.b16 %v1535
        %v1824 = vunpack.c.l.b16 %v1536
        %v1825 = vunpack.c.l.b16 %v1537
        %v1826 = vunpack.c.l.b16 %v1538
        %v1827 = vunpack.c.l.b16 %v1539
        %v1828 = vunpack.c.l.b16 %v1540
        %v1829 = vunpack.c.l.b16 %v1541
        %v1830 = vunpack.c.l.b16 %v1542
        %v1831 = vunpack.c.l.b16 %v1543
        %v1832 = vunpack.c.l.b16 %v1544
        %v1833 = vunpack.c.l.b16 %v1545
        %v1834 = vunpack.c.l.b16 %v1546
        %v1835 = vunpack.c.l.b16 %v1547
        %v1836 = vunpack.c.l.b16 %v1548
        %v1837 = vunpack.c.l.b16 %v1549
        %v1838 = vunpack.c.l.b16 %v1550
        %v1839 = vunpack.c.l.b16 %v1551
        %v1840 = vunpack.c.l.b16 %v1552
        %v1841 = vunpack.c.l.b16 %v1553
        %v1842 = vunpack.c.l.b16 %v1554
        %v1843 = vunpack.c.l.b16 %v1555
        %v1844 = vunpack.c.l.b16 %v1556
        %v1845 = vunpack.c.l.b16 %v1557
        %v1846 = vunpack.c.l.b16 %v1558
        %v1847 = vunpack.c.l.b16 %v1559
        %v1848 = vunpack.c.l.b16 %v1560
        %v1849 = vpack.c.b16 %v1706, %v1705
        %v1850 = vpack.c.b16 %v1708, %v1707
        %v1851 = vpack.c.b16 %v1710, %v1709
        %v1852 = vpack.c.b16 %v1712, %v1711
        %v1853 = vpack.c.b16 %v1714, %v1713
        %v1854 = vpack.c.b16 %v1716, %v1715
        %v1855 = vpack.c.b16 %v1718, %v1717
        %v1856 = vpack.c.b16 %v1720, %v1719
        %v1857 = vpack.c.b16 %v1722, %v1721
        %v1858 = vpack.c.b16 %v1724, %v1723
        %v1859 = vpack.c.b16 %v1726, %v1725
        %v1860 = vpack.c.b16 %v1728, %v1727
        %v1861 = vpack.c.b16 %v1730, %v1729
        %v1862 = vpack.c.b16 %v1732, %v1731
        %v1863 = vpack.c.b16 %v1734, %v1733
        %v1864 = vpack.c.b16 %v1736, %v1735
        %v1865 = vpack.c.b16 %v1738, %v1737
        %v1866 = vpack.c.b16 %v1740, %v1739
        %v1867 = vpack.c.b16 %v1742, %v1741
        %v1868 = vpack.c.b16 %v1744, %v1743
        %v1869 = vpack.c.b16 %v1746, %v1745
        %v1870 = vpack.c.b16 %v1748, %v1747
        %v1871 = vpack.c.b16 %v1750, %v1749
        %v1872 = vpack.c.b16 %v1752, %v1751
        %v1873 = vpack.c.b16 %v1754, %v1753
        %v1874 = vpack.c.b16 %v1756, %v1755
        %v1875 = vpack.c.b16 %v1758, %v1757
        %v1876 = vpack.c.b16 %v1760, %v1759
        %v1877 = vpack.c.b16 %v1762, %v1761
        %v1878 = vpack.c.b16 %v1764, %v1763
        %v1879 = vpack.c.b16 %v1766, %v1765
        %v1880 = vpack.c.b16 %v1768, %v1767
        %v1881 = vpack.c.b16 %v1770, %v1769
        %v1882 = vpack.c.b16 %v1772, %v1771
        %v1883 = vpack.c.b16 %v1774, %v1773
        %v1884 = vpack.c.b16 %v1776, %v1775
        %v1885 = vpack.c.b16 %v1778, %v1777
        %v1886 = vpack.c.b16 %v1780, %v1779
        %v1887 = vpack.c.b16 %v1782, %v1781
        %v1888 = vpack.c.b16 %v1784, %v1783
        %v1889 = vpack.c.b16 %v1786, %v1785
        %v1890 = vpack.c.b16 %v1788, %v1787
        %v1891 = vpack.c.b16 %v1790, %v1789
        %v1892 = vpack.c.b16 %v1792, %v1791
        %v1893 = vpack.c.b16 %v1794, %v1793
        %v1894 = vpack.c.b16 %v1796, %v1795
        %v1895 = vpack.c.b16 %v1798, %v1797
        %v1896 = vpack.c.b16 %v1800, %v1799
        %v1897 = vpack.c.b16 %v1802, %v1801
        %v1898 = vpack.c.b16 %v1804, %v1803
        %v1899 = vpack.c.b16 %v1806, %v1805
        %v1900 = vpack.c.b16 %v1808, %v1807
        %v1901 = vpack.c.b16 %v1810, %v1809
        %v1902 = vpack.c.b16 %v1812, %v1811
        %v1903 = vpack.c.b16 %v1814, %v1813
        %v1904 = vpack.c.b16 %v1816, %v1815
        %v1905 = vpack.c.b16 %v1818, %v1817
        %v1906 = vpack.c.b16 %v1820, %v1819
        %v1907 = vpack.c.b16 %v1822, %v1821
        %v1908 = vpack.c.b16 %v1824, %v1823
        %v1909 = vpack.c.b16 %v1826, %v1825
        %v1910 = vpack.c.b16 %v1828, %v1827
        %v1911 = vpack.c.b16 %v1830, %v1829
        %v1912 = vpack.c.b16 %v1832, %v1831
        %v1913 = vpack.c.b16 %v1834, %v1833
        %v1914 = vpack.c.b16 %v1836, %v1835
        %v1915 = vpack.c.b16 %v1838, %v1837
        %v1916 = vpack.c.b16 %v1840, %v1839
        %v1917 = vpack.c.b16 %v1842, %v1841
        %v1918 = vpack.c.b16 %v1844, %v1843
        %v1919 = vpack.c.b16 %v1846, %v1845
        %v1920 = vpack.c.b16 %v1848, %v1847
        %1993 = vmatprep.subr.bf16.mxu0 0
        %1994 = vmatpush1.bf16.msra.mxu0 %v1849
        %1995 = vmatprep.subr.bf16.mxu0 0
        %1996 = vmatpush1.bf16.msra.mxu0 %v1850
        %1997 = vmatprep.subr.bf16.mxu0 0
        %1998 = vmatpush1.bf16.msra.mxu0 %v1851
        %1999 = vmatprep.subr.bf16.mxu0 0
        %2000 = vmatpush1.bf16.msra.mxu0 %v1852
        %2001 = vmatprep.subr.bf16.mxu0 0
        %2002 = vmatpush1.bf16.msra.mxu0 %v1853
        %2003 = vmatprep.subr.bf16.mxu0 0
        %2004 = vmatpush1.bf16.msra.mxu0 %v1854
        %2005 = vmatprep.subr.bf16.mxu0 0
        %2006 = vmatpush1.bf16.msra.mxu0 %v1855
        %2007 = vmatprep.subr.bf16.mxu0 0
        %2008 = vmatpush1.bf16.msra.mxu0 %v1856
        %2009 = vmatprep.subr.bf16.mxu0 0
        %2010 = vmatpush1.bf16.msra.mxu0 %v1857
        %2011 = vmatprep.subr.bf16.mxu0 0
        %2012 = vmatpush1.bf16.msra.mxu0 %v1858
        %2013 = vmatprep.subr.bf16.mxu0 0
        %2014 = vmatpush1.bf16.msra.mxu0 %v1859
        %2015 = vmatprep.subr.bf16.mxu0 0
        %2016 = vmatpush1.bf16.msra.mxu0 %v1860
        %2017 = vmatprep.subr.bf16.mxu0 0
        %2018 = vmatpush1.bf16.msra.mxu0 %v1861
        %2019 = vmatprep.subr.bf16.mxu0 0
        %2020 = vmatpush1.bf16.msra.mxu0 %v1862
        %2021 = vmatprep.subr.bf16.mxu0 0
        %2022 = vmatpush1.bf16.msra.mxu0 %v1863
        %2023 = vmatprep.subr.bf16.mxu0 0
        %2024 = vmatpush1.bf16.msra.mxu0 %v1864
        %2025 = vmatprep.mubr.bf16.mxu0 %v888
        %2026 = vmatmul.mubr.bf16.gmra.mrb[0].mxu0 %v507
        %v2027 = vpop.f32.mrb[0].mxu0
        %v2028 = vadd.f32 0.0, %v2027
        %v2029 = vpop.f32.mrb[0].mxu0
        %v2030 = vpop.f32.mrb[0].mxu0
        %v2031 = vadd.f32 0.0, %v2030
        %v2032 = vpop.f32.mrb[0].mxu0
        %2033 = vmatprep.mubr.bf16.mxu0 %v912
        %2034 = vmatmul.mubr.bf16.gmra.mrb[0].mxu0 %v521
        %v2035 = vpop.f32.mrb[0].mxu0
        %v2036 = vadd.f32 0.0, %v2035
        %v2037 = vpop.f32.mrb[0].mxu0
        %v2038 = vpop.f32.mrb[0].mxu0
        %v2039 = vadd.f32 0.0, %v2038
        %v2040 = vpop.f32.mrb[0].mxu0
        %2041 = vmatprep.mubr.bf16.mxu0 %v936
        %2042 = vmatmul.mubr.bf16.gmra.mrb[0].mxu0 %v535
        %v2043 = vpop.f32.mrb[0].mxu0
        %v2044 = vadd.f32 0.0, %v2043
        %v2045 = vpop.f32.mrb[0].mxu0
        %v2046 = vpop.f32.mrb[0].mxu0
        %v2047 = vadd.f32 0.0, %v2046
        %v2048 = vpop.f32.mrb[0].mxu0
        %2049 = vmatprep.mubr.bf16.mxu0 %v960
        %2050 = vmatmul.mubr.bf16.gmra.mrb[0].mxu0 %v549
        %v2051 = vpop.f32.mrb[0].mxu0
        %v2052 = vadd.f32 0.0, %v2051
        %v2053 = vpop.f32.mrb[0].mxu0
        %v2054 = vpop.f32.mrb[0].mxu0
        %v2055 = vadd.f32 0.0, %v2054
        %v2056 = vpop.f32.mrb[0].mxu0
        %2057 = vmatprep.mubr.bf16.mxu0 %v984
        %2058 = vmatmul.mubr.bf16.gmra.mrb[0].mxu0 %v563
        %v2059 = vpop.f32.mrb[0].mxu0
        %v2060 = vadd.f32 0.0, %v2059
        %v2061 = vpop.f32.mrb[0].mxu0
        %v2062 = vpop.f32.mrb[0].mxu0
        %v2063 = vadd.f32 0.0, %v2062
        %v2064 = vpop.f32.mrb[0].mxu0
        %2065 = vmatprep.mubr.bf16.mxu0 %v1008
        %2066 = vmatmul.mubr.bf16.gmra.mrb[0].mxu0 %v577
        %v2067 = vpop.f32.mrb[0].mxu0
        %v2068 = vadd.f32 0.0, %v2067
        %v2069 = vpop.f32.mrb[0].mxu0
        %v2070 = vpop.f32.mrb[0].mxu0
        %v2071 = vadd.f32 0.0, %v2070
        %v2072 = vpop.f32.mrb[0].mxu0
        %2073 = vmatprep.mubr.bf16.mxu0 %v1032
        %2074 = vmatmul.mubr.bf16.gmra.mrb[0].mxu0 %v591
        %v2075 = vpop.f32.mrb[0].mxu0
        %v2076 = vadd.f32 0.0, %v2075
        %v2077 = vpop.f32.mrb[0].mxu0
        %v2078 = vpop.f32.mrb[0].mxu0
        %v2079 = vadd.f32 0.0, %v2078
        %v2080 = vpop.f32.mrb[0].mxu0
        %2081 = vmatprep.mubr.bf16.mxu0 %v1056
        %2082 = vmatmul.mubr.bf16.gmra.mrb[0].mxu0 %v605
        %v2083 = vpop.f32.mrb[0].mxu0
        %v2084 = vadd.f32 0.0, %v2083
        %v2085 = vpop.f32.mrb[0].mxu0
        %v2086 = vpop.f32.mrb[0].mxu0
        %v2087 = vadd.f32 0.0, %v2086
        %v2088 = vpop.f32.mrb[0].mxu0
        %2089 = vmatprep.mubr.bf16.mxu0 %v1080
        %2090 = vmatmul.mubr.bf16.gmra.mrb[0].mxu0 %v619
        %v2091 = vpop.f32.mrb[0].mxu0
        %v2092 = vadd.f32 0.0, %v2091
        %v2093 = vpop.f32.mrb[0].mxu0
        %v2094 = vpop.f32.mrb[0].mxu0
        %v2095 = vadd.f32 0.0, %v2094
        %v2096 = vpop.f32.mrb[0].mxu0
        %2097 = vmatprep.mubr.bf16.mxu0 %v1104
        %2098 = vmatmul.mubr.bf16.gmra.mrb[0].mxu0 %v633
        %v2099 = vpop.f32.mrb[0].mxu0
        %v2100 = vadd.f32 0.0, %v2099
        %v2101 = vpop.f32.mrb[0].mxu0
        %v2102 = vpop.f32.mrb[0].mxu0
        %v2103 = vadd.f32 0.0, %v2102
        %v2104 = vpop.f32.mrb[0].mxu0
        %2105 = vmatprep.mubr.bf16.mxu0 %v1128
        %2106 = vmatmul.mubr.bf16.gmra.mrb[0].mxu0 %v647
        %v2107 = vpop.f32.mrb[0].mxu0
        %v2108 = vadd.f32 0.0, %v2107
        %v2109 = vpop.f32.mrb[0].mxu0
        %v2110 = vpop.f32.mrb[0].mxu0
        %v2111 = vadd.f32 0.0, %v2110
        %v2112 = vpop.f32.mrb[0].mxu0
        %2113 = vmatprep.mubr.bf16.mxu0 %v1152
        %2114 = vmatmul.mubr.bf16.gmra.mrb[0].mxu0 %v661
        %v2115 = vpop.f32.mrb[0].mxu0
        %v2116 = vadd.f32 0.0, %v2115
        %v2117 = vpop.f32.mrb[0].mxu0
        %v2118 = vpop.f32.mrb[0].mxu0
        %v2119 = vadd.f32 0.0, %v2118
        %v2120 = vpop.f32.mrb[0].mxu0
        %2121 = vmatprep.mubr.bf16.mxu0 %v1176
        %2122 = vmatmul.mubr.bf16.gmra.mrb[0].mxu0 %v675
        %v2123 = vpop.f32.mrb[0].mxu0
        %v2124 = vadd.f32 0.0, %v2123
        %v2125 = vpop.f32.mrb[0].mxu0
        %v2126 = vpop.f32.mrb[0].mxu0
        %v2127 = vadd.f32 0.0, %v2126
        %v2128 = vpop.f32.mrb[0].mxu0
        %2129 = vmatprep.mubr.bf16.mxu0 %v1200
        %2130 = vmatmul.mubr.bf16.gmra.mrb[0].mxu0 %v689
        %v2131 = vpop.f32.mrb[0].mxu0
        %v2132 = vadd.f32 0.0, %v2131
        %v2133 = vpop.f32.mrb[0].mxu0
        %v2134 = vpop.f32.mrb[0].mxu0
        %v2135 = vadd.f32 0.0, %v2134
        %v2136 = vpop.f32.mrb[0].mxu0
        %2137 = vmatprep.mubr.bf16.mxu0 %v1224
        %2138 = vmatmul.mubr.bf16.gmra.mrb[0].mxu0 %v703
        %v2139 = vpop.f32.mrb[0].mxu0
        %v2140 = vadd.f32 0.0, %v2139
        %v2141 = vpop.f32.mrb[0].mxu0
        %v2142 = vpop.f32.mrb[0].mxu0
        %v2143 = vadd.f32 0.0, %v2142
        %v2144 = vpop.f32.mrb[0].mxu0
        %2145 = vmatprep.mubr.bf16.mxu0 %v1248
        %2146 = vmatmul.mubr.bf16.gmra.mrb[0].mxu0 %v717
        %v2147 = vpop.f32.mrb[0].mxu0
        %v2148 = vadd.f32 0.0, %v2147
        %v2149 = vpop.f32.mrb[0].mxu0
        %v2150 = vpop.f32.mrb[0].mxu0
        %v2151 = vadd.f32 0.0, %v2150
        %v2152 = vpop.f32.mrb[0].mxu0
        %2153 = vmatprep.mubr.bf16.mxu0 %v1272
        %2154 = vmatmul.mubr.bf16.gmra.mrb[0].mxu0 %v731
        %v2155 = vpop.f32.mrb[0].mxu0
        %v2156 = vadd.f32 0.0, %v2155
        %v2157 = vpop.f32.mrb[0].mxu0
        %v2158 = vpop.f32.mrb[0].mxu0
        %v2159 = vadd.f32 0.0, %v2158
        %v2160 = vpop.f32.mrb[0].mxu0
        %2161 = vmatprep.mubr.bf16.mxu0 %v1296
        %2162 = vmatmul.mubr.bf16.gmra.mrb[0].mxu0 %v745
        %v2163 = vpop.f32.mrb[0].mxu0
        %v2164 = vadd.f32 0.0, %v2163
        %v2165 = vpop.f32.mrb[0].mxu0
        %v2166 = vpop.f32.mrb[0].mxu0
        %v2167 = vadd.f32 0.0, %v2166
        %v2168 = vpop.f32.mrb[0].mxu0
        %2169 = vdwg.mxu0
        %2170 = vmatprep.subr.bf16.mxu0 0
        %2171 = vmatpush1.bf16.msra.mxu0 %v1865
        %2172 = vmatprep.subr.bf16.mxu0 0
        %2173 = vmatpush1.bf16.msra.mxu0 %v1866
        %2174 = vmatprep.subr.bf16.mxu0 0
        %2175 = vmatpush1.bf16.msra.mxu0 %v1867
        %2176 = vmatprep.subr.bf16.mxu0 0
        %2177 = vmatpush1.bf16.msra.mxu0 %v1868
        %2178 = vmatprep.subr.bf16.mxu0 0
        %2179 = vmatpush1.bf16.msra.mxu0 %v1869
        %2180 = vmatprep.subr.bf16.mxu0 0
        %2181 = vmatpush1.bf16.msra.mxu0 %v1870
        %2182 = vmatprep.subr.bf16.mxu0 0
        %2183 = vmatpush1.bf16.msra.mxu0 %v1871
        %2184 = vmatprep.subr.bf16.mxu0 0
        %2185 = vmatpush1.bf16.msra.mxu0 %v1872
        %2186 = vmatprep.subr.bf16.mxu0 0
        %2187 = vmatpush1.bf16.msra.mxu0 %v1873
        %2188 = vmatprep.subr.bf16.mxu0 0
        %2189 = vmatpush1.bf16.msra.mxu0 %v1874
        %2190 = vmatprep.subr.bf16.mxu0 0
        %2191 = vmatpush1.bf16.msra.mxu0 %v1875
        %2192 = vmatprep.subr.bf16.mxu0 0
        %2193 = vmatpush1.bf16.msra.mxu0 %v1876
        %2194 = vmatprep.subr.bf16.mxu0 0
        %2195 = vmatpush1.bf16.msra.mxu0 %v1877
        %2196 = vmatprep.subr.bf16.mxu0 0
        %2197 = vmatpush1.bf16.msra.mxu0 %v1878
        %2198 = vmatprep.subr.bf16.mxu0 0
        %2199 = vmatpush1.bf16.msra.mxu0 %v1879
        %2200 = vmatprep.subr.bf16.mxu0 0
        %2201 = vmatpush1.bf16.msra.mxu0 %v1880
        %2202 = vmatprep.mubr.bf16.mxu0 %v521
        %2203 = vmatmul.mubr.bf16.gmra.mrb[0].mxu0 %v900
        %v2204 = vpop.f32.mrb[0].mxu0
        %v2205 = vadd.f32 %v2028, %v2204
        %v2206 = vpop.f32.mrb[0].mxu0
        %v2207 = vpop.f32.mrb[0].mxu0
        %v2208 = vadd.f32 %v2031, %v2207
        %v2209 = vpop.f32.mrb[0].mxu0
        %2210 = vmatprep.mubr.bf16.mxu0 %v535
        %2211 = vmatmul.mubr.bf16.gmra.mrb[0].mxu0 %v924
        %v2212 = vpop.f32.mrb[0].mxu0
        %v2213 = vadd.f32 %v2036, %v2212
        %v2214 = vpop.f32.mrb[0].mxu0
        %v2215 = vpop.f32.mrb[0].mxu0
        %v2216 = vadd.f32 %v2039, %v2215
        %v2217 = vpop.f32.mrb[0].mxu0
        %2218 = vmatprep.mubr.bf16.mxu0 %v549
        %2219 = vmatmul.mubr.bf16.gmra.mrb[0].mxu0 %v948
        %v2220 = vpop.f32.mrb[0].mxu0
        %v2221 = vadd.f32 %v2044, %v2220
        %v2222 = vpop.f32.mrb[0].mxu0
        %v2223 = vpop.f32.mrb[0].mxu0
        %v2224 = vadd.f32 %v2047, %v2223
        %v2225 = vpop.f32.mrb[0].mxu0
        %2226 = vmatprep.mubr.bf16.mxu0 %v563
        %2227 = vmatmul.mubr.bf16.gmra.mrb[0].mxu0 %v972
        %v2228 = vpop.f32.mrb[0].mxu0
        %v2229 = vadd.f32 %v2052, %v2228
        %v2230 = vpop.f32.mrb[0].mxu0
        %v2231 = vpop.f32.mrb[0].mxu0
        %v2232 = vadd.f32 %v2055, %v2231
        %v2233 = vpop.f32.mrb[0].mxu0
        %2234 = vmatprep.mubr.bf16.mxu0 %v577
        %2235 = vmatmul.mubr.bf16.gmra.mrb[0].mxu0 %v996
        %v2236 = vpop.f32.mrb[0].mxu0
        %v2237 = vadd.f32 %v2060, %v2236
        %v2238 = vpop.f32.mrb[0].mxu0
        %v2239 = vpop.f32.mrb[0].mxu0
        %v2240 = vadd.f32 %v2063, %v2239
        %v2241 = vpop.f32.mrb[0].mxu0
        %2242 = vmatprep.mubr.bf16.mxu0 %v591
        %2243 = vmatmul.mubr.bf16.gmra.mrb[0].mxu0 %v1020
        %v2244 = vpop.f32.mrb[0].mxu0
        %v2245 = vadd.f32 %v2068, %v2244
        %v2246 = vpop.f32.mrb[0].mxu0
        %v2247 = vpop.f32.mrb[0].mxu0
        %v2248 = vadd.f32 %v2071, %v2247
        %v2249 = vpop.f32.mrb[0].mxu0
        %2250 = vmatprep.mubr.bf16.mxu0 %v605
        %2251 = vmatmul.mubr.bf16.gmra.mrb[0].mxu0 %v1044
        %v2252 = vpop.f32.mrb[0].mxu0
        %v2253 = vadd.f32 %v2076, %v2252
        %v2254 = vpop.f32.mrb[0].mxu0
        %v2255 = vpop.f32.mrb[0].mxu0
        %v2256 = vadd.f32 %v2079, %v2255
        %v2257 = vpop.f32.mrb[0].mxu0
        %2258 = vmatprep.mubr.bf16.mxu0 %v619
        %2259 = vmatmul.mubr.bf16.gmra.mrb[0].mxu0 %v1068
        %v2260 = vpop.f32.mrb[0].mxu0
        %v2261 = vadd.f32 %v2084, %v2260
        %v2262 = vpop.f32.mrb[0].mxu0
        %v2263 = vpop.f32.mrb[0].mxu0
        %v2264 = vadd.f32 %v2087, %v2263
        %v2265 = vpop.f32.mrb[0].mxu0
        %2266 = vmatprep.mubr.bf16.mxu0 %v633
        %2267 = vmatmul.mubr.bf16.gmra.mrb[0].mxu0 %v1092
        %v2268 = vpop.f32.mrb[0].mxu0
        %v2269 = vadd.f32 %v2092, %v2268
        %v2270 = vpop.f32.mrb[0].mxu0
        %v2271 = vpop.f32.mrb[0].mxu0
        %v2272 = vadd.f32 %v2095, %v2271
        %v2273 = vpop.f32.mrb[0].mxu0
        %2274 = vmatprep.mubr.bf16.mxu0 %v647
        %2275 = vmatmul.mubr.bf16.gmra.mrb[0].mxu0 %v1116
        %v2276 = vpop.f32.mrb[0].mxu0
        %v2277 = vadd.f32 %v2100, %v2276
        %v2278 = vpop.f32.mrb[0].mxu0
        %v2279 = vpop.f32.mrb[0].mxu0
        %v2280 = vadd.f32 %v2103, %v2279
        %v2281 = vpop.f32.mrb[0].mxu0
        %2282 = vmatprep.mubr.bf16.mxu0 %v661
        %2283 = vmatmul.mubr.bf16.gmra.mrb[0].mxu0 %v1140
        %v2284 = vpop.f32.mrb[0].mxu0
        %v2285 = vadd.f32 %v2108, %v2284
        %v2286 = vpop.f32.mrb[0].mxu0
        %v2287 = vpop.f32.mrb[0].mxu0
        %v2288 = vadd.f32 %v2111, %v2287
        %v2289 = vpop.f32.mrb[0].mxu0
        %2290 = vmatprep.mubr.bf16.mxu0 %v675
        %2291 = vmatmul.mubr.bf16.gmra.mrb[0].mxu0 %v1164
        %v2292 = vpop.f32.mrb[0].mxu0
        %v2293 = vadd.f32 %v2116, %v2292
        %v2294 = vpop.f32.mrb[0].mxu0
        %v2295 = vpop.f32.mrb[0].mxu0
        %v2296 = vadd.f32 %v2119, %v2295
        %v2297 = vpop.f32.mrb[0].mxu0
        %2298 = vmatprep.mubr.bf16.mxu0 %v689
        %2299 = vmatmul.mubr.bf16.gmra.mrb[0].mxu0 %v1188
        %v2300 = vpop.f32.mrb[0].mxu0
        %v2301 = vadd.f32 %v2124, %v2300
        %v2302 = vpop.f32.mrb[0].mxu0
        %v2303 = vpop.f32.mrb[0].mxu0
        %v2304 = vadd.f32 %v2127, %v2303
        %v2305 = vpop.f32.mrb[0].mxu0
        %2306 = vmatprep.mubr.bf16.mxu0 %v703
        %2307 = vmatmul.mubr.bf16.gmra.mrb[0].mxu0 %v1212
        %v2308 = vpop.f32.mrb[0].mxu0
        %v2309 = vadd.f32 %v2132, %v2308
        %v2310 = vpop.f32.mrb[0].mxu0
        %v2311 = vpop.f32.mrb[0].mxu0
        %v2312 = vadd.f32 %v2135, %v2311
        %v2313 = vpop.f32.mrb[0].mxu0
        %2314 = vmatprep.mubr.bf16.mxu0 %v717
        %2315 = vmatmul.mubr.bf16.gmra.mrb[0].mxu0 %v1236
        %v2316 = vpop.f32.mrb[0].mxu0
        %v2317 = vadd.f32 %v2140, %v2316
        %v2318 = vpop.f32.mrb[0].mxu0
        %v2319 = vpop.f32.mrb[0].mxu0
        %v2320 = vadd.f32 %v2143, %v2319
        %v2321 = vpop.f32.mrb[0].mxu0
        %2322 = vmatprep.mubr.bf16.mxu0 %v731
        %2323 = vmatmul.mubr.bf16.gmra.mrb[0].mxu0 %v1260
        %v2324 = vpop.f32.mrb[0].mxu0
        %v2325 = vadd.f32 %v2148, %v2324
        %v2326 = vpop.f32.mrb[0].mxu0
        %v2327 = vpop.f32.mrb[0].mxu0
        %v2328 = vadd.f32 %v2151, %v2327
        %v2329 = vpop.f32.mrb[0].mxu0
        %2330 = vmatprep.mubr.bf16.mxu0 %v745
        %2331 = vmatmul.mubr.bf16.gmra.mrb[0].mxu0 %v1284
        %v2332 = vpop.f32.mrb[0].mxu0
        %v2333 = vadd.f32 %v2156, %v2332
        %v2334 = vpop.f32.mrb[0].mxu0
        %v2335 = vpop.f32.mrb[0].mxu0
        %v2336 = vadd.f32 %v2159, %v2335
        %v2337 = vpop.f32.mrb[0].mxu0
        %2338 = vmatprep.mubr.bf16.mxu0 %v850
        %2339 = vmatmul.mubr.bf16.gmra.mrb[0].mxu0 %v1308
        %v2340 = vpop.f32.mrb[0].mxu0
        %v2341 = vadd.f32 %v2164, %v2340
        %v2342 = vpop.f32.mrb[0].mxu0
        %v2343 = vpop.f32.mrb[0].mxu0
        %v2344 = vadd.f32 %v2167, %v2343
        %v2345 = vpop.f32.mrb[0].mxu0
        %2346 = vdwg.mxu0
        %2347 = vmatprep.subr.bf16.mxu0 0
        %2348 = vmatpush1.bf16.msra.mxu0 %v1881
        %2349 = vmatprep.subr.bf16.mxu0 0
        %2350 = vmatpush1.bf16.msra.mxu0 %v1882
        %2351 = vmatprep.subr.bf16.mxu0 0
        %2352 = vmatpush1.bf16.msra.mxu0 %v1883
        %2353 = vmatprep.subr.bf16.mxu0 0
        %2354 = vmatpush1.bf16.msra.mxu0 %v1884
        %2355 = vmatprep.subr.bf16.mxu0 0
        %2356 = vmatpush1.bf16.msra.mxu0 %v1885
        %2357 = vmatprep.subr.bf16.mxu0 0
        %2358 = vmatpush1.bf16.msra.mxu0 %v1886
        %2359 = vmatprep.subr.bf16.mxu0 0
        %2360 = vmatpush1.bf16.msra.mxu0 %v1887
        %2361 = vmatprep.subr.bf16.mxu0 0
        %2362 = vmatpush1.bf16.msra.mxu0 %v1888
        %2363 = vmatprep.subr.bf16.mxu0 0
        %2364 = vmatpush1.bf16.msra.mxu0 %v1889
        %2365 = vmatprep.subr.bf16.mxu0 0
        %2366 = vmatpush1.bf16.msra.mxu0 %v1890
        %2367 = vmatprep.subr.bf16.mxu0 0
        %2368 = vmatpush1.bf16.msra.mxu0 %v1891
        %2369 = vmatprep.subr.bf16.mxu0 0
        %2370 = vmatpush1.bf16.msra.mxu0 %v1892
        %2371 = vmatprep.subr.bf16.mxu0 0
        %2372 = vmatpush1.bf16.msra.mxu0 %v1893
        %2373 = vmatprep.subr.bf16.mxu0 0
        %2374 = vmatpush1.bf16.msra.mxu0 %v1894
        %2375 = vmatprep.subr.bf16.mxu0 0
        %2376 = vmatpush1.bf16.msra.mxu0 %v1895
        %2377 = vmatprep.subr.bf16.mxu0 0
        %2378 = vmatpush1.bf16.msra.mxu0 %v1896
        %2379 = vmatprep.mubr.bf16.mxu0 %v924
        %2380 = vmatmul.mubr.bf16.gmra.mrb[0].mxu0 %v912
        %v2381 = vpop.f32.mrb[0].mxu0
        %v2382 = vadd.f32 %v2205, %v2381
        %v2383 = vpop.f32.mrb[0].mxu0
        %v2384 = vpop.f32.mrb[0].mxu0
        %v2385 = vadd.f32 %v2208, %v2384
        %v2386 = vpop.f32.mrb[0].mxu0
        %2387 = vmatprep.mubr.bf16.mxu0 %v948
        %2388 = vmatmul.mubr.bf16.gmra.mrb[0].mxu0 %v936
        %v2389 = vpop.f32.mrb[0].mxu0
        %v2390 = vadd.f32 %v2213, %v2389
        %v2391 = vpop.f32.mrb[0].mxu0
        %v2392 = vpop.f32.mrb[0].mxu0
        %v2393 = vadd.f32 %v2216, %v2392
        %v2394 = vpop.f32.mrb[0].mxu0
        %2395 = vmatprep.mubr.bf16.mxu0 %v972
        %2396 = vmatmul.mubr.bf16.gmra.mrb[0].mxu0 %v960
        %v2397 = vpop.f32.mrb[0].mxu0
        %v2398 = vadd.f32 %v2221, %v2397
        %v2399 = vpop.f32.mrb[0].mxu0
        %v2400 = vpop.f32.mrb[0].mxu0
        %v2401 = vadd.f32 %v2224, %v2400
        %v2402 = vpop.f32.mrb[0].mxu0
        %2403 = vmatprep.mubr.bf16.mxu0 %v996
        %2404 = vmatmul.mubr.bf16.gmra.mrb[0].mxu0 %v984
        %v2405 = vpop.f32.mrb[0].mxu0
        %v2406 = vadd.f32 %v2229, %v2405
        %v2407 = vpop.f32.mrb[0].mxu0
        %v2408 = vpop.f32.mrb[0].mxu0
        %v2409 = vadd.f32 %v2232, %v2408
        %v2410 = vpop.f32.mrb[0].mxu0
        %2411 = vmatprep.mubr.bf16.mxu0 %v1020
        %2412 = vmatmul.mubr.bf16.gmra.mrb[0].mxu0 %v1008
        %v2413 = vpop.f32.mrb[0].mxu0
        %v2414 = vadd.f32 %v2237, %v2413
        %v2415 = vpop.f32.mrb[0].mxu0
        %v2416 = vpop.f32.mrb[0].mxu0
        %v2417 = vadd.f32 %v2240, %v2416
        %v2418 = vpop.f32.mrb[0].mxu0
        %2419 = vmatprep.mubr.bf16.mxu0 %v1044
        %2420 = vmatmul.mubr.bf16.gmra.mrb[0].mxu0 %v1032
        %v2421 = vpop.f32.mrb[0].mxu0
        %v2422 = vadd.f32 %v2245, %v2421
        %v2423 = vpop.f32.mrb[0].mxu0
        %v2424 = vpop.f32.mrb[0].mxu0
        %v2425 = vadd.f32 %v2248, %v2424
        %v2426 = vpop.f32.mrb[0].mxu0
        %2427 = vmatprep.mubr.bf16.mxu0 %v1068
        %2428 = vmatmul.mubr.bf16.gmra.mrb[0].mxu0 %v1056
        %v2429 = vpop.f32.mrb[0].mxu0
        %v2430 = vadd.f32 %v2253, %v2429
        %v2431 = vpop.f32.mrb[0].mxu0
        %v2432 = vpop.f32.mrb[0].mxu0
        %v2433 = vadd.f32 %v2256, %v2432
        %v2434 = vpop.f32.mrb[0].mxu0
        %2435 = vmatprep.mubr.bf16.mxu0 %v1092
        %2436 = vmatmul.mubr.bf16.gmra.mrb[0].mxu0 %v1080
        %v2437 = vpop.f32.mrb[0].mxu0
        %v2438 = vadd.f32 %v2261, %v2437
        %v2439 = vpop.f32.mrb[0].mxu0
        %v2440 = vpop.f32.mrb[0].mxu0
        %v2441 = vadd.f32 %v2264, %v2440
        %v2442 = vpop.f32.mrb[0].mxu0
        %2443 = vmatprep.mubr.bf16.mxu0 %v1116
        %2444 = vmatmul.mubr.bf16.gmra.mrb[0].mxu0 %v1104
        %v2445 = vpop.f32.mrb[0].mxu0
        %v2446 = vadd.f32 %v2269, %v2445
        %v2447 = vpop.f32.mrb[0].mxu0
        %v2448 = vpop.f32.mrb[0].mxu0
        %v2449 = vadd.f32 %v2272, %v2448
        %v2450 = vpop.f32.mrb[0].mxu0
        %2451 = vmatprep.mubr.bf16.mxu0 %v1140
        %2452 = vmatmul.mubr.bf16.gmra.mrb[0].mxu0 %v1128
        %v2453 = vpop.f32.mrb[0].mxu0
        %v2454 = vadd.f32 %v2277, %v2453
        %v2455 = vpop.f32.mrb[0].mxu0
        %v2456 = vpop.f32.mrb[0].mxu0
        %v2457 = vadd.f32 %v2280, %v2456
        %v2458 = vpop.f32.mrb[0].mxu0
        %2459 = vmatprep.mubr.bf16.mxu0 %v1164
        %2460 = vmatmul.mubr.bf16.gmra.mrb[0].mxu0 %v1152
        %v2461 = vpop.f32.mrb[0].mxu0
        %v2462 = vadd.f32 %v2285, %v2461
        %v2463 = vpop.f32.mrb[0].mxu0
        %v2464 = vpop.f32.mrb[0].mxu0
        %v2465 = vadd.f32 %v2288, %v2464
        %v2466 = vpop.f32.mrb[0].mxu0
        %2467 = vmatprep.mubr.bf16.mxu0 %v1188
        %2468 = vmatmul.mubr.bf16.gmra.mrb[0].mxu0 %v1176
        %v2469 = vpop.f32.mrb[0].mxu0
        %v2470 = vadd.f32 %v2293, %v2469
        %v2471 = vpop.f32.mrb[0].mxu0
        %v2472 = vpop.f32.mrb[0].mxu0
        %v2473 = vadd.f32 %v2296, %v2472
        %v2474 = vpop.f32.mrb[0].mxu0
        %2475 = vmatprep.mubr.bf16.mxu0 %v1212
        %2476 = vmatmul.mubr.bf16.gmra.mrb[0].mxu0 %v1200
        %v2477 = vpop.f32.mrb[0].mxu0
        %v2478 = vadd.f32 %v2301, %v2477
        %v2479 = vpop.f32.mrb[0].mxu0
        %v2480 = vpop.f32.mrb[0].mxu0
        %v2481 = vadd.f32 %v2304, %v2480
        %v2482 = vpop.f32.mrb[0].mxu0
        %2483 = vmatprep.mubr.bf16.mxu0 %v1236
        %2484 = vmatmul.mubr.bf16.gmra.mrb[0].mxu0 %v1224
        %v2485 = vpop.f32.mrb[0].mxu0
        %v2486 = vadd.f32 %v2309, %v2485
        %v2487 = vpop.f32.mrb[0].mxu0
        %v2488 = vpop.f32.mrb[0].mxu0
        %v2489 = vadd.f32 %v2312, %v2488
        %v2490 = vpop.f32.mrb[0].mxu0
        %2491 = vmatprep.mubr.bf16.mxu0 %v1260
        %2492 = vmatmul.mubr.bf16.gmra.mrb[0].mxu0 %v1248
        %v2493 = vpop.f32.mrb[0].mxu0
        %v2494 = vadd.f32 %v2317, %v2493
        %v2495 = vpop.f32.mrb[0].mxu0
        %v2496 = vpop.f32.mrb[0].mxu0
        %v2497 = vadd.f32 %v2320, %v2496
        %v2498 = vpop.f32.mrb[0].mxu0
        %2499 = vmatprep.mubr.bf16.mxu0 %v1284
        %2500 = vmatmul.mubr.bf16.gmra.mrb[0].mxu0 %v1272
        %v2501 = vpop.f32.mrb[0].mxu0
        %v2502 = vadd.f32 %v2325, %v2501
        %v2503 = vpop.f32.mrb[0].mxu0
        %v2504 = vpop.f32.mrb[0].mxu0
        %v2505 = vadd.f32 %v2328, %v2504
        %v2506 = vpop.f32.mrb[0].mxu0
        %2507 = vmatprep.mubr.bf16.mxu0 %v1308
        %2508 = vmatmul.mubr.bf16.gmra.mrb[0].mxu0 %v1296
        %v2509 = vpop.f32.mrb[0].mxu0
        %v2510 = vadd.f32 %v2333, %v2509
        %v2511 = vpop.f32.mrb[0].mxu0
        %v2512 = vpop.f32.mrb[0].mxu0
        %v2513 = vadd.f32 %v2336, %v2512
        %v2514 = vpop.f32.mrb[0].mxu0
        %2515 = vmatprep.mubr.bf16.mxu0 %v1332
        %2516 = vmatmul.mubr.bf16.gmra.mrb[0].mxu0 %v1320
        %v2517 = vpop.f32.mrb[0].mxu0
        %v2518 = vadd.f32 %v2341, %v2517
        %v2519 = vpop.f32.mrb[0].mxu0
        %v2520 = vpop.f32.mrb[0].mxu0
        %v2521 = vadd.f32 %v2344, %v2520
        %v2522 = vpop.f32.mrb[0].mxu0
        %2523 = vdwg.mxu0
        %2524 = vmatprep.subr.bf16.mxu0 0
        %2525 = vmatpush1.bf16.msra.mxu0 %v1897
        %2526 = vmatprep.subr.bf16.mxu0 0
        %2527 = vmatpush1.bf16.msra.mxu0 %v1898
        %2528 = vmatprep.subr.bf16.mxu0 0
        %2529 = vmatpush1.bf16.msra.mxu0 %v1899
        %2530 = vmatprep.subr.bf16.mxu0 0
        %2531 = vmatpush1.bf16.msra.mxu0 %v1900
        %2532 = vmatprep.subr.bf16.mxu0 0
        %2533 = vmatpush1.bf16.msra.mxu0 %v1901
        %2534 = vmatprep.subr.bf16.mxu0 0
        %2535 = vmatpush1.bf16.msra.mxu0 %v1902
        %2536 = vmatprep.subr.bf16.mxu0 0
        %2537 = vmatpush1.bf16.msra.mxu0 %v1903
        %2538 = vmatprep.subr.bf16.mxu0 0
        %2539 = vmatpush1.bf16.msra.mxu0 %v1904
        %2540 = vmatprep.subr.bf16.mxu0 0
        %2541 = vmatpush1.bf16.msra.mxu0 %v1905
        %2542 = vmatprep.subr.bf16.mxu0 0
        %2543 = vmatpush1.bf16.msra.mxu0 %v1906
        %2544 = vmatprep.subr.bf16.mxu0 0
        %2545 = vmatpush1.bf16.msra.mxu0 %v1907
        %2546 = vmatprep.subr.bf16.mxu0 0
        %2547 = vmatpush1.bf16.msra.mxu0 %v1908
        %2548 = vmatprep.subr.bf16.mxu0 0
        %2549 = vmatpush1.bf16.msra.mxu0 %v1909
        %2550 = vmatprep.subr.bf16.mxu0 0
        %2551 = vmatpush1.bf16.msra.mxu0 %v1910
        %2552 = vmatprep.subr.bf16.mxu0 0
        %2553 = vmatpush1.bf16.msra.mxu0 %v1911
        %2554 = vmatprep.subr.bf16.mxu0 0
        %2555 = vmatpush1.bf16.msra.mxu0 %v1912
        %2556 = vmatprep.mubr.bf16.mxu0 %v936
        %2557 = vmatmul.mubr.bf16.gmra.mrb[0].mxu0 %v535
        %v2558 = vpop.f32.mrb[0].mxu0
        %v2559 = vadd.f32 %v2382, %v2558
        %v2560 = vpop.f32.mrb[0].mxu0
        %v2561 = vpop.f32.mrb[0].mxu0
        %v2562 = vadd.f32 %v2385, %v2561
        %v2563 = vpop.f32.mrb[0].mxu0
        %2564 = vmatprep.mubr.bf16.mxu0 %v960
        %2565 = vmatmul.mubr.bf16.gmra.mrb[0].mxu0 %v549
        %v2566 = vpop.f32.mrb[0].mxu0
        %v2567 = vadd.f32 %v2390, %v2566
        %v2568 = vpop.f32.mrb[0].mxu0
        %v2569 = vpop.f32.mrb[0].mxu0
        %v2570 = vadd.f32 %v2393, %v2569
        %v2571 = vpop.f32.mrb[0].mxu0
        %2572 = vmatprep.mubr.bf16.mxu0 %v984
        %2573 = vmatmul.mubr.bf16.gmra.mrb[0].mxu0 %v563
        %v2574 = vpop.f32.mrb[0].mxu0
        %v2575 = vadd.f32 %v2398, %v2574
        %v2576 = vpop.f32.mrb[0].mxu0
        %v2577 = vpop.f32.mrb[0].mxu0
        %v2578 = vadd.f32 %v2401, %v2577
        %v2579 = vpop.f32.mrb[0].mxu0
        %2580 = vmatprep.mubr.bf16.mxu0 %v1008
        %2581 = vmatmul.mubr.bf16.gmra.mrb[0].mxu0 %v577
        %v2582 = vpop.f32.mrb[0].mxu0
        %v2583 = vadd.f32 %v2406, %v2582
        %v2584 = vpop.f32.mrb[0].mxu0
        %v2585 = vpop.f32.mrb[0].mxu0
        %v2586 = vadd.f32 %v2409, %v2585
        %v2587 = vpop.f32.mrb[0].mxu0
        %2588 = vmatprep.mubr.bf16.mxu0 %v1032
        %2589 = vmatmul.mubr.bf16.gmra.mrb[0].mxu0 %v591
        %v2590 = vpop.f32.mrb[0].mxu0
        %v2591 = vadd.f32 %v2414, %v2590
        %v2592 = vpop.f32.mrb[0].mxu0
        %v2593 = vpop.f32.mrb[0].mxu0
        %v2594 = vadd.f32 %v2417, %v2593
        %v2595 = vpop.f32.mrb[0].mxu0
        %2596 = vmatprep.mubr.bf16.mxu0 %v1056
        %2597 = vmatmul.mubr.bf16.gmra.mrb[0].mxu0 %v605
        %v2598 = vpop.f32.mrb[0].mxu0
        %v2599 = vadd.f32 %v2422, %v2598
        %v2600 = vpop.f32.mrb[0].mxu0
        %v2601 = vpop.f32.mrb[0].mxu0
        %v2602 = vadd.f32 %v2425, %v2601
        %v2603 = vpop.f32.mrb[0].mxu0
        %2604 = vmatprep.mubr.bf16.mxu0 %v1080
        %2605 = vmatmul.mubr.bf16.gmra.mrb[0].mxu0 %v619
        %v2606 = vpop.f32.mrb[0].mxu0
        %v2607 = vadd.f32 %v2430, %v2606
        %v2608 = vpop.f32.mrb[0].mxu0
        %v2609 = vpop.f32.mrb[0].mxu0
        %v2610 = vadd.f32 %v2433, %v2609
        %v2611 = vpop.f32.mrb[0].mxu0
        %2612 = vmatprep.mubr.bf16.mxu0 %v1104
        %2613 = vmatmul.mubr.bf16.gmra.mrb[0].mxu0 %v633
        %v2614 = vpop.f32.mrb[0].mxu0
        %v2615 = vadd.f32 %v2438, %v2614
        %v2616 = vpop.f32.mrb[0].mxu0
        %v2617 = vpop.f32.mrb[0].mxu0
        %v2618 = vadd.f32 %v2441, %v2617
        %v2619 = vpop.f32.mrb[0].mxu0
        %2620 = vmatprep.mubr.bf16.mxu0 %v1128
        %2621 = vmatmul.mubr.bf16.gmra.mrb[0].mxu0 %v647
        %v2622 = vpop.f32.mrb[0].mxu0
        %v2623 = vadd.f32 %v2446, %v2622
        %v2624 = vpop.f32.mrb[0].mxu0
        %v2625 = vpop.f32.mrb[0].mxu0
        %v2626 = vadd.f32 %v2449, %v2625
        %v2627 = vpop.f32.mrb[0].mxu0
        %2628 = vmatprep.mubr.bf16.mxu0 %v1152
        %2629 = vmatmul.mubr.bf16.gmra.mrb[0].mxu0 %v661
        %v2630 = vpop.f32.mrb[0].mxu0
        %v2631 = vadd.f32 %v2454, %v2630
        %v2632 = vpop.f32.mrb[0].mxu0
        %v2633 = vpop.f32.mrb[0].mxu0
        %v2634 = vadd.f32 %v2457, %v2633
        %v2635 = vpop.f32.mrb[0].mxu0
        %2636 = vmatprep.mubr.bf16.mxu0 %v1176
        %2637 = vmatmul.mubr.bf16.gmra.mrb[0].mxu0 %v675
        %v2638 = vpop.f32.mrb[0].mxu0
        %v2639 = vadd.f32 %v2462, %v2638
        %v2640 = vpop.f32.mrb[0].mxu0
        %v2641 = vpop.f32.mrb[0].mxu0
        %v2642 = vadd.f32 %v2465, %v2641
        %v2643 = vpop.f32.mrb[0].mxu0
        %2644 = vmatprep.mubr.bf16.mxu0 %v1200
        %2645 = vmatmul.mubr.bf16.gmra.mrb[0].mxu0 %v689
        %v2646 = vpop.f32.mrb[0].mxu0
        %v2647 = vadd.f32 %v2470, %v2646
        %v2648 = vpop.f32.mrb[0].mxu0
        %v2649 = vpop.f32.mrb[0].mxu0
        %v2650 = vadd.f32 %v2473, %v2649
        %v2651 = vpop.f32.mrb[0].mxu0
        %2652 = vmatprep.mubr.bf16.mxu0 %v1224
        %2653 = vmatmul.mubr.bf16.gmra.mrb[0].mxu0 %v703
        %v2654 = vpop.f32.mrb[0].mxu0
        %v2655 = vadd.f32 %v2478, %v2654
        %v2656 = vpop.f32.mrb[0].mxu0
        %v2657 = vpop.f32.mrb[0].mxu0
        %v2658 = vadd.f32 %v2481, %v2657
        %v2659 = vpop.f32.mrb[0].mxu0
        %2660 = vmatprep.mubr.bf16.mxu0 %v1248
        %2661 = vmatmul.mubr.bf16.gmra.mrb[0].mxu0 %v717
        %v2662 = vpop.f32.mrb[0].mxu0
        %v2663 = vadd.f32 %v2486, %v2662
        %v2664 = vpop.f32.mrb[0].mxu0
        %v2665 = vpop.f32.mrb[0].mxu0
        %v2666 = vadd.f32 %v2489, %v2665
        %v2667 = vpop.f32.mrb[0].mxu0
        %2668 = vmatprep.mubr.bf16.mxu0 %v1272
        %2669 = vmatmul.mubr.bf16.gmra.mrb[0].mxu0 %v731
        %v2670 = vpop.f32.mrb[0].mxu0
        %v2671 = vadd.f32 %v2494, %v2670
        %v2672 = vpop.f32.mrb[0].mxu0
        %v2673 = vpop.f32.mrb[0].mxu0
        %v2674 = vadd.f32 %v2497, %v2673
        %v2675 = vpop.f32.mrb[0].mxu0
        %2676 = vmatprep.mubr.bf16.mxu0 %v1296
        %2677 = vmatmul.mubr.bf16.gmra.mrb[0].mxu0 %v745
        %v2678 = vpop.f32.mrb[0].mxu0
        %v2679 = vadd.f32 %v2502, %v2678
        %v2680 = vpop.f32.mrb[0].mxu0
        %v2681 = vpop.f32.mrb[0].mxu0
        %v2682 = vadd.f32 %v2505, %v2681
        %v2683 = vpop.f32.mrb[0].mxu0
        %2684 = vmatprep.mubr.bf16.mxu0 %v1320
        %2685 = vmatmul.mubr.bf16.gmra.mrb[0].mxu0 %v850
        %v2686 = vpop.f32.mrb[0].mxu0
        %v2687 = vadd.f32 %v2510, %v2686
        %v2688 = vpop.f32.mrb[0].mxu0
        %v2689 = vpop.f32.mrb[0].mxu0
        %v2690 = vadd.f32 %v2513, %v2689
        %v2691 = vpop.f32.mrb[0].mxu0
        %2692 = vmatprep.mubr.bf16.mxu0 %v1344
        %2693 = vmatmul.mubr.bf16.gmra.mrb[0].mxu0 %v869
        %v2694 = vpop.f32.mrb[0].mxu0
        %v2695 = vadd.f32 %v2518, %v2694
        %v2696 = vpop.f32.mrb[0].mxu0
        %v2697 = vpop.f32.mrb[0].mxu0
        %v2698 = vadd.f32 %v2521, %v2697
        %v2699 = vpop.f32.mrb[0].mxu0
        %2700 = vdwg.mxu0
        %2701 = vmatprep.subr.bf16.mxu0 0
        %2702 = vmatpush1.bf16.msra.mxu0 %v1913
        %2703 = vmatprep.subr.bf16.mxu0 0
        %2704 = vmatpush1.bf16.msra.mxu0 %v1914
        %2705 = vmatprep.subr.bf16.mxu0 0
        %2706 = vmatpush1.bf16.msra.mxu0 %v1915
        %2707 = vmatprep.subr.bf16.mxu0 0
        %2708 = vmatpush1.bf16.msra.mxu0 %v1916
        %2709 = vmatprep.subr.bf16.mxu0 0
        %2710 = vmatpush1.bf16.msra.mxu0 %v1917
        %2711 = vmatprep.subr.bf16.mxu0 0
        %2712 = vmatpush1.bf16.msra.mxu0 %v1918
        %2713 = vmatprep.subr.bf16.mxu0 0
        %2714 = vmatpush1.bf16.msra.mxu0 %v1919
        %2715 = vmatprep.subr.bf16.mxu0 0
        %2716 = vmatpush1.bf16.msra.mxu0 %v1920
        %2717 = vmatprep.subr.bf16.mxu0 0
        %2718 = vmatpush1.bf16.msra.mxu0 0
        %2719 = vmatprep.subr.bf16.mxu0 0
        %2720 = vmatpush1.bf16.msra.mxu0 0
        %2721 = vmatprep.subr.bf16.mxu0 0
        %2722 = vmatpush1.bf16.msra.mxu0 0
        %2723 = vmatprep.subr.bf16.mxu0 0
        %2724 = vmatpush1.bf16.msra.mxu0 0
        %2725 = vmatprep.subr.bf16.mxu0 0
        %2726 = vmatpush1.bf16.msra.mxu0 0
        %2727 = vmatprep.subr.bf16.mxu0 0
        %2728 = vmatpush1.bf16.msra.mxu0 0
        %2729 = vmatprep.subr.bf16.mxu0 0
        %2730 = vmatpush1.bf16.msra.mxu0 0
        %2731 = vmatprep.subr.bf16.mxu0 0
        %2732 = vmatpush1.bf16.msra.mxu0 0
        %2733 = vmatprep.mubr.bf16.mxu0 0
        %2734 = vmatmul.mubr.bf16.gmra.mrb[0].mxu0 %v948
        %v2735 = vpop.f32.mrb[0].mxu0
        %v2736 = vadd.f32 %v2559, %v2735
        %v2737 = vpop.f32.mrb[0].mxu0
        %v2738 = vpop.f32.mrb[0].mxu0
        %v2739 = vadd.f32 %v2562, %v2738
        %v2740 = vpop.f32.mrb[0].mxu0
        %2741 = vmatprep.mubr.bf16.mxu0 0
        %2742 = vmatmul.mubr.bf16.gmra.mrb[0].mxu0 %v972
        %v2743 = vpop.f32.mrb[0].mxu0
        %v2744 = vadd.f32 %v2567, %v2743
        %v2745 = vpop.f32.mrb[0].mxu0
        %v2746 = vpop.f32.mrb[0].mxu0
        %v2747 = vadd.f32 %v2570, %v2746
        %v2748 = vpop.f32.mrb[0].mxu0
        %2749 = vmatprep.mubr.bf16.mxu0 0
        %2750 = vmatmul.mubr.bf16.gmra.mrb[0].mxu0 %v996
        %v2751 = vpop.f32.mrb[0].mxu0
        %v2752 = vadd.f32 %v2575, %v2751
        %v2753 = vpop.f32.mrb[0].mxu0
        %v2754 = vpop.f32.mrb[0].mxu0
        %v2755 = vadd.f32 %v2578, %v2754
        %v2756 = vpop.f32.mrb[0].mxu0
        %2757 = vmatprep.mubr.bf16.mxu0 0
        %2758 = vmatmul.mubr.bf16.gmra.mrb[0].mxu0 %v1020
        %v2759 = vpop.f32.mrb[0].mxu0
        %v2760 = vadd.f32 %v2583, %v2759
        %v2761 = vpop.f32.mrb[0].mxu0
        %v2762 = vpop.f32.mrb[0].mxu0
        %v2763 = vadd.f32 %v2586, %v2762
        %v2764 = vpop.f32.mrb[0].mxu0
        %2765 = vmatprep.mubr.bf16.mxu0 0
        %2766 = vmatmul.mubr.bf16.gmra.mrb[0].mxu0 %v1044
        %v2767 = vpop.f32.mrb[0].mxu0
        %v2768 = vadd.f32 %v2591, %v2767
        %v2769 = vpop.f32.mrb[0].mxu0
        %v2770 = vpop.f32.mrb[0].mxu0
        %v2771 = vadd.f32 %v2594, %v2770
        %v2772 = vpop.f32.mrb[0].mxu0
        %2773 = vmatprep.mubr.bf16.mxu0 0
        %2774 = vmatmul.mubr.bf16.gmra.mrb[0].mxu0 %v1068
        %v2775 = vpop.f32.mrb[0].mxu0
        %v2776 = vadd.f32 %v2599, %v2775
        %v2777 = vpop.f32.mrb[0].mxu0
        %v2778 = vpop.f32.mrb[0].mxu0
        %v2779 = vadd.f32 %v2602, %v2778
        %v2780 = vpop.f32.mrb[0].mxu0
        %2781 = vmatprep.mubr.bf16.mxu0 0
        %2782 = vmatmul.mubr.bf16.gmra.mrb[0].mxu0 %v1092
        %v2783 = vpop.f32.mrb[0].mxu0
        %v2784 = vadd.f32 %v2607, %v2783
        %v2785 = vpop.f32.mrb[0].mxu0
        %v2786 = vpop.f32.mrb[0].mxu0
        %v2787 = vadd.f32 %v2610, %v2786
        %v2788 = vpop.f32.mrb[0].mxu0
        %2789 = vmatprep.mubr.bf16.mxu0 0
        %2790 = vmatmul.mubr.bf16.gmra.mrb[0].mxu0 %v1116
        %v2791 = vpop.f32.mrb[0].mxu0
        %v2792 = vadd.f32 %v2615, %v2791
        %v2793 = vpop.f32.mrb[0].mxu0
        %v2794 = vpop.f32.mrb[0].mxu0
        %v2795 = vadd.f32 %v2618, %v2794
        %v2796 = vpop.f32.mrb[0].mxu0
        %2797 = vmatprep.mubr.bf16.mxu0 0
        %2798 = vmatmul.mubr.bf16.gmra.mrb[0].mxu0 %v1140
        %v2799 = vpop.f32.mrb[0].mxu0
        %v2800 = vadd.f32 %v2623, %v2799
        %v2801 = vpop.f32.mrb[0].mxu0
        %v2802 = vpop.f32.mrb[0].mxu0
        %v2803 = vadd.f32 %v2626, %v2802
        %v2804 = vpop.f32.mrb[0].mxu0
        %2805 = vmatprep.mubr.bf16.mxu0 0
        %2806 = vmatmul.mubr.bf16.gmra.mrb[0].mxu0 %v1164
        %v2807 = vpop.f32.mrb[0].mxu0
        %v2808 = vadd.f32 %v2631, %v2807
        %v2809 = vpop.f32.mrb[0].mxu0
        %v2810 = vpop.f32.mrb[0].mxu0
        %v2811 = vadd.f32 %v2634, %v2810
        %v2812 = vpop.f32.mrb[0].mxu0
        %2813 = vmatprep.mubr.bf16.mxu0 0
        %2814 = vmatmul.mubr.bf16.gmra.mrb[0].mxu0 %v1188
        %v2815 = vpop.f32.mrb[0].mxu0
        %v2816 = vadd.f32 %v2639, %v2815
        %v2817 = vpop.f32.mrb[0].mxu0
        %v2818 = vpop.f32.mrb[0].mxu0
        %v2819 = vadd.f32 %v2642, %v2818
        %v2820 = vpop.f32.mrb[0].mxu0
        %2821 = vmatprep.mubr.bf16.mxu0 0
        %2822 = vmatmul.mubr.bf16.gmra.mrb[0].mxu0 %v1212
        %v2823 = vpop.f32.mrb[0].mxu0
        %v2824 = vadd.f32 %v2647, %v2823
        %v2825 = vpop.f32.mrb[0].mxu0
        %v2826 = vpop.f32.mrb[0].mxu0
        %v2827 = vadd.f32 %v2650, %v2826
        %v2828 = vpop.f32.mrb[0].mxu0
        %2829 = vmatprep.mubr.bf16.mxu0 0
        %2830 = vmatmul.mubr.bf16.gmra.mrb[0].mxu0 %v1236
        %v2831 = vpop.f32.mrb[0].mxu0
        %v2832 = vadd.f32 %v2655, %v2831
        %v2833 = vpop.f32.mrb[0].mxu0
        %v2834 = vpop.f32.mrb[0].mxu0
        %v2835 = vadd.f32 %v2658, %v2834
        %v2836 = vpop.f32.mrb[0].mxu0
        %2837 = vmatprep.mubr.bf16.mxu0 0
        %2838 = vmatmul.mubr.bf16.gmra.mrb[0].mxu0 %v1260
        %v2839 = vpop.f32.mrb[0].mxu0
        %v2840 = vadd.f32 %v2663, %v2839
        %v2841 = vpop.f32.mrb[0].mxu0
        %v2842 = vpop.f32.mrb[0].mxu0
        %v2843 = vadd.f32 %v2666, %v2842
        %v2844 = vpop.f32.mrb[0].mxu0
        %2845 = vmatprep.mubr.bf16.mxu0 0
        %2846 = vmatmul.mubr.bf16.gmra.mrb[0].mxu0 %v1284
        %v2847 = vpop.f32.mrb[0].mxu0
        %v2848 = vadd.f32 %v2671, %v2847
        %v2849 = vpop.f32.mrb[0].mxu0
        %v2850 = vpop.f32.mrb[0].mxu0
        %v2851 = vadd.f32 %v2674, %v2850
        %v2852 = vpop.f32.mrb[0].mxu0
        %2853 = vmatprep.mubr.bf16.mxu0 0
        %2854 = vmatmul.mubr.bf16.gmra.mrb[0].mxu0 %v1308
        %v2855 = vpop.f32.mrb[0].mxu0
        %v2856 = vadd.f32 %v2679, %v2855
        %v2857 = vpop.f32.mrb[0].mxu0
        %v2858 = vpop.f32.mrb[0].mxu0
        %v2859 = vadd.f32 %v2682, %v2858
        %v2860 = vpop.f32.mrb[0].mxu0
        %2861 = vmatprep.mubr.bf16.mxu0 0
        %2862 = vmatmul.mubr.bf16.gmra.mrb[0].mxu0 %v1332
        %v2863 = vpop.f32.mrb[0].mxu0
        %v2864 = vadd.f32 %v2687, %v2863
        %v2865 = vpop.f32.mrb[0].mxu0
        %v2866 = vpop.f32.mrb[0].mxu0
        %v2867 = vadd.f32 %v2690, %v2866
        %v2868 = vpop.f32.mrb[0].mxu0
        %2869 = vmatprep.mubr.bf16.mxu0 0
        %2870 = vmatmul.mubr.bf16.gmra.mrb[0].mxu0 %v1356
        %v2871 = vpop.f32.mrb[0].mxu0
        %v2872 = vadd.f32 %v2695, %v2871
        %v2873 = vpop.f32.mrb[0].mxu0
        %v2874 = vpop.f32.mrb[0].mxu0
        %v2875 = vadd.f32 %v2698, %v2874
        %v2876 = vpop.f32.mrb[0].mxu0
        %2877 = vdwg.mxu0
        %v2878 = vld [vmem:[#allocation7] sm:$0x1]
        %v2880 = vlaneseq
        %v2881 = vshrl.u32 %v2880, 7
        %v2882 = vsub.s32 0, %v2881
        %v2883 = vrot.slane %v2878, %v2882
        %v2885 = vmul.f32 %v2736, %v2883
        %v2886 = vmul.f32 %v2739, %v2883
        %v2887 = vmul.f32 %v2744, %v2883
        %v2888 = vmul.f32 %v2747, %v2883
        %v2889 = vmul.f32 %v2752, %v2883
        %v2890 = vmul.f32 %v2755, %v2883
        %v2891 = vmul.f32 %v2760, %v2883
        %v2892 = vmul.f32 %v2763, %v2883
        %v2893 = vmul.f32 %v2768, %v2883
        %v2894 = vmul.f32 %v2771, %v2883
        %v2895 = vmul.f32 %v2776, %v2883
        %v2896 = vmul.f32 %v2779, %v2883
        %v2897 = vmul.f32 %v2784, %v2883
        %v2898 = vmul.f32 %v2787, %v2883
        %v2899 = vmul.f32 %v2792, %v2883
        %v2900 = vmul.f32 %v2795, %v2883
        %v2901 = vmul.f32 %v2800, %v2883
        %v2902 = vmul.f32 %v2803, %v2883
        %v2903 = vmul.f32 %v2808, %v2883
        %v2904 = vmul.f32 %v2811, %v2883
        %v2905 = vmul.f32 %v2816, %v2883
        %v2906 = vmul.f32 %v2819, %v2883
        %v2907 = vmul.f32 %v2824, %v2883
        %v2908 = vmul.f32 %v2827, %v2883
        %v2909 = vmul.f32 %v2832, %v2883
        %v2910 = vmul.f32 %v2835, %v2883
        %v2911 = vmul.f32 %v2840, %v2883
        %v2912 = vmul.f32 %v2843, %v2883
        %v2913 = vmul.f32 %v2848, %v2883
        %v2914 = vmul.f32 %v2851, %v2883
        %v2915 = vmul.f32 %v2856, %v2883
        %v2916 = vmul.f32 %v2859, %v2883
        %v2917 = vmul.f32 %v2864, %v2883
        %v2918 = vmul.f32 %v2867, %v2883
        %v2919 = vmul.f32 %v2872, %v2883
        %v2920 = vmul.f32 %v2875, %v2883
        %v2921 = vld [vmem:[#allocation8] sm:$0x1]
        %v2923 = vlaneseq
        %v2924 = vshrl.u32 %v2923, 7
        %v2925 = vsub.s32 0, %v2924
        %v2926 = vrot.slane %v2921, %v2925
        %v2928 = vadd.f32 %v2885, %v2926
        %v2929 = vadd.f32 %v2886, %v2926
        %v2930 = vadd.f32 %v2887, %v2926
        %v2931 = vadd.f32 %v2888, %v2926
        %v2932 = vadd.f32 %v2889, %v2926
        %v2933 = vadd.f32 %v2890, %v2926
        %v2934 = vadd.f32 %v2891, %v2926
        %v2935 = vadd.f32 %v2892, %v2926
        %v2936 = vadd.f32 %v2893, %v2926
        %v2937 = vadd.f32 %v2894, %v2926
        %v2938 = vadd.f32 %v2895, %v2926
        %v2939 = vadd.f32 %v2896, %v2926
        %v2940 = vadd.f32 %v2897, %v2926
        %v2941 = vadd.f32 %v2898, %v2926
        %v2942 = vadd.f32 %v2899, %v2926
        %v2943 = vadd.f32 %v2900, %v2926
        %v2944 = vadd.f32 %v2901, %v2926
        %v2945 = vadd.f32 %v2902, %v2926
        %v2946 = vadd.f32 %v2903, %v2926
        %v2947 = vadd.f32 %v2904, %v2926
        %v2948 = vadd.f32 %v2905, %v2926
        %v2949 = vadd.f32 %v2906, %v2926
        %v2950 = vadd.f32 %v2907, %v2926
        %v2951 = vadd.f32 %v2908, %v2926
        %v2952 = vadd.f32 %v2909, %v2926
        %v2953 = vadd.f32 %v2910, %v2926
        %v2954 = vadd.f32 %v2911, %v2926
        %v2955 = vadd.f32 %v2912, %v2926
        %v2956 = vadd.f32 %v2913, %v2926
        %v2957 = vadd.f32 %v2914, %v2926
        %v2958 = vadd.f32 %v2915, %v2926
        %v2959 = vadd.f32 %v2916, %v2926
        %v2960 = vadd.f32 %v2917, %v2926
        %v2961 = vadd.f32 %v2918, %v2926
        %v2962 = vadd.f32 %v2919, %v2926
        %v2963 = vadd.f32 %v2920, %v2926
        %v2964 = vxor.u32 %v2928, 2147483648
        %v2965 = vxor.u32 %v2929, 2147483648
        %v2966 = vxor.u32 %v2930, 2147483648
        %v2967 = vxor.u32 %v2931, 2147483648
        %v2968 = vxor.u32 %v2932, 2147483648
        %v2969 = vxor.u32 %v2933, 2147483648
        %v2970 = vxor.u32 %v2934, 2147483648
        %v2971 = vxor.u32 %v2935, 2147483648
        %v2972 = vxor.u32 %v2936, 2147483648
        %v2973 = vxor.u32 %v2937, 2147483648
        %v2974 = vxor.u32 %v2938, 2147483648
        %v2975 = vxor.u32 %v2939, 2147483648
        %v2976 = vxor.u32 %v2940, 2147483648
        %v2977 = vxor.u32 %v2941, 2147483648
        %v2978 = vxor.u32 %v2942, 2147483648
        %v2979 = vxor.u32 %v2943, 2147483648
        %v2980 = vxor.u32 %v2944, 2147483648
        %v2981 = vxor.u32 %v2945, 2147483648
        %v2982 = vxor.u32 %v2946, 2147483648
        %v2983 = vxor.u32 %v2947, 2147483648
        %v2984 = vxor.u32 %v2948, 2147483648
        %v2985 = vxor.u32 %v2949, 2147483648
        %v2986 = vxor.u32 %v2950, 2147483648
        %v2987 = vxor.u32 %v2951, 2147483648
        %v2988 = vxor.u32 %v2952, 2147483648
        %v2989 = vxor.u32 %v2953, 2147483648
        %v2990 = vxor.u32 %v2954, 2147483648
        %v2991 = vxor.u32 %v2955, 2147483648
        %v2992 = vxor.u32 %v2956, 2147483648
        %v2993 = vxor.u32 %v2957, 2147483648
        %v2994 = vxor.u32 %v2958, 2147483648
        %v2995 = vxor.u32 %v2959, 2147483648
        %v2996 = vxor.u32 %v2960, 2147483648
        %v2997 = vxor.u32 %v2961, 2147483648
        %v2998 = vxor.u32 %v2962, 2147483648
        %v2999 = vxor.u32 %v2963, 2147483648
        %v3000 = vmul.f32 %v2964, 1.442695
        %v3001 = vpow.pop %v3000
        %v3002 = vmul.f32 %v2965, 1.442695
        %v3003 = vpow.pop %v3002
        %v3004 = vmul.f32 %v2966, 1.442695
        %v3005 = vpow.pop %v3004
        %v3006 = vmul.f32 %v2967, 1.442695
        %v3007 = vpow.pop %v3006
        %v3008 = vmul.f32 %v2968, 1.442695
        %v3009 = vpow.pop %v3008
        %v3010 = vmul.f32 %v2969, 1.442695
        %v3011 = vpow.pop %v3010
        %v3012 = vmul.f32 %v2970, 1.442695
        %v3013 = vpow.pop %v3012
        %v3014 = vmul.f32 %v2971, 1.442695
        %v3015 = vpow.pop %v3014
        %v3016 = vmul.f32 %v2972, 1.442695
        %v3017 = vpow.pop %v3016
        %v3018 = vmul.f32 %v2973, 1.442695
        %v3019 = vpow.pop %v3018
        %v3020 = vmul.f32 %v2974, 1.442695
        %v3021 = vpow.pop %v3020
        %v3022 = vmul.f32 %v2975, 1.442695
        %v3023 = vpow.pop %v3022
        %v3024 = vmul.f32 %v2976, 1.442695
        %v3025 = vpow.pop %v3024
        %v3026 = vmul.f32 %v2977, 1.442695
        %v3027 = vpow.pop %v3026
        %v3028 = vmul.f32 %v2978, 1.442695
        %v3029 = vpow.pop %v3028
        %v3030 = vmul.f32 %v2979, 1.442695
        %v3031 = vpow.pop %v3030
        %v3032 = vmul.f32 %v2980, 1.442695
        %v3033 = vpow.pop %v3032
        %v3034 = vmul.f32 %v2981, 1.442695
        %v3035 = vpow.pop %v3034
        %v3036 = vmul.f32 %v2982, 1.442695
        %v3037 = vpow.pop %v3036
        %v3038 = vmul.f32 %v2983, 1.442695
        %v3039 = vpow.pop %v3038
        %v3040 = vmul.f32 %v2984, 1.442695
        %v3041 = vpow.pop %v3040
        %v3042 = vmul.f32 %v2985, 1.442695
        %v3043 = vpow.pop %v3042
        %v3044 = vmul.f32 %v2986, 1.442695
        %v3045 = vpow.pop %v3044
        %v3046 = vmul.f32 %v2987, 1.442695
        %v3047 = vpow.pop %v3046
        %v3048 = vmul.f32 %v2988, 1.442695
        %v3049 = vpow.pop %v3048
        %v3050 = vmul.f32 %v2989, 1.442695
        %v3051 = vpow.pop %v3050
        %v3052 = vmul.f32 %v2990, 1.442695
        %v3053 = vpow.pop %v3052
        %v3054 = vmul.f32 %v2991, 1.442695
        %v3055 = vpow.pop %v3054
        %v3056 = vmul.f32 %v2992, 1.442695
        %v3057 = vpow.pop %v3056
        %v3058 = vmul.f32 %v2993, 1.442695
        %v3059 = vpow.pop %v3058
        %v3060 = vmul.f32 %v2994, 1.442695
        %v3061 = vpow.pop %v3060
        %v3062 = vmul.f32 %v2995, 1.442695
        %v3063 = vpow.pop %v3062
        %v3064 = vmul.f32 %v2996, 1.442695
        %v3065 = vpow.pop %v3064
        %v3066 = vmul.f32 %v2997, 1.442695
        %v3067 = vpow.pop %v3066
        %v3068 = vmul.f32 %v2998, 1.442695
        %v3069 = vpow.pop %v3068
        %v3070 = vmul.f32 %v2999, 1.442695
        %v3071 = vpow.pop %v3070
        %v3072 = vadd.f32 %v3001, 1.0
        %v3073 = vadd.f32 %v3003, 1.0
        %v3074 = vadd.f32 %v3005, 1.0
        %v3075 = vadd.f32 %v3007, 1.0
        %v3076 = vadd.f32 %v3009, 1.0
        %v3077 = vadd.f32 %v3011, 1.0
        %v3078 = vadd.f32 %v3013, 1.0
        %v3079 = vadd.f32 %v3015, 1.0
        %v3080 = vadd.f32 %v3017, 1.0
        %v3081 = vadd.f32 %v3019, 1.0
        %v3082 = vadd.f32 %v3021, 1.0
        %v3083 = vadd.f32 %v3023, 1.0
        %v3084 = vadd.f32 %v3025, 1.0
        %v3085 = vadd.f32 %v3027, 1.0
        %v3086 = vadd.f32 %v3029, 1.0
        %v3087 = vadd.f32 %v3031, 1.0
        %v3088 = vadd.f32 %v3033, 1.0
        %v3089 = vadd.f32 %v3035, 1.0
        %v3090 = vadd.f32 %v3037, 1.0
        %v3091 = vadd.f32 %v3039, 1.0
        %v3092 = vadd.f32 %v3041, 1.0
        %v3093 = vadd.f32 %v3043, 1.0
        %v3094 = vadd.f32 %v3045, 1.0
        %v3095 = vadd.f32 %v3047, 1.0
        %v3096 = vadd.f32 %v3049, 1.0
        %v3097 = vadd.f32 %v3051, 1.0
        %v3098 = vadd.f32 %v3053, 1.0
        %v3099 = vadd.f32 %v3055, 1.0
        %v3100 = vadd.f32 %v3057, 1.0
        %v3101 = vadd.f32 %v3059, 1.0
        %v3102 = vadd.f32 %v3061, 1.0
        %v3103 = vadd.f32 %v3063, 1.0
        %v3104 = vadd.f32 %v3065, 1.0
        %v3105 = vadd.f32 %v3067, 1.0
        %v3106 = vadd.f32 %v3069, 1.0
        %v3107 = vadd.f32 %v3071, 1.0
        %v3108 = vrcp.pop %v3072
        %v3109 = vmul.f32 1.0, %v3108
        %v3110 = vrcp.pop %v3073
        %v3111 = vmul.f32 1.0, %v3110
        %v3112 = vrcp.pop %v3074
        %v3113 = vmul.f32 1.0, %v3112
        %v3114 = vrcp.pop %v3075
        %v3115 = vmul.f32 1.0, %v3114
        %v3116 = vrcp.pop %v3076
        %v3117 = vmul.f32 1.0, %v3116
        %v3118 = vrcp.pop %v3077
        %v3119 = vmul.f32 1.0, %v3118
        %v3120 = vrcp.pop %v3078
        %v3121 = vmul.f32 1.0, %v3120
        %v3122 = vrcp.pop %v3079
        %v3123 = vmul.f32 1.0, %v3122
        %v3124 = vrcp.pop %v3080
        %v3125 = vmul.f32 1.0, %v3124
        %v3126 = vrcp.pop %v3081
        %v3127 = vmul.f32 1.0, %v3126
        %v3128 = vrcp.pop %v3082
        %v3129 = vmul.f32 1.0, %v3128
        %v3130 = vrcp.pop %v3083
        %v3131 = vmul.f32 1.0, %v3130
        %v3132 = vrcp.pop %v3084
        %v3133 = vmul.f32 1.0, %v3132
        %v3134 = vrcp.pop %v3085
        %v3135 = vmul.f32 1.0, %v3134
        %v3136 = vrcp.pop %v3086
        %v3137 = vmul.f32 1.0, %v3136
        %v3138 = vrcp.pop %v3087
        %v3139 = vmul.f32 1.0, %v3138
        %v3140 = vrcp.pop %v3088
        %v3141 = vmul.f32 1.0, %v3140
        %v3142 = vrcp.pop %v3089
        %v3143 = vmul.f32 1.0, %v3142
        %v3144 = vrcp.pop %v3090
        %v3145 = vmul.f32 1.0, %v3144
        %v3146 = vrcp.pop %v3091
        %v3147 = vmul.f32 1.0, %v3146
        %v3148 = vrcp.pop %v3092
        %v3149 = vmul.f32 1.0, %v3148
        %v3150 = vrcp.pop %v3093
        %v3151 = vmul.f32 1.0, %v3150
        %v3152 = vrcp.pop %v3094
        %v3153 = vmul.f32 1.0, %v3152
        %v3154 = vrcp.pop %v3095
        %v3155 = vmul.f32 1.0, %v3154
        %v3156 = vrcp.pop %v3096
        %v3157 = vmul.f32 1.0, %v3156
        %v3158 = vrcp.pop %v3097
        %v3159 = vmul.f32 1.0, %v3158
        %v3160 = vrcp.pop %v3098
        %v3161 = vmul.f32 1.0, %v3160
        %v3162 = vrcp.pop %v3099
        %v3163 = vmul.f32 1.0, %v3162
        %v3164 = vrcp.pop %v3100
        %v3165 = vmul.f32 1.0, %v3164
        %v3166 = vrcp.pop %v3101
        %v3167 = vmul.f32 1.0, %v3166
        %v3168 = vrcp.pop %v3102
        %v3169 = vmul.f32 1.0, %v3168
        %v3170 = vrcp.pop %v3103
        %v3171 = vmul.f32 1.0, %v3170
        %v3172 = vrcp.pop %v3104
        %v3173 = vmul.f32 1.0, %v3172
        %v3174 = vrcp.pop %v3105
        %v3175 = vmul.f32 1.0, %v3174
        %v3176 = vrcp.pop %v3106
        %v3177 = vmul.f32 1.0, %v3176
        %v3178 = vrcp.pop %v3107
        %v3179 = vmul.f32 1.0, %v3178
        %v3180 = vmul.f32 %v2928, %v3109
        %v3181 = vmul.f32 %v2929, %v3111
        %v3182 = vmul.f32 %v2930, %v3113
        %v3183 = vmul.f32 %v2931, %v3115
        %v3184 = vmul.f32 %v2932, %v3117
        %v3185 = vmul.f32 %v2933, %v3119
        %v3186 = vmul.f32 %v2934, %v3121
        %v3187 = vmul.f32 %v2935, %v3123
        %v3188 = vmul.f32 %v2936, %v3125
        %v3189 = vmul.f32 %v2937, %v3127
        %v3190 = vmul.f32 %v2938, %v3129
        %v3191 = vmul.f32 %v2939, %v3131
        %v3192 = vmul.f32 %v2940, %v3133
        %v3193 = vmul.f32 %v2941, %v3135
        %v3194 = vmul.f32 %v2942, %v3137
        %v3195 = vmul.f32 %v2943, %v3139
        %v3196 = vmul.f32 %v2944, %v3141
        %v3197 = vmul.f32 %v2945, %v3143
        %v3198 = vmul.f32 %v2946, %v3145
        %v3199 = vmul.f32 %v2947, %v3147
        %v3200 = vmul.f32 %v2948, %v3149
        %v3201 = vmul.f32 %v2949, %v3151
        %v3202 = vmul.f32 %v2950, %v3153
        %v3203 = vmul.f32 %v2951, %v3155
        %v3204 = vmul.f32 %v2952, %v3157
        %v3205 = vmul.f32 %v2953, %v3159
        %v3206 = vmul.f32 %v2954, %v3161
        %v3207 = vmul.f32 %v2955, %v3163
        %v3208 = vmul.f32 %v2956, %v3165
        %v3209 = vmul.f32 %v2957, %v3167
        %v3210 = vmul.f32 %v2958, %v3169
        %v3211 = vmul.f32 %v2959, %v3171
        %v3212 = vmul.f32 %v2960, %v3173
        %v3213 = vmul.f32 %v2961, %v3175
        %v3214 = vmul.f32 %v2962, %v3177
        %v3215 = vmul.f32 %v2963, %v3179
        %s3216 = ssub.s32 %s392, 1
        %v3217 = vstv %s3216
        %v3218 = vadd.s32 %v3217, 1
        %v3219 = vadd.s32 %v3217, 2
        %v3220 = vadd.s32 %v3217, 3
        %v3221 = vadd.s32 %v3217, 4
        %v3222 = vadd.s32 %v3217, 5
        %v3223 = vadd.s32 %v3217, 6
        %v3224 = vadd.s32 %v3217, 7
        %v3225 = vadd.s32 %v3217, 8
        %v3226 = vadd.s32 %v3217, 9
        %v3227 = vadd.s32 %v3217, 10
        %v3228 = vadd.s32 %v3217, 11
        %v3229 = vadd.s32 %v3217, 12
        %v3230 = vadd.s32 %v3217, 13
        %v3231 = vadd.s32 %v3217, 14
        %v3232 = vadd.s32 %v3217, 15
        %v3233 = vadd.s32 %v3217, 16
        %v3234 = vadd.s32 %v3217, 17
        %vm3235 = vcmp.ge.s32.totalorder %v3217, 0
        %vm3236 = vcmp.ge.s32.totalorder %v3218, 0
        %vm3237 = vcmp.ge.s32.totalorder %v3219, 0
        %vm3238 = vcmp.ge.s32.totalorder %v3220, 0
        %vm3239 = vcmp.ge.s32.totalorder %v3221, 0
        %vm3240 = vcmp.ge.s32.totalorder %v3222, 0
        %vm3241 = vcmp.ge.s32.totalorder %v3223, 0
        %vm3242 = vcmp.ge.s32.totalorder %v3224, 0
        %vm3243 = vcmp.ge.s32.totalorder %v3225, 0
        %vm3244 = vcmp.ge.s32.totalorder %v3226, 0
        %vm3245 = vcmp.ge.s32.totalorder %v3227, 0
        %vm3246 = vcmp.ge.s32.totalorder %v3228, 0
        %vm3247 = vcmp.ge.s32.totalorder %v3229, 0
        %vm3248 = vcmp.ge.s32.totalorder %v3230, 0
        %vm3249 = vcmp.ge.s32.totalorder %v3231, 0
        %vm3250 = vcmp.ge.s32.totalorder %v3232, 0
        %vm3251 = vcmp.ge.s32.totalorder %v3233, 0
        %vm3252 = vcmp.ge.s32.totalorder %v3234, 0
        %vm3253 = vcmp.lt.s32.totalorder %v3217, 16
        %vm3254 = vcmp.lt.s32.totalorder %v3218, 16
        %vm3255 = vcmp.lt.s32.totalorder %v3219, 16
        %vm3256 = vcmp.lt.s32.totalorder %v3220, 16
        %vm3257 = vcmp.lt.s32.totalorder %v3221, 16
        %vm3258 = vcmp.lt.s32.totalorder %v3222, 16
        %vm3259 = vcmp.lt.s32.totalorder %v3223, 16
        %vm3260 = vcmp.lt.s32.totalorder %v3224, 16
        %vm3261 = vcmp.lt.s32.totalorder %v3225, 16
        %vm3262 = vcmp.lt.s32.totalorder %v3226, 16
        %vm3263 = vcmp.lt.s32.totalorder %v3227, 16
        %vm3264 = vcmp.lt.s32.totalorder %v3228, 16
        %vm3265 = vcmp.lt.s32.totalorder %v3229, 16
        %vm3266 = vcmp.lt.s32.totalorder %v3230, 16
        %vm3267 = vcmp.lt.s32.totalorder %v3231, 16
        %vm3268 = vcmp.lt.s32.totalorder %v3232, 16
        %vm3269 = vcmp.lt.s32.totalorder %v3233, 16
        %vm3270 = vcmp.lt.s32.totalorder %v3234, 16
        %vm3271 = vmand %vm3235, %vm3253
        %vm3272 = vmand %vm3236, %vm3254
        %vm3273 = vmand %vm3237, %vm3255
        %vm3274 = vmand %vm3238, %vm3256
        %vm3275 = vmand %vm3239, %vm3257
        %vm3276 = vmand %vm3240, %vm3258
        %vm3277 = vmand %vm3241, %vm3259
        %vm3278 = vmand %vm3242, %vm3260
        %vm3279 = vmand %vm3243, %vm3261
        %vm3280 = vmand %vm3244, %vm3262
        %vm3281 = vmand %vm3245, %vm3263
        %vm3282 = vmand %vm3246, %vm3264
        %vm3283 = vmand %vm3247, %vm3265
        %vm3284 = vmand %vm3248, %vm3266
        %vm3285 = vmand %vm3249, %vm3267
        %vm3286 = vmand %vm3250, %vm3268
        %vm3287 = vmand %vm3251, %vm3269
        %vm3288 = vmand %vm3252, %vm3270
        %v3289 = vsel %vm3271, %v3180, 0.0
        %v3290 = vsel %vm3271, %v3181, 0.0
        %v3291 = vsel %vm3272, %v3182, 0.0
        %v3292 = vsel %vm3272, %v3183, 0.0
        %v3293 = vsel %vm3273, %v3184, 0.0
        %v3294 = vsel %vm3273, %v3185, 0.0
        %v3295 = vsel %vm3274, %v3186, 0.0
        %v3296 = vsel %vm3274, %v3187, 0.0
        %v3297 = vsel %vm3275, %v3188, 0.0
        %v3298 = vsel %vm3275, %v3189, 0.0
        %v3299 = vsel %vm3276, %v3190, 0.0
        %v3300 = vsel %vm3276, %v3191, 0.0
        %v3301 = vsel %vm3277, %v3192, 0.0
        %v3302 = vsel %vm3277, %v3193, 0.0
        %v3303 = vsel %vm3278, %v3194, 0.0
        %v3304 = vsel %vm3278, %v3195, 0.0
        %v3305 = vsel %vm3279, %v3196, 0.0
        %v3306 = vsel %vm3279, %v3197, 0.0
        %v3307 = vsel %vm3280, %v3198, 0.0
        %v3308 = vsel %vm3280, %v3199, 0.0
        %v3309 = vsel %vm3281, %v3200, 0.0
        %v3310 = vsel %vm3281, %v3201, 0.0
        %v3311 = vsel %vm3282, %v3202, 0.0
        %v3312 = vsel %vm3282, %v3203, 0.0
        %v3313 = vsel %vm3283, %v3204, 0.0
        %v3314 = vsel %vm3283, %v3205, 0.0
        %v3315 = vsel %vm3284, %v3206, 0.0
        %v3316 = vsel %vm3284, %v3207, 0.0
        %v3317 = vsel %vm3285, %v3208, 0.0
        %v3318 = vsel %vm3285, %v3209, 0.0
        %v3319 = vsel %vm3286, %v3210, 0.0
        %v3320 = vsel %vm3286, %v3211, 0.0
        %v3321 = vsel %vm3287, %v3212, 0.0
        %v3322 = vsel %vm3287, %v3213, 0.0
        %v3323 = vsel %vm3288, %v3214, 0.0
        %v3324 = vsel %vm3288, %v3215, 0.0
        %v3325 = vpack.c.bf16 %v3290, %v3289
        %v3326 = vpack.c.bf16 %v3292, %v3291
        %v3327 = vpack.c.bf16 %v3294, %v3293
        %v3328 = vpack.c.bf16 %v3296, %v3295
        %v3329 = vpack.c.bf16 %v3298, %v3297
        %v3330 = vpack.c.bf16 %v3300, %v3299
        %v3331 = vpack.c.bf16 %v3302, %v3301
        %v3332 = vpack.c.bf16 %v3304, %v3303
        %v3333 = vpack.c.bf16 %v3306, %v3305
        %v3334 = vpack.c.bf16 %v3308, %v3307
        %v3335 = vpack.c.bf16 %v3310, %v3309
        %v3336 = vpack.c.bf16 %v3312, %v3311
        %v3337 = vpack.c.bf16 %v3314, %v3313
        %v3338 = vpack.c.bf16 %v3316, %v3315
        %v3339 = vpack.c.bf16 %v3318, %v3317
        %v3340 = vpack.c.bf16 %v3320, %v3319
        %v3341 = vpack.c.bf16 %v3322, %v3321
        %v3342 = vpack.c.bf16 %v3324, %v3323
        %v3344 = vshrl.u32 %v3325, 16
        %v3346 = vrot.slane %v3344, 7
        %v3347 = vshll.u32 %v3325, 16
        %v3349 = vor.u32 %v3346, %v3347
        %v3351 = vshrl.u32 %v3326, 16
        %v3353 = vrot.slane %v3351, 7
        %v3354 = vshll.u32 %v3326, 16
        %v3356 = vor.u32 %v3353, %v3354
        %v3358 = vshrl.u32 %v3327, 16
        %v3360 = vrot.slane %v3358, 7
        %v3361 = vshll.u32 %v3327, 16
        %v3363 = vor.u32 %v3360, %v3361
        %v3365 = vshrl.u32 %v3328, 16
        %v3367 = vrot.slane %v3365, 7
        %v3368 = vshll.u32 %v3328, 16
        %v3370 = vor.u32 %v3367, %v3368
        %v3372 = vshrl.u32 %v3329, 16
        %v3374 = vrot.slane %v3372, 7
        %v3375 = vshll.u32 %v3329, 16
        %v3377 = vor.u32 %v3374, %v3375
        %v3379 = vshrl.u32 %v3330, 16
        %v3381 = vrot.slane %v3379, 7
        %v3382 = vshll.u32 %v3330, 16
        %v3384 = vor.u32 %v3381, %v3382
        %v3386 = vshrl.u32 %v3331, 16
        %v3388 = vrot.slane %v3386, 7
        %v3389 = vshll.u32 %v3331, 16
        %v3391 = vor.u32 %v3388, %v3389
        %v3393 = vshrl.u32 %v3332, 16
        %v3395 = vrot.slane %v3393, 7
        %v3396 = vshll.u32 %v3332, 16
        %v3398 = vor.u32 %v3395, %v3396
        %v3400 = vshrl.u32 %v3333, 16
        %v3402 = vrot.slane %v3400, 7
        %v3403 = vshll.u32 %v3333, 16
        %v3405 = vor.u32 %v3402, %v3403
        %v3407 = vshrl.u32 %v3334, 16
        %v3409 = vrot.slane %v3407, 7
        %v3410 = vshll.u32 %v3334, 16
        %v3412 = vor.u32 %v3409, %v3410
        %v3414 = vshrl.u32 %v3335, 16
        %v3416 = vrot.slane %v3414, 7
        %v3417 = vshll.u32 %v3335, 16
        %v3419 = vor.u32 %v3416, %v3417
        %v3421 = vshrl.u32 %v3336, 16
        %v3423 = vrot.slane %v3421, 7
        %v3424 = vshll.u32 %v3336, 16
        %v3426 = vor.u32 %v3423, %v3424
        %v3428 = vshrl.u32 %v3337, 16
        %v3430 = vrot.slane %v3428, 7
        %v3431 = vshll.u32 %v3337, 16
        %v3433 = vor.u32 %v3430, %v3431
        %v3435 = vshrl.u32 %v3338, 16
        %v3437 = vrot.slane %v3435, 7
        %v3438 = vshll.u32 %v3338, 16
        %v3440 = vor.u32 %v3437, %v3438
        %v3442 = vshrl.u32 %v3339, 16
        %v3444 = vrot.slane %v3442, 7
        %v3445 = vshll.u32 %v3339, 16
        %v3447 = vor.u32 %v3444, %v3445
        %v3449 = vshrl.u32 %v3340, 16
        %v3451 = vrot.slane %v3449, 7
        %v3452 = vshll.u32 %v3340, 16
        %v3454 = vor.u32 %v3451, %v3452
        %v3456 = vshrl.u32 %v3341, 16
        %v3458 = vrot.slane %v3456, 7
        %v3459 = vshll.u32 %v3341, 16
        %v3461 = vor.u32 %v3458, %v3459
        %v3463 = vshrl.u32 %v3342, 16
        %v3465 = vrot.slane %v3463, 7
        %v3466 = vshll.u32 %v3342, 16
        %v3468 = vor.u32 %v3465, %v3466
        %vm3505 = vcmask 1040384
        %vm3506 = vsmask.f32 256
        %vm3507 = vmand %vm3505, %vm3506
        %v3508 = vsel %vm3507, 0, %v3349
        %v3509 = vsel %vm3507, 0, %v3356
        %v3510 = vsel %vm3507, 0, %v3363
        %v3511 = vsel %vm3507, 0, %v3370
        %v3512 = vsel %vm3507, 0, %v3377
        %v3513 = vsel %vm3507, 0, %v3384
        %v3514 = vsel %vm3507, 0, %v3391
        %v3515 = vsel %vm3507, 0, %v3398
        %v3516 = vsel %vm3507, 0, %v3405
        %v3517 = vsel %vm3507, 0, %v3412
        %v3518 = vsel %vm3507, 0, %v3419
        %v3519 = vsel %vm3507, 0, %v3426
        %v3520 = vsel %vm3507, 0, %v3433
        %v3521 = vsel %vm3507, 0, %v3440
        %v3522 = vsel %vm3507, 0, %v3447
        %v3523 = vsel %vm3507, 0, %v3454
        %v3524 = vsel %vm3507, 0, %v3461
        %v3525 = vsel %vm3507, 0, %v3468
        %v3526 = vsel %vm3507, %v3346, 0
        %v3527 = vsel %vm3507, %v3353, 0
        %v3528 = vsel %vm3507, %v3360, 0
        %v3529 = vsel %vm3507, %v3367, 0
        %v3530 = vsel %vm3507, %v3374, 0
        %v3531 = vsel %vm3507, %v3381, 0
        %v3532 = vsel %vm3507, %v3388, 0
        %v3533 = vsel %vm3507, %v3395, 0
        %v3534 = vsel %vm3507, %v3402, 0
        %v3535 = vsel %vm3507, %v3409, 0
        %v3536 = vsel %vm3507, %v3416, 0
        %v3537 = vsel %vm3507, %v3423, 0
        %v3538 = vsel %vm3507, %v3430, 0
        %v3539 = vsel %vm3507, %v3437, 0
        %v3540 = vsel %vm3507, %v3444, 0
        %v3541 = vsel %vm3507, %v3451, 0
        %v3542 = vsel %vm3507, %v3458, 0
        %v3543 = vsel %vm3507, %v3465, 0
        %v3545 = vshrl.u32 %v3508, 16
        %v3547 = vshll.u32 %v3508, 16
        %v3549 = vrot.slane %v3547, 1
        %v3550 = vor.u32 %v3545, %v3549
        %v3552 = vshll.u32 %v3526, 16
        %v3554 = vrot.slane %v3552, 1
        %v3555 = vsel %vm495, %v3550, %v3554
        %v3557 = vshrl.u32 %v3509, 16
        %v3559 = vshll.u32 %v3509, 16
        %v3561 = vrot.slane %v3559, 1
        %v3562 = vor.u32 %v3557, %v3561
        %v3564 = vshll.u32 %v3527, 16
        %v3566 = vrot.slane %v3564, 1
        %v3567 = vsel %vm495, %v3562, %v3566
        %v3569 = vshrl.u32 %v3510, 16
        %v3571 = vshll.u32 %v3510, 16
        %v3573 = vrot.slane %v3571, 1
        %v3574 = vor.u32 %v3569, %v3573
        %v3576 = vshll.u32 %v3528, 16
        %v3578 = vrot.slane %v3576, 1
        %v3579 = vsel %vm495, %v3574, %v3578
        %v3581 = vshrl.u32 %v3511, 16
        %v3583 = vshll.u32 %v3511, 16
        %v3585 = vrot.slane %v3583, 1
        %v3586 = vor.u32 %v3581, %v3585
        %v3588 = vshll.u32 %v3529, 16
        %v3590 = vrot.slane %v3588, 1
        %v3591 = vsel %vm495, %v3586, %v3590
        %v3593 = vshrl.u32 %v3512, 16
        %v3595 = vshll.u32 %v3512, 16
        %v3597 = vrot.slane %v3595, 1
        %v3598 = vor.u32 %v3593, %v3597
        %v3600 = vshll.u32 %v3530, 16
        %v3602 = vrot.slane %v3600, 1
        %v3603 = vsel %vm495, %v3598, %v3602
        %v3605 = vshrl.u32 %v3513, 16
        %v3607 = vshll.u32 %v3513, 16
        %v3609 = vrot.slane %v3607, 1
        %v3610 = vor.u32 %v3605, %v3609
        %v3612 = vshll.u32 %v3531, 16
        %v3614 = vrot.slane %v3612, 1
        %v3615 = vsel %vm495, %v3610, %v3614
        %v3617 = vshrl.u32 %v3514, 16
        %v3619 = vshll.u32 %v3514, 16
        %v3621 = vrot.slane %v3619, 1
        %v3622 = vor.u32 %v3617, %v3621
        %v3624 = vshll.u32 %v3532, 16
        %v3626 = vrot.slane %v3624, 1
        %v3627 = vsel %vm495, %v3622, %v3626
        %v3629 = vshrl.u32 %v3515, 16
        %v3631 = vshll.u32 %v3515, 16
        %v3633 = vrot.slane %v3631, 1
        %v3634 = vor.u32 %v3629, %v3633
        %v3636 = vshll.u32 %v3533, 16
        %v3638 = vrot.slane %v3636, 1
        %v3639 = vsel %vm495, %v3634, %v3638
        %v3641 = vshrl.u32 %v3516, 16
        %v3643 = vshll.u32 %v3516, 16
        %v3645 = vrot.slane %v3643, 1
        %v3646 = vor.u32 %v3641, %v3645
        %v3648 = vshll.u32 %v3534, 16
        %v3650 = vrot.slane %v3648, 1
        %v3651 = vsel %vm495, %v3646, %v3650
        %v3653 = vshrl.u32 %v3517, 16
        %v3655 = vshll.u32 %v3517, 16
        %v3657 = vrot.slane %v3655, 1
        %v3658 = vor.u32 %v3653, %v3657
        %v3660 = vshll.u32 %v3535, 16
        %v3662 = vrot.slane %v3660, 1
        %v3663 = vsel %vm495, %v3658, %v3662
        %v3665 = vshrl.u32 %v3518, 16
        %v3667 = vshll.u32 %v3518, 16
        %v3669 = vrot.slane %v3667, 1
        %v3670 = vor.u32 %v3665, %v3669
        %v3672 = vshll.u32 %v3536, 16
        %v3674 = vrot.slane %v3672, 1
        %v3675 = vsel %vm495, %v3670, %v3674
        %v3677 = vshrl.u32 %v3519, 16
        %v3679 = vshll.u32 %v3519, 16
        %v3681 = vrot.slane %v3679, 1
        %v3682 = vor.u32 %v3677, %v3681
        %v3684 = vshll.u32 %v3537, 16
        %v3686 = vrot.slane %v3684, 1
        %v3687 = vsel %vm495, %v3682, %v3686
        %v3689 = vshrl.u32 %v3520, 16
        %v3691 = vshll.u32 %v3520, 16
        %v3693 = vrot.slane %v3691, 1
        %v3694 = vor.u32 %v3689, %v3693
        %v3696 = vshll.u32 %v3538, 16
        %v3698 = vrot.slane %v3696, 1
        %v3699 = vsel %vm495, %v3694, %v3698
        %v3701 = vshrl.u32 %v3521, 16
        %v3703 = vshll.u32 %v3521, 16
        %v3705 = vrot.slane %v3703, 1
        %v3706 = vor.u32 %v3701, %v3705
        %v3708 = vshll.u32 %v3539, 16
        %v3710 = vrot.slane %v3708, 1
        %v3711 = vsel %vm495, %v3706, %v3710
        %v3713 = vshrl.u32 %v3522, 16
        %v3715 = vshll.u32 %v3522, 16
        %v3717 = vrot.slane %v3715, 1
        %v3718 = vor.u32 %v3713, %v3717
        %v3720 = vshll.u32 %v3540, 16
        %v3722 = vrot.slane %v3720, 1
        %v3723 = vsel %vm495, %v3718, %v3722
        %v3725 = vshrl.u32 %v3523, 16
        %v3727 = vshll.u32 %v3523, 16
        %v3729 = vrot.slane %v3727, 1
        %v3730 = vor.u32 %v3725, %v3729
        %v3732 = vshll.u32 %v3541, 16
        %v3734 = vrot.slane %v3732, 1
        %v3735 = vsel %vm495, %v3730, %v3734
        %3736 = vrot.lane.b32.xlu0 %v3555, 64
        %v3737 = vpop.permute.xlu0 %3736
        %3738 = vrot.lane.b32.xlu0 %v3567, 64
        %v3739 = vpop.permute.xlu0 %3738
        %3740 = vrot.lane.b32.xlu0 %v3579, 64
        %v3741 = vpop.permute.xlu0 %3740
        %3742 = vrot.lane.b32.xlu0 %v3591, 64
        %v3743 = vpop.permute.xlu0 %3742
        %3744 = vrot.lane.b32.xlu0 %v3603, 64
        %v3745 = vpop.permute.xlu0 %3744
        %3746 = vrot.lane.b32.xlu0 %v3615, 64
        %v3747 = vpop.permute.xlu0 %3746
        %3748 = vrot.lane.b32.xlu0 %v3627, 64
        %v3749 = vpop.permute.xlu0 %3748
        %3750 = vrot.lane.b32.xlu0 %v3639, 64
        %v3751 = vpop.permute.xlu0 %3750
        %3752 = vrot.lane.b32.xlu0 %v3651, 64
        %v3753 = vpop.permute.xlu0 %3752
        %3754 = vrot.lane.b32.xlu0 %v3663, 64
        %v3755 = vpop.permute.xlu0 %3754
        %3756 = vrot.lane.b32.xlu0 %v3675, 64
        %v3757 = vpop.permute.xlu0 %3756
        %3758 = vrot.lane.b32.xlu0 %v3687, 64
        %v3759 = vpop.permute.xlu0 %3758
        %3760 = vrot.lane.b32.xlu0 %v3699, 64
        %v3761 = vpop.permute.xlu0 %3760
        %3762 = vrot.lane.b32.xlu0 %v3711, 64
        %v3763 = vpop.permute.xlu0 %3762
        %3764 = vrot.lane.b32.xlu0 %v3723, 64
        %v3765 = vpop.permute.xlu0 %3764
        %3766 = vrot.lane.b32.xlu0 %v3735, 64
        %v3767 = vpop.permute.xlu0 %3766
        %v3800 = vrot.slane %v3508, 1
        %v3801 = vrot.slane %v3526, 1
        %v3802 = vsel %vm784, %v3800, %v3801
        %v3803 = vrot.slane %v3509, 1
        %v3804 = vrot.slane %v3527, 1
        %v3805 = vsel %vm784, %v3803, %v3804
        %v3806 = vrot.slane %v3510, 1
        %v3807 = vrot.slane %v3528, 1
        %v3808 = vsel %vm784, %v3806, %v3807
        %v3809 = vrot.slane %v3511, 1
        %v3810 = vrot.slane %v3529, 1
        %v3811 = vsel %vm784, %v3809, %v3810
        %v3812 = vrot.slane %v3512, 1
        %v3813 = vrot.slane %v3530, 1
        %v3814 = vsel %vm784, %v3812, %v3813
        %v3815 = vrot.slane %v3513, 1
        %v3816 = vrot.slane %v3531, 1
        %v3817 = vsel %vm784, %v3815, %v3816
        %v3818 = vrot.slane %v3514, 1
        %v3819 = vrot.slane %v3532, 1
        %v3820 = vsel %vm784, %v3818, %v3819
        %v3821 = vrot.slane %v3515, 1
        %v3822 = vrot.slane %v3533, 1
        %v3823 = vsel %vm784, %v3821, %v3822
        %v3824 = vrot.slane %v3516, 1
        %v3825 = vrot.slane %v3534, 1
        %v3826 = vsel %vm784, %v3824, %v3825
        %v3827 = vrot.slane %v3517, 1
        %v3828 = vrot.slane %v3535, 1
        %v3829 = vsel %vm784, %v3827, %v3828
        %v3830 = vrot.slane %v3518, 1
        %v3831 = vrot.slane %v3536, 1
        %v3832 = vsel %vm784, %v3830, %v3831
        %v3833 = vrot.slane %v3519, 1
        %v3834 = vrot.slane %v3537, 1
        %v3835 = vsel %vm784, %v3833, %v3834
        %v3836 = vrot.slane %v3520, 1
        %v3837 = vrot.slane %v3538, 1
        %v3838 = vsel %vm784, %v3836, %v3837
        %v3839 = vrot.slane %v3521, 1
        %v3840 = vrot.slane %v3539, 1
        %v3841 = vsel %vm784, %v3839, %v3840
        %v3842 = vrot.slane %v3522, 1
        %v3843 = vrot.slane %v3540, 1
        %v3844 = vsel %vm784, %v3842, %v3843
        %v3845 = vrot.slane %v3523, 1
        %v3846 = vrot.slane %v3541, 1
        %v3847 = vsel %vm784, %v3845, %v3846
        %3849 = vrot.lane.b32.xlu0 %v3509, 64
        %v3850 = vpop.permute.xlu0 %3849
        %3851 = vrot.lane.b32.xlu0 %v3510, 64
        %v3852 = vpop.permute.xlu0 %3851
        %3853 = vrot.lane.b32.xlu0 %v3511, 64
        %v3854 = vpop.permute.xlu0 %3853
        %3855 = vrot.lane.b32.xlu0 %v3512, 64
        %v3856 = vpop.permute.xlu0 %3855
        %3857 = vrot.lane.b32.xlu0 %v3513, 64
        %v3858 = vpop.permute.xlu0 %3857
        %3859 = vrot.lane.b32.xlu0 %v3514, 64
        %v3860 = vpop.permute.xlu0 %3859
        %3861 = vrot.lane.b32.xlu0 %v3515, 64
        %v3862 = vpop.permute.xlu0 %3861
        %3863 = vrot.lane.b32.xlu0 %v3516, 64
        %v3864 = vpop.permute.xlu0 %3863
        %3865 = vrot.lane.b32.xlu0 %v3517, 64
        %v3866 = vpop.permute.xlu0 %3865
        %3867 = vrot.lane.b32.xlu0 %v3518, 64
        %v3868 = vpop.permute.xlu0 %3867
        %3869 = vrot.lane.b32.xlu0 %v3519, 64
        %v3870 = vpop.permute.xlu0 %3869
        %3871 = vrot.lane.b32.xlu0 %v3520, 64
        %v3872 = vpop.permute.xlu0 %3871
        %3873 = vrot.lane.b32.xlu0 %v3521, 64
        %v3874 = vpop.permute.xlu0 %3873
        %3875 = vrot.lane.b32.xlu0 %v3522, 64
        %v3876 = vpop.permute.xlu0 %3875
        %3877 = vrot.lane.b32.xlu0 %v3523, 64
        %v3878 = vpop.permute.xlu0 %3877
        %3879 = vrot.lane.b32.xlu0 %v3524, 64
        %v3880 = vpop.permute.xlu0 %3879
        %v3882 = vshrl.u32 %v3524, 16
        %v3884 = vshll.u32 %v3524, 16
        %v3886 = vrot.slane %v3884, 1
        %v3887 = vor.u32 %v3882, %v3886
        %v3889 = vshll.u32 %v3542, 16
        %v3891 = vrot.slane %v3889, 1
        %v3892 = vsel %vm495, %v3887, %v3891
        %v3894 = vrot.slane %v3524, 1
        %v3895 = vrot.slane %v3542, 1
        %v3896 = vsel %vm784, %v3894, %v3895
        %3897 = vrot.lane.b32.xlu0 %v3805, 64
        %v3898 = vpop.permute.xlu0 %3897
        %3899 = vrot.lane.b32.xlu0 %v3808, 64
        %v3900 = vpop.permute.xlu0 %3899
        %3901 = vrot.lane.b32.xlu0 %v3811, 64
        %v3902 = vpop.permute.xlu0 %3901
        %3903 = vrot.lane.b32.xlu0 %v3814, 64
        %v3904 = vpop.permute.xlu0 %3903
        %3905 = vrot.lane.b32.xlu0 %v3817, 64
        %v3906 = vpop.permute.xlu0 %3905
        %3907 = vrot.lane.b32.xlu0 %v3820, 64
        %v3908 = vpop.permute.xlu0 %3907
        %3909 = vrot.lane.b32.xlu0 %v3823, 64
        %v3910 = vpop.permute.xlu0 %3909
        %3911 = vrot.lane.b32.xlu0 %v3826, 64
        %v3912 = vpop.permute.xlu0 %3911
        %3913 = vrot.lane.b32.xlu0 %v3829, 64
        %v3914 = vpop.permute.xlu0 %3913
        %3915 = vrot.lane.b32.xlu0 %v3832, 64
        %v3916 = vpop.permute.xlu0 %3915
        %3917 = vrot.lane.b32.xlu0 %v3835, 64
        %v3918 = vpop.permute.xlu0 %3917
        %3919 = vrot.lane.b32.xlu0 %v3838, 64
        %v3920 = vpop.permute.xlu0 %3919
        %3921 = vrot.lane.b32.xlu0 %v3841, 64
        %v3922 = vpop.permute.xlu0 %3921
        %3923 = vrot.lane.b32.xlu0 %v3844, 64
        %v3924 = vpop.permute.xlu0 %3923
        %3925 = vrot.lane.b32.xlu0 %v3847, 64
        %v3926 = vpop.permute.xlu0 %3925
        %3927 = vrot.lane.b32.xlu0 %v3896, 64
        %v3928 = vpop.permute.xlu0 %3927
        %v3930 = vshrl.u32 %v3525, 16
        %v3932 = vshll.u32 %v3525, 16
        %v3934 = vrot.slane %v3932, 1
        %v3935 = vor.u32 %v3930, %v3934
        %v3937 = vshll.u32 %v3543, 16
        %v3939 = vrot.slane %v3937, 1
        %v3940 = vsel %vm495, %v3935, %v3939
        %3941 = vrot.lane.b32.xlu0 %v3892, 64
        %v3942 = vpop.permute.xlu0 %3941
        %3943 = vrot.lane.b32.xlu0 %v3940, 64
        %v3944 = vpop.permute.xlu0 %3943
        %v3947 = vrot.slane %v3525, 1
        %v3948 = vrot.slane %v3543, 1
        %v3949 = vsel %vm784, %v3947, %v3948
        %vm3950 = vcmask 523264
        %v3952 = vsel %vm3950, %v3508, %v3737
        %v3955 = vsel %vm3950, %v3509, %v3739
        %v3958 = vsel %vm3950, %v3510, %v3741
        %v3961 = vsel %vm3950, %v3511, %v3743
        %v3964 = vsel %vm3950, %v3512, %v3745
        %v3967 = vsel %vm3950, %v3513, %v3747
        %v3970 = vsel %vm3950, %v3514, %v3749
        %v3973 = vsel %vm3950, %v3515, %v3751
        %v3976 = vsel %vm3950, %v3516, %v3753
        %v3979 = vsel %vm3950, %v3517, %v3755
        %v3982 = vsel %vm3950, %v3518, %v3757
        %v3985 = vsel %vm3950, %v3519, %v3759
        %v3988 = vsel %vm3950, %v3520, %v3761
        %v3991 = vsel %vm3950, %v3521, %v3763
        %v3994 = vsel %vm3950, %v3522, %v3765
        %v3997 = vsel %vm3950, %v3523, %v3767
        %v4001 = vsel %vm3950, %v3802, %v3850
        %v4005 = vsel %vm3950, %v3805, %v3852
        %v4009 = vsel %vm3950, %v3808, %v3854
        %v4013 = vsel %vm3950, %v3811, %v3856
        %v4017 = vsel %vm3950, %v3814, %v3858
        %v4021 = vsel %vm3950, %v3817, %v3860
        %v4025 = vsel %vm3950, %v3820, %v3862
        %v4029 = vsel %vm3950, %v3823, %v3864
        %v4033 = vsel %vm3950, %v3826, %v3866
        %v4037 = vsel %vm3950, %v3829, %v3868
        %v4041 = vsel %vm3950, %v3832, %v3870
        %v4045 = vsel %vm3950, %v3835, %v3872
        %v4049 = vsel %vm3950, %v3838, %v3874
        %v4053 = vsel %vm3950, %v3841, %v3876
        %v4057 = vsel %vm3950, %v3844, %v3878
        %v4061 = vsel %vm3950, %v3847, %v3880
        %v4065 = vsel %vm3950, %v3567, %v3898
        %v4069 = vsel %vm3950, %v3579, %v3900
        %v4073 = vsel %vm3950, %v3591, %v3902
        %v4077 = vsel %vm3950, %v3603, %v3904
        %v4081 = vsel %vm3950, %v3615, %v3906
        %v4085 = vsel %vm3950, %v3627, %v3908
        %v4089 = vsel %vm3950, %v3639, %v3910
        %v4093 = vsel %vm3950, %v3651, %v3912
        %v4097 = vsel %vm3950, %v3663, %v3914
        %v4101 = vsel %vm3950, %v3675, %v3916
        %v4105 = vsel %vm3950, %v3687, %v3918
        %v4109 = vsel %vm3950, %v3699, %v3920
        %v4113 = vsel %vm3950, %v3711, %v3922
        %v4117 = vsel %vm3950, %v3723, %v3924
        %v4121 = vsel %vm3950, %v3735, %v3926
        %v4125 = vsel %vm3950, %v3892, %v3928
        %v4128 = vsel %vm3950, %v3524, %v3942
        %v4131 = vsel %vm3950, %v3525, %v3944
        %v4133 = vld [vmem:[#allocation10] sm:$0xf]
        %v4134 = vld [vmem:[#allocation10 + $0x4] sm:$0xf]
        %v4135 = vld [vmem:[#allocation10 + $0x8] sm:$0xf]
        %v4136 = vld [vmem:[#allocation10 + $0xc] sm:$0xf]
        %v4137 = vld [vmem:[#allocation10 + $0x10] sm:$0xf]
        %v4138 = vld [vmem:[#allocation10 + $0x14] sm:$0xf]
        %v4139 = vld [vmem:[#allocation10 + $0x18] sm:$0xf]
        %v4140 = vld [vmem:[#allocation10 + $0x1c] sm:$0xf]
        %v4141 = vld [vmem:[#allocation10 + $0x20] sm:$0xf]
        %v4142 = vld [vmem:[#allocation10 + $0x24] sm:$0xf]
        %v4143 = vld [vmem:[#allocation10 + $0x28] sm:$0xf]
        %v4144 = vld [vmem:[#allocation10 + $0x2c] sm:$0xf]
        %v4145 = vld [vmem:[#allocation10 + $0x30] sm:$0xf]
        %v4146 = vld [vmem:[#allocation10 + $0x34] sm:$0xf]
        %v4147 = vld [vmem:[#allocation10 + $0x38] sm:$0xf]
        %v4148 = vld [vmem:[#allocation10 + $0x3c] sm:$0xf]
        %v4149 = vld [vmem:[#allocation10 + $0x40] sm:$0xf]
        %v4150 = vld [vmem:[#allocation10 + $0x44] sm:$0xf]
        %v4151 = vld [vmem:[#allocation10 + $0x48] sm:$0xf]
        %v4152 = vld [vmem:[#allocation10 + $0x4c] sm:$0xf]
        %v4153 = vld [vmem:[#allocation10 + $0x50] sm:$0xf]
        %v4154 = vld [vmem:[#allocation10 + $0x54] sm:$0xf]
        %v4155 = vld [vmem:[#allocation10 + $0x58] sm:$0xf]
        %v4156 = vld [vmem:[#allocation10 + $0x5c] sm:$0xf]
        %v4157 = vld [vmem:[#allocation10 + $0x60] sm:$0xf]
        %v4158 = vld [vmem:[#allocation10 + $0x64] sm:$0xf]
        %v4159 = vld [vmem:[#allocation10 + $0x68] sm:$0xf]
        %v4160 = vld [vmem:[#allocation10 + $0x6c] sm:$0xf]
        %v4161 = vld [vmem:[#allocation10 + $0x70] sm:$0xf]
        %v4162 = vld [vmem:[#allocation10 + $0x74] sm:$0xf]
        %v4163 = vld [vmem:[#allocation10 + $0x78] sm:$0xf]
        %v4164 = vld [vmem:[#allocation10 + $0x7c] sm:$0xf]
        %v4165 = vld [vmem:[#allocation10 + $0x80] sm:$0xf]
        %v4166 = vld [vmem:[#allocation10 + $0x84] sm:$0xf]
        %v4167 = vld [vmem:[#allocation10 + $0x88] sm:$0xf]
        %v4168 = vld [vmem:[#allocation10 + $0x8c] sm:$0xf]
        %v4169 = vld [vmem:[#allocation10 + $0x90] sm:$0xf]
        %v4170 = vld [vmem:[#allocation10 + $0x94] sm:$0xf]
        %v4171 = vld [vmem:[#allocation10 + $0x98] sm:$0xf]
        %v4172 = vld [vmem:[#allocation10 + $0x9c] sm:$0xf]
        %v4173 = vld [vmem:[#allocation10 + $0xa0] sm:$0xf]
        %v4174 = vld [vmem:[#allocation10 + $0xa4] sm:$0xf]
        %v4175 = vld [vmem:[#allocation10 + $0xa8] sm:$0xf]
        %v4176 = vld [vmem:[#allocation10 + $0xac] sm:$0xf]
        %v4177 = vld [vmem:[#allocation10 + $0xb0] sm:$0xf]
        %v4178 = vld [vmem:[#allocation10 + $0xb4] sm:$0xf]
        %v4179 = vld [vmem:[#allocation10 + $0xb8] sm:$0xf]
        %v4180 = vld [vmem:[#allocation10 + $0xbc] sm:$0xf]
        %v4181 = vld [vmem:[#allocation10 + $0xc0] sm:$0xf]
        %v4182 = vld [vmem:[#allocation10 + $0xc4] sm:$0xf]
        %v4183 = vld [vmem:[#allocation10 + $0xc8] sm:$0xf]
        %v4184 = vld [vmem:[#allocation10 + $0xcc] sm:$0xf]
        %v4185 = vld [vmem:[#allocation10 + $0xd0] sm:$0xf]
        %v4186 = vld [vmem:[#allocation10 + $0xd4] sm:$0xf]
        %v4187 = vld [vmem:[#allocation10 + $0xd8] sm:$0xf]
        %v4188 = vld [vmem:[#allocation10 + $0xdc] sm:$0xf]
        %v4189 = vld [vmem:[#allocation10 + $0xe0] sm:$0xf]
        %v4190 = vld [vmem:[#allocation10 + $0xe4] sm:$0xf]
        %v4191 = vld [vmem:[#allocation10 + $0xe8] sm:$0xf]
        %v4192 = vld [vmem:[#allocation10 + $0xec] sm:$0xf]
        %v4193 = vld [vmem:[#allocation10 + $0xf0] sm:$0xf]
        %v4194 = vld [vmem:[#allocation10 + $0xf4] sm:$0xf]
        %v4195 = vld [vmem:[#allocation10 + $0xf8] sm:$0xf]
        %v4196 = vld [vmem:[#allocation10 + $0xfc] sm:$0xf]
        %v4197 = vld [vmem:[#allocation10 + $0x100] sm:$0xf]
        %v4198 = vld [vmem:[#allocation10 + $0x104] sm:$0xf]
        %v4199 = vld [vmem:[#allocation10 + $0x108] sm:$0xf]
        %v4200 = vld [vmem:[#allocation10 + $0x10c] sm:$0xf]
        %v4201 = vld [vmem:[#allocation10 + $0x110] sm:$0xf]
        %v4202 = vld [vmem:[#allocation10 + $0x114] sm:$0xf]
        %v4203 = vld [vmem:[#allocation10 + $0x118] sm:$0xf]
        %v4204 = vld [vmem:[#allocation10 + $0x11c] sm:$0xf]
        %v4277 = vunpack.c.l.b16 %v4133
        %v4278 = vunpack.c.l.b16 %v4134
        %v4279 = vunpack.c.l.b16 %v4135
        %v4280 = vunpack.c.l.b16 %v4136
        %v4281 = vunpack.c.l.b16 %v4137
        %v4282 = vunpack.c.l.b16 %v4138
        %v4283 = vunpack.c.l.b16 %v4139
        %v4284 = vunpack.c.l.b16 %v4140
        %v4285 = vunpack.c.l.b16 %v4141
        %v4286 = vunpack.c.l.b16 %v4142
        %v4287 = vunpack.c.l.b16 %v4143
        %v4288 = vunpack.c.l.b16 %v4144
        %v4289 = vunpack.c.l.b16 %v4145
        %v4290 = vunpack.c.l.b16 %v4146
        %v4291 = vunpack.c.l.b16 %v4147
        %v4292 = vunpack.c.l.b16 %v4148
        %v4293 = vunpack.c.l.b16 %v4149
        %v4294 = vunpack.c.l.b16 %v4150
        %v4295 = vunpack.c.l.b16 %v4151
        %v4296 = vunpack.c.l.b16 %v4152
        %v4297 = vunpack.c.l.b16 %v4153
        %v4298 = vunpack.c.l.b16 %v4154
        %v4299 = vunpack.c.l.b16 %v4155
        %v4300 = vunpack.c.l.b16 %v4156
        %v4301 = vunpack.c.l.b16 %v4157
        %v4302 = vunpack.c.l.b16 %v4158
        %v4303 = vunpack.c.l.b16 %v4159
        %v4304 = vunpack.c.l.b16 %v4160
        %v4305 = vunpack.c.l.b16 %v4161
        %v4306 = vunpack.c.l.b16 %v4162
        %v4307 = vunpack.c.l.b16 %v4163
        %v4308 = vunpack.c.l.b16 %v4164
        %v4309 = vunpack.c.l.b16 %v4165
        %v4310 = vunpack.c.l.b16 %v4166
        %v4311 = vunpack.c.l.b16 %v4167
        %v4312 = vunpack.c.l.b16 %v4168
        %v4313 = vunpack.c.l.b16 %v4169
        %v4314 = vunpack.c.l.b16 %v4170
        %v4315 = vunpack.c.l.b16 %v4171
        %v4316 = vunpack.c.l.b16 %v4172
        %v4317 = vunpack.c.l.b16 %v4173
        %v4318 = vunpack.c.l.b16 %v4174
        %v4319 = vunpack.c.l.b16 %v4175
        %v4320 = vunpack.c.l.b16 %v4176
        %v4321 = vunpack.c.l.b16 %v4177
        %v4322 = vunpack.c.l.b16 %v4178
        %v4323 = vunpack.c.l.b16 %v4179
        %v4324 = vunpack.c.l.b16 %v4180
        %v4325 = vunpack.c.l.b16 %v4181
        %v4326 = vunpack.c.l.b16 %v4182
        %v4327 = vunpack.c.l.b16 %v4183
        %v4328 = vunpack.c.l.b16 %v4184
        %v4329 = vunpack.c.l.b16 %v4185
        %v4330 = vunpack.c.l.b16 %v4186
        %v4331 = vunpack.c.l.b16 %v4187
        %v4332 = vunpack.c.l.b16 %v4188
        %v4333 = vunpack.c.l.b16 %v4189
        %v4334 = vunpack.c.l.b16 %v4190
        %v4335 = vunpack.c.l.b16 %v4191
        %v4336 = vunpack.c.l.b16 %v4192
        %v4337 = vunpack.c.l.b16 %v4193
        %v4338 = vunpack.c.l.b16 %v4194
        %v4339 = vunpack.c.l.b16 %v4195
        %v4340 = vunpack.c.l.b16 %v4196
        %v4341 = vunpack.c.l.b16 %v4197
        %v4342 = vunpack.c.l.b16 %v4198
        %v4343 = vunpack.c.l.b16 %v4199
        %v4344 = vunpack.c.l.b16 %v4200
        %v4345 = vunpack.c.l.b16 %v4201
        %v4346 = vunpack.c.l.b16 %v4202
        %v4347 = vunpack.c.l.b16 %v4203
        %v4348 = vunpack.c.l.b16 %v4204
        %v4349 = vpack.c.b16 %v4278, %v4277
        %v4350 = vpack.c.b16 %v4280, %v4279
        %v4351 = vpack.c.b16 %v4282, %v4281
        %v4352 = vpack.c.b16 %v4284, %v4283
        %v4353 = vpack.c.b16 %v4286, %v4285
        %v4354 = vpack.c.b16 %v4288, %v4287
        %v4355 = vpack.c.b16 %v4290, %v4289
        %v4356 = vpack.c.b16 %v4292, %v4291
        %v4357 = vpack.c.b16 %v4294, %v4293
        %v4358 = vpack.c.b16 %v4296, %v4295
        %v4359 = vpack.c.b16 %v4298, %v4297
        %v4360 = vpack.c.b16 %v4300, %v4299
        %v4361 = vpack.c.b16 %v4302, %v4301
        %v4362 = vpack.c.b16 %v4304, %v4303
        %v4363 = vpack.c.b16 %v4306, %v4305
        %v4364 = vpack.c.b16 %v4308, %v4307
        %v4365 = vpack.c.b16 %v4310, %v4309
        %v4366 = vpack.c.b16 %v4312, %v4311
        %v4367 = vpack.c.b16 %v4314, %v4313
        %v4368 = vpack.c.b16 %v4316, %v4315
        %v4369 = vpack.c.b16 %v4318, %v4317
        %v4370 = vpack.c.b16 %v4320, %v4319
        %v4371 = vpack.c.b16 %v4322, %v4321
        %v4372 = vpack.c.b16 %v4324, %v4323
        %v4373 = vpack.c.b16 %v4326, %v4325
        %v4374 = vpack.c.b16 %v4328, %v4327
        %v4375 = vpack.c.b16 %v4330, %v4329
        %v4376 = vpack.c.b16 %v4332, %v4331
        %v4377 = vpack.c.b16 %v4334, %v4333
        %v4378 = vpack.c.b16 %v4336, %v4335
        %v4379 = vpack.c.b16 %v4338, %v4337
        %v4380 = vpack.c.b16 %v4340, %v4339
        %v4381 = vpack.c.b16 %v4342, %v4341
        %v4382 = vpack.c.b16 %v4344, %v4343
        %v4383 = vpack.c.b16 %v4346, %v4345
        %v4384 = vpack.c.b16 %v4348, %v4347
        %v4421 = vsel %vm3950, %v3808, 0
        %v4423 = vsel %vm3950, %v3811, 0
        %v4425 = vsel %vm3950, %v3814, 0
        %v4427 = vsel %vm3950, %v3817, 0
        %v4429 = vsel %vm3950, %v3820, 0
        %v4431 = vsel %vm3950, %v3823, 0
        %v4433 = vsel %vm3950, %v3826, 0
        %v4435 = vsel %vm3950, %v3829, 0
        %v4437 = vsel %vm3950, %v3832, 0
        %v4439 = vsel %vm3950, %v3835, 0
        %v4441 = vsel %vm3950, %v3838, 0
        %v4443 = vsel %vm3950, %v3841, 0
        %v4445 = vsel %vm3950, %v3844, 0
        %v4447 = vsel %vm3950, %v3847, 0
        %v4450 = vsel %vm3950, %v3896, 0
        %v4453 = vsel %vm3950, %v3949, 0
        %4455 = vmatprep.subr.bf16.mxu0 0
        %4456 = vmatpush1.bf16.msra.mxu0 %v4349
        %4457 = vmatprep.subr.bf16.mxu0 0
        %4458 = vmatpush1.bf16.msra.mxu0 %v4350
        %4459 = vmatprep.subr.bf16.mxu0 0
        %4460 = vmatpush1.bf16.msra.mxu0 %v4351
        %4461 = vmatprep.subr.bf16.mxu0 0
        %4462 = vmatpush1.bf16.msra.mxu0 %v4352
        %4463 = vmatprep.subr.bf16.mxu0 0
        %4464 = vmatpush1.bf16.msra.mxu0 %v4353
        %4465 = vmatprep.subr.bf16.mxu0 0
        %4466 = vmatpush1.bf16.msra.mxu0 %v4354
        %4467 = vmatprep.subr.bf16.mxu0 0
        %4468 = vmatpush1.bf16.msra.mxu0 %v4355
        %4469 = vmatprep.subr.bf16.mxu0 0
        %4470 = vmatpush1.bf16.msra.mxu0 %v4356
        %4471 = vmatprep.subr.bf16.mxu0 0
        %4472 = vmatpush1.bf16.msra.mxu0 %v4357
        %4473 = vmatprep.subr.bf16.mxu0 0
        %4474 = vmatpush1.bf16.msra.mxu0 %v4358
        %4475 = vmatprep.subr.bf16.mxu0 0
        %4476 = vmatpush1.bf16.msra.mxu0 %v4359
        %4477 = vmatprep.subr.bf16.mxu0 0
        %4478 = vmatpush1.bf16.msra.mxu0 %v4360
        %4479 = vmatprep.subr.bf16.mxu0 0
        %4480 = vmatpush1.bf16.msra.mxu0 %v4361
        %4481 = vmatprep.subr.bf16.mxu0 0
        %4482 = vmatpush1.bf16.msra.mxu0 %v4362
        %4483 = vmatprep.subr.bf16.mxu0 0
        %4484 = vmatpush1.bf16.msra.mxu0 %v4363
        %4485 = vmatprep.subr.bf16.mxu0 0
        %4486 = vmatpush1.bf16.msra.mxu0 %v4364
        %4487 = vmatprep.mubr.bf16.mxu0 %v4001
        %4488 = vmatmul.mubr.bf16.gmra.mrb[0].mxu0 %v3952
        %v4489 = vpop.f32.mrb[0].mxu0
        %v4490 = vadd.f32 0.0, %v4489
        %v4491 = vpop.f32.mrb[0].mxu0
        %v4492 = vpop.f32.mrb[0].mxu0
        %v4493 = vadd.f32 0.0, %v4492
        %v4494 = vpop.f32.mrb[0].mxu0
        %4495 = vmatprep.mubr.bf16.mxu0 %v4005
        %4496 = vmatmul.mubr.bf16.gmra.mrb[0].mxu0 %v3955
        %v4497 = vpop.f32.mrb[0].mxu0
        %v4498 = vadd.f32 0.0, %v4497
        %v4499 = vpop.f32.mrb[0].mxu0
        %v4500 = vpop.f32.mrb[0].mxu0
        %v4501 = vadd.f32 0.0, %v4500
        %v4502 = vpop.f32.mrb[0].mxu0
        %4503 = vmatprep.mubr.bf16.mxu0 %v4009
        %4504 = vmatmul.mubr.bf16.gmra.mrb[0].mxu0 %v3958
        %v4505 = vpop.f32.mrb[0].mxu0
        %v4506 = vadd.f32 0.0, %v4505
        %v4507 = vpop.f32.mrb[0].mxu0
        %v4508 = vpop.f32.mrb[0].mxu0
        %v4509 = vadd.f32 0.0, %v4508
        %v4510 = vpop.f32.mrb[0].mxu0
        %4511 = vmatprep.mubr.bf16.mxu0 %v4013
        %4512 = vmatmul.mubr.bf16.gmra.mrb[0].mxu0 %v3961
        %v4513 = vpop.f32.mrb[0].mxu0
        %v4514 = vadd.f32 0.0, %v4513
        %v4515 = vpop.f32.mrb[0].mxu0
        %v4516 = vpop.f32.mrb[0].mxu0
        %v4517 = vadd.f32 0.0, %v4516
        %v4518 = vpop.f32.mrb[0].mxu0
        %4519 = vmatprep.mubr.bf16.mxu0 %v4017
        %4520 = vmatmul.mubr.bf16.gmra.mrb[0].mxu0 %v3964
        %v4521 = vpop.f32.mrb[0].mxu0
        %v4522 = vadd.f32 0.0, %v4521
        %v4523 = vpop.f32.mrb[0].mxu0
        %v4524 = vpop.f32.mrb[0].mxu0
        %v4525 = vadd.f32 0.0, %v4524
        %v4526 = vpop.f32.mrb[0].mxu0
        %4527 = vmatprep.mubr.bf16.mxu0 %v4021
        %4528 = vmatmul.mubr.bf16.gmra.mrb[0].mxu0 %v3967
        %v4529 = vpop.f32.mrb[0].mxu0
        %v4530 = vadd.f32 0.0, %v4529
        %v4531 = vpop.f32.mrb[0].mxu0
        %v4532 = vpop.f32.mrb[0].mxu0
        %v4533 = vadd.f32 0.0, %v4532
        %v4534 = vpop.f32.mrb[0].mxu0
        %4535 = vmatprep.mubr.bf16.mxu0 %v4025
        %4536 = vmatmul.mubr.bf16.gmra.mrb[0].mxu0 %v3970
        %v4537 = vpop.f32.mrb[0].mxu0
        %v4538 = vadd.f32 0.0, %v4537
        %v4539 = vpop.f32.mrb[0].mxu0
        %v4540 = vpop.f32.mrb[0].mxu0
        %v4541 = vadd.f32 0.0, %v4540
        %v4542 = vpop.f32.mrb[0].mxu0
        %4543 = vmatprep.mubr.bf16.mxu0 %v4029
        %4544 = vmatmul.mubr.bf16.gmra.mrb[0].mxu0 %v3973
        %v4545 = vpop.f32.mrb[0].mxu0
        %v4546 = vadd.f32 0.0, %v4545
        %v4547 = vpop.f32.mrb[0].mxu0
        %v4548 = vpop.f32.mrb[0].mxu0
        %v4549 = vadd.f32 0.0, %v4548
        %v4550 = vpop.f32.mrb[0].mxu0
        %4551 = vmatprep.mubr.bf16.mxu0 %v4033
        %4552 = vmatmul.mubr.bf16.gmra.mrb[0].mxu0 %v3976
        %v4553 = vpop.f32.mrb[0].mxu0
        %v4554 = vadd.f32 0.0, %v4553
        %v4555 = vpop.f32.mrb[0].mxu0
        %v4556 = vpop.f32.mrb[0].mxu0
        %v4557 = vadd.f32 0.0, %v4556
        %v4558 = vpop.f32.mrb[0].mxu0
        %4559 = vmatprep.mubr.bf16.mxu0 %v4037
        %4560 = vmatmul.mubr.bf16.gmra.mrb[0].mxu0 %v3979
        %v4561 = vpop.f32.mrb[0].mxu0
        %v4562 = vadd.f32 0.0, %v4561
        %v4563 = vpop.f32.mrb[0].mxu0
        %v4564 = vpop.f32.mrb[0].mxu0
        %v4565 = vadd.f32 0.0, %v4564
        %v4566 = vpop.f32.mrb[0].mxu0
        %4567 = vmatprep.mubr.bf16.mxu0 %v4041
        %4568 = vmatmul.mubr.bf16.gmra.mrb[0].mxu0 %v3982
        %v4569 = vpop.f32.mrb[0].mxu0
        %v4570 = vadd.f32 0.0, %v4569
        %v4571 = vpop.f32.mrb[0].mxu0
        %v4572 = vpop.f32.mrb[0].mxu0
        %v4573 = vadd.f32 0.0, %v4572
        %v4574 = vpop.f32.mrb[0].mxu0
        %4575 = vmatprep.mubr.bf16.mxu0 %v4045
        %4576 = vmatmul.mubr.bf16.gmra.mrb[0].mxu0 %v3985
        %v4577 = vpop.f32.mrb[0].mxu0
        %v4578 = vadd.f32 0.0, %v4577
        %v4579 = vpop.f32.mrb[0].mxu0
        %v4580 = vpop.f32.mrb[0].mxu0
        %v4581 = vadd.f32 0.0, %v4580
        %v4582 = vpop.f32.mrb[0].mxu0
        %4583 = vmatprep.mubr.bf16.mxu0 %v4049
        %4584 = vmatmul.mubr.bf16.gmra.mrb[0].mxu0 %v3988
        %v4585 = vpop.f32.mrb[0].mxu0
        %v4586 = vadd.f32 0.0, %v4585
        %v4587 = vpop.f32.mrb[0].mxu0
        %v4588 = vpop.f32.mrb[0].mxu0
        %v4589 = vadd.f32 0.0, %v4588
        %v4590 = vpop.f32.mrb[0].mxu0
        %4591 = vmatprep.mubr.bf16.mxu0 %v4053
        %4592 = vmatmul.mubr.bf16.gmra.mrb[0].mxu0 %v3991
        %v4593 = vpop.f32.mrb[0].mxu0
        %v4594 = vadd.f32 0.0, %v4593
        %v4595 = vpop.f32.mrb[0].mxu0
        %v4596 = vpop.f32.mrb[0].mxu0
        %v4597 = vadd.f32 0.0, %v4596
        %v4598 = vpop.f32.mrb[0].mxu0
        %4599 = vmatprep.mubr.bf16.mxu0 %v4057
        %4600 = vmatmul.mubr.bf16.gmra.mrb[0].mxu0 %v3994
        %v4601 = vpop.f32.mrb[0].mxu0
        %v4602 = vadd.f32 0.0, %v4601
        %v4603 = vpop.f32.mrb[0].mxu0
        %v4604 = vpop.f32.mrb[0].mxu0
        %v4605 = vadd.f32 0.0, %v4604
        %v4606 = vpop.f32.mrb[0].mxu0
        %4607 = vmatprep.mubr.bf16.mxu0 %v4061
        %4608 = vmatmul.mubr.bf16.gmra.mrb[0].mxu0 %v3997
        %v4609 = vpop.f32.mrb[0].mxu0
        %v4610 = vadd.f32 0.0, %v4609
        %v4611 = vpop.f32.mrb[0].mxu0
        %v4612 = vpop.f32.mrb[0].mxu0
        %v4613 = vadd.f32 0.0, %v4612
        %v4614 = vpop.f32.mrb[0].mxu0
        %4615 = vdwg.mxu0
        %4616 = vmatprep.subr.bf16.mxu0 0
        %4617 = vmatpush1.bf16.msra.mxu0 %v4365
        %4618 = vmatprep.subr.bf16.mxu0 0
        %4619 = vmatpush1.bf16.msra.mxu0 %v4366
        %4620 = vmatprep.subr.bf16.mxu0 0
        %4621 = vmatpush1.bf16.msra.mxu0 %v4367
        %4622 = vmatprep.subr.bf16.mxu0 0
        %4623 = vmatpush1.bf16.msra.mxu0 %v4368
        %4624 = vmatprep.subr.bf16.mxu0 0
        %4625 = vmatpush1.bf16.msra.mxu0 %v4369
        %4626 = vmatprep.subr.bf16.mxu0 0
        %4627 = vmatpush1.bf16.msra.mxu0 %v4370
        %4628 = vmatprep.subr.bf16.mxu0 0
        %4629 = vmatpush1.bf16.msra.mxu0 %v4371
        %4630 = vmatprep.subr.bf16.mxu0 0
        %4631 = vmatpush1.bf16.msra.mxu0 %v4372
        %4632 = vmatprep.subr.bf16.mxu0 0
        %4633 = vmatpush1.bf16.msra.mxu0 %v4373
        %4634 = vmatprep.subr.bf16.mxu0 0
        %4635 = vmatpush1.bf16.msra.mxu0 %v4374
        %4636 = vmatprep.subr.bf16.mxu0 0
        %4637 = vmatpush1.bf16.msra.mxu0 %v4375
        %4638 = vmatprep.subr.bf16.mxu0 0
        %4639 = vmatpush1.bf16.msra.mxu0 %v4376
        %4640 = vmatprep.subr.bf16.mxu0 0
        %4641 = vmatpush1.bf16.msra.mxu0 %v4377
        %4642 = vmatprep.subr.bf16.mxu0 0
        %4643 = vmatpush1.bf16.msra.mxu0 %v4378
        %4644 = vmatprep.subr.bf16.mxu0 0
        %4645 = vmatpush1.bf16.msra.mxu0 %v4379
        %4646 = vmatprep.subr.bf16.mxu0 0
        %4647 = vmatpush1.bf16.msra.mxu0 %v4380
        %4648 = vmatprep.mubr.bf16.mxu0 %v3958
        %4649 = vmatmul.mubr.bf16.gmra.mrb[0].mxu0 %v4065
        %v4650 = vpop.f32.mrb[0].mxu0
        %v4651 = vadd.f32 %v4490, %v4650
        %v4652 = vpop.f32.mrb[0].mxu0
        %v4653 = vpop.f32.mrb[0].mxu0
        %v4654 = vadd.f32 %v4493, %v4653
        %v4655 = vpop.f32.mrb[0].mxu0
        %4656 = vmatprep.mubr.bf16.mxu0 %v3961
        %4657 = vmatmul.mubr.bf16.gmra.mrb[0].mxu0 %v4069
        %v4658 = vpop.f32.mrb[0].mxu0
        %v4659 = vadd.f32 %v4498, %v4658
        %v4660 = vpop.f32.mrb[0].mxu0
        %v4661 = vpop.f32.mrb[0].mxu0
        %v4662 = vadd.f32 %v4501, %v4661
        %v4663 = vpop.f32.mrb[0].mxu0
        %4664 = vmatprep.mubr.bf16.mxu0 %v3964
        %4665 = vmatmul.mubr.bf16.gmra.mrb[0].mxu0 %v4073
        %v4666 = vpop.f32.mrb[0].mxu0
        %v4667 = vadd.f32 %v4506, %v4666
        %v4668 = vpop.f32.mrb[0].mxu0
        %v4669 = vpop.f32.mrb[0].mxu0
        %v4670 = vadd.f32 %v4509, %v4669
        %v4671 = vpop.f32.mrb[0].mxu0
        %4672 = vmatprep.mubr.bf16.mxu0 %v3967
        %4673 = vmatmul.mubr.bf16.gmra.mrb[0].mxu0 %v4077
        %v4674 = vpop.f32.mrb[0].mxu0
        %v4675 = vadd.f32 %v4514, %v4674
        %v4676 = vpop.f32.mrb[0].mxu0
        %v4677 = vpop.f32.mrb[0].mxu0
        %v4678 = vadd.f32 %v4517, %v4677
        %v4679 = vpop.f32.mrb[0].mxu0
        %4680 = vmatprep.mubr.bf16.mxu0 %v3970
        %4681 = vmatmul.mubr.bf16.gmra.mrb[0].mxu0 %v4081
        %v4682 = vpop.f32.mrb[0].mxu0
        %v4683 = vadd.f32 %v4522, %v4682
        %v4684 = vpop.f32.mrb[0].mxu0
        %v4685 = vpop.f32.mrb[0].mxu0
        %v4686 = vadd.f32 %v4525, %v4685
        %v4687 = vpop.f32.mrb[0].mxu0
        %4688 = vmatprep.mubr.bf16.mxu0 %v3973
        %4689 = vmatmul.mubr.bf16.gmra.mrb[0].mxu0 %v4085
        %v4690 = vpop.f32.mrb[0].mxu0
        %v4691 = vadd.f32 %v4530, %v4690
        %v4692 = vpop.f32.mrb[0].mxu0
        %v4693 = vpop.f32.mrb[0].mxu0
        %v4694 = vadd.f32 %v4533, %v4693
        %v4695 = vpop.f32.mrb[0].mxu0
        %4696 = vmatprep.mubr.bf16.mxu0 %v3976
        %4697 = vmatmul.mubr.bf16.gmra.mrb[0].mxu0 %v4089
        %v4698 = vpop.f32.mrb[0].mxu0
        %v4699 = vadd.f32 %v4538, %v4698
        %v4700 = vpop.f32.mrb[0].mxu0
        %v4701 = vpop.f32.mrb[0].mxu0
        %v4702 = vadd.f32 %v4541, %v4701
        %v4703 = vpop.f32.mrb[0].mxu0
        %4704 = vmatprep.mubr.bf16.mxu0 %v3979
        %4705 = vmatmul.mubr.bf16.gmra.mrb[0].mxu0 %v4093
        %v4706 = vpop.f32.mrb[0].mxu0
        %v4707 = vadd.f32 %v4546, %v4706
        %v4708 = vpop.f32.mrb[0].mxu0
        %v4709 = vpop.f32.mrb[0].mxu0
        %v4710 = vadd.f32 %v4549, %v4709
        %v4711 = vpop.f32.mrb[0].mxu0
        %4712 = vmatprep.mubr.bf16.mxu0 %v3982
        %4713 = vmatmul.mubr.bf16.gmra.mrb[0].mxu0 %v4097
        %v4714 = vpop.f32.mrb[0].mxu0
        %v4715 = vadd.f32 %v4554, %v4714
        %v4716 = vpop.f32.mrb[0].mxu0
        %v4717 = vpop.f32.mrb[0].mxu0
        %v4718 = vadd.f32 %v4557, %v4717
        %v4719 = vpop.f32.mrb[0].mxu0
        %4720 = vmatprep.mubr.bf16.mxu0 %v3985
        %4721 = vmatmul.mubr.bf16.gmra.mrb[0].mxu0 %v4101
        %v4722 = vpop.f32.mrb[0].mxu0
        %v4723 = vadd.f32 %v4562, %v4722
        %v4724 = vpop.f32.mrb[0].mxu0
        %v4725 = vpop.f32.mrb[0].mxu0
        %v4726 = vadd.f32 %v4565, %v4725
        %v4727 = vpop.f32.mrb[0].mxu0
        %4728 = vmatprep.mubr.bf16.mxu0 %v3988
        %4729 = vmatmul.mubr.bf16.gmra.mrb[0].mxu0 %v4105
        %v4730 = vpop.f32.mrb[0].mxu0
        %v4731 = vadd.f32 %v4570, %v4730
        %v4732 = vpop.f32.mrb[0].mxu0
        %v4733 = vpop.f32.mrb[0].mxu0
        %v4734 = vadd.f32 %v4573, %v4733
        %v4735 = vpop.f32.mrb[0].mxu0
        %4736 = vmatprep.mubr.bf16.mxu0 %v3991
        %4737 = vmatmul.mubr.bf16.gmra.mrb[0].mxu0 %v4109
        %v4738 = vpop.f32.mrb[0].mxu0
        %v4739 = vadd.f32 %v4578, %v4738
        %v4740 = vpop.f32.mrb[0].mxu0
        %v4741 = vpop.f32.mrb[0].mxu0
        %v4742 = vadd.f32 %v4581, %v4741
        %v4743 = vpop.f32.mrb[0].mxu0
        %4744 = vmatprep.mubr.bf16.mxu0 %v3994
        %4745 = vmatmul.mubr.bf16.gmra.mrb[0].mxu0 %v4113
        %v4746 = vpop.f32.mrb[0].mxu0
        %v4747 = vadd.f32 %v4586, %v4746
        %v4748 = vpop.f32.mrb[0].mxu0
        %v4749 = vpop.f32.mrb[0].mxu0
        %v4750 = vadd.f32 %v4589, %v4749
        %v4751 = vpop.f32.mrb[0].mxu0
        %4752 = vmatprep.mubr.bf16.mxu0 %v3997
        %4753 = vmatmul.mubr.bf16.gmra.mrb[0].mxu0 %v4117
        %v4754 = vpop.f32.mrb[0].mxu0
        %v4755 = vadd.f32 %v4594, %v4754
        %v4756 = vpop.f32.mrb[0].mxu0
        %v4757 = vpop.f32.mrb[0].mxu0
        %v4758 = vadd.f32 %v4597, %v4757
        %v4759 = vpop.f32.mrb[0].mxu0
        %4760 = vmatprep.mubr.bf16.mxu0 %v4128
        %4761 = vmatmul.mubr.bf16.gmra.mrb[0].mxu0 %v4121
        %v4762 = vpop.f32.mrb[0].mxu0
        %v4763 = vadd.f32 %v4602, %v4762
        %v4764 = vpop.f32.mrb[0].mxu0
        %v4765 = vpop.f32.mrb[0].mxu0
        %v4766 = vadd.f32 %v4605, %v4765
        %v4767 = vpop.f32.mrb[0].mxu0
        %4768 = vmatprep.mubr.bf16.mxu0 %v4131
        %4769 = vmatmul.mubr.bf16.gmra.mrb[0].mxu0 %v4125
        %v4770 = vpop.f32.mrb[0].mxu0
        %v4771 = vadd.f32 %v4610, %v4770
        %v4772 = vpop.f32.mrb[0].mxu0
        %v4773 = vpop.f32.mrb[0].mxu0
        %v4774 = vadd.f32 %v4613, %v4773
        %v4775 = vpop.f32.mrb[0].mxu0
        %4776 = vdwg.mxu0
        %4777 = vmatprep.subr.bf16.mxu0 0
        %4778 = vmatpush1.bf16.msra.mxu0 %v4381
        %4779 = vmatprep.subr.bf16.mxu0 0
        %4780 = vmatpush1.bf16.msra.mxu0 %v4382
        %4781 = vmatprep.subr.bf16.mxu0 0
        %4782 = vmatpush1.bf16.msra.mxu0 %v4383
        %4783 = vmatprep.subr.bf16.mxu0 0
        %4784 = vmatpush1.bf16.msra.mxu0 %v4384
        %4785 = vmatprep.subr.bf16.mxu0 0
        %4786 = vmatpush1.bf16.msra.mxu0 0
        %4787 = vmatprep.subr.bf16.mxu0 0
        %4788 = vmatpush1.bf16.msra.mxu0 0
        %4789 = vmatprep.subr.bf16.mxu0 0
        %4790 = vmatpush1.bf16.msra.mxu0 0
        %4791 = vmatprep.subr.bf16.mxu0 0
        %4792 = vmatpush1.bf16.msra.mxu0 0
        %4793 = vmatprep.subr.bf16.mxu0 0
        %4794 = vmatpush1.bf16.msra.mxu0 0
        %4795 = vmatprep.subr.bf16.mxu0 0
        %4796 = vmatpush1.bf16.msra.mxu0 0
        %4797 = vmatprep.subr.bf16.mxu0 0
        %4798 = vmatpush1.bf16.msra.mxu0 0
        %4799 = vmatprep.subr.bf16.mxu0 0
        %4800 = vmatpush1.bf16.msra.mxu0 0
        %4801 = vmatprep.subr.bf16.mxu0 0
        %4802 = vmatpush1.bf16.msra.mxu0 0
        %4803 = vmatprep.subr.bf16.mxu0 0
        %4804 = vmatpush1.bf16.msra.mxu0 0
        %4805 = vmatprep.subr.bf16.mxu0 0
        %4806 = vmatpush1.bf16.msra.mxu0 0
        %4807 = vmatprep.subr.bf16.mxu0 0
        %4808 = vmatpush1.bf16.msra.mxu0 0
        %4809 = vmatprep.mubr.bf16.mxu0 0
        %4810 = vmatmul.mubr.bf16.gmra.mrb[0].mxu0 %v4421
        %v4811 = vpop.f32.mrb[0].mxu0
        %v4812 = vadd.f32 %v4651, %v4811
        %v4813 = vpop.f32.mrb[0].mxu0
        %v4814 = vpop.f32.mrb[0].mxu0
        %v4815 = vadd.f32 %v4654, %v4814
        %v4816 = vpop.f32.mrb[0].mxu0
        %4817 = vmatprep.mubr.bf16.mxu0 0
        %4818 = vmatmul.mubr.bf16.gmra.mrb[0].mxu0 %v4423
        %v4819 = vpop.f32.mrb[0].mxu0
        %v4820 = vadd.f32 %v4659, %v4819
        %v4821 = vpop.f32.mrb[0].mxu0
        %v4822 = vpop.f32.mrb[0].mxu0
        %v4823 = vadd.f32 %v4662, %v4822
        %v4824 = vpop.f32.mrb[0].mxu0
        %4825 = vmatprep.mubr.bf16.mxu0 0
        %4826 = vmatmul.mubr.bf16.gmra.mrb[0].mxu0 %v4425
        %v4827 = vpop.f32.mrb[0].mxu0
        %v4828 = vadd.f32 %v4667, %v4827
        %v4829 = vpop.f32.mrb[0].mxu0
        %v4830 = vpop.f32.mrb[0].mxu0
        %v4831 = vadd.f32 %v4670, %v4830
        %v4832 = vpop.f32.mrb[0].mxu0
        %4833 = vmatprep.mubr.bf16.mxu0 0
        %4834 = vmatmul.mubr.bf16.gmra.mrb[0].mxu0 %v4427
        %v4835 = vpop.f32.mrb[0].mxu0
        %v4836 = vadd.f32 %v4675, %v4835
        %v4837 = vpop.f32.mrb[0].mxu0
        %v4838 = vpop.f32.mrb[0].mxu0
        %v4839 = vadd.f32 %v4678, %v4838
        %v4840 = vpop.f32.mrb[0].mxu0
        %4841 = vmatprep.mubr.bf16.mxu0 0
        %4842 = vmatmul.mubr.bf16.gmra.mrb[0].mxu0 %v4429
        %v4843 = vpop.f32.mrb[0].mxu0
        %v4844 = vadd.f32 %v4683, %v4843
        %v4845 = vpop.f32.mrb[0].mxu0
        %v4846 = vpop.f32.mrb[0].mxu0
        %v4847 = vadd.f32 %v4686, %v4846
        %v4848 = vpop.f32.mrb[0].mxu0
        %4849 = vmatprep.mubr.bf16.mxu0 0
        %4850 = vmatmul.mubr.bf16.gmra.mrb[0].mxu0 %v4431
        %v4851 = vpop.f32.mrb[0].mxu0
        %v4852 = vadd.f32 %v4691, %v4851
        %v4853 = vpop.f32.mrb[0].mxu0
        %v4854 = vpop.f32.mrb[0].mxu0
        %v4855 = vadd.f32 %v4694, %v4854
        %v4856 = vpop.f32.mrb[0].mxu0
        %4857 = vmatprep.mubr.bf16.mxu0 0
        %4858 = vmatmul.mubr.bf16.gmra.mrb[0].mxu0 %v4433
        %v4859 = vpop.f32.mrb[0].mxu0
        %v4860 = vadd.f32 %v4699, %v4859
        %v4861 = vpop.f32.mrb[0].mxu0
        %v4862 = vpop.f32.mrb[0].mxu0
        %v4863 = vadd.f32 %v4702, %v4862
        %v4864 = vpop.f32.mrb[0].mxu0
        %4865 = vmatprep.mubr.bf16.mxu0 0
        %4866 = vmatmul.mubr.bf16.gmra.mrb[0].mxu0 %v4435
        %v4867 = vpop.f32.mrb[0].mxu0
        %v4868 = vadd.f32 %v4707, %v4867
        %v4869 = vpop.f32.mrb[0].mxu0
        %v4870 = vpop.f32.mrb[0].mxu0
        %v4871 = vadd.f32 %v4710, %v4870
        %v4872 = vpop.f32.mrb[0].mxu0
        %4873 = vmatprep.mubr.bf16.mxu0 0
        %4874 = vmatmul.mubr.bf16.gmra.mrb[0].mxu0 %v4437
        %v4875 = vpop.f32.mrb[0].mxu0
        %v4876 = vadd.f32 %v4715, %v4875
        %v4877 = vpop.f32.mrb[0].mxu0
        %v4878 = vpop.f32.mrb[0].mxu0
        %v4879 = vadd.f32 %v4718, %v4878
        %v4880 = vpop.f32.mrb[0].mxu0
        %4881 = vmatprep.mubr.bf16.mxu0 0
        %4882 = vmatmul.mubr.bf16.gmra.mrb[0].mxu0 %v4439
        %v4883 = vpop.f32.mrb[0].mxu0
        %v4884 = vadd.f32 %v4723, %v4883
        %v4885 = vpop.f32.mrb[0].mxu0
        %v4886 = vpop.f32.mrb[0].mxu0
        %v4887 = vadd.f32 %v4726, %v4886
        %v4888 = vpop.f32.mrb[0].mxu0
        %4889 = vmatprep.mubr.bf16.mxu0 0
        %4890 = vmatmul.mubr.bf16.gmra.mrb[0].mxu0 %v4441
        %v4891 = vpop.f32.mrb[0].mxu0
        %v4892 = vadd.f32 %v4731, %v4891
        %v4893 = vpop.f32.mrb[0].mxu0
        %v4894 = vpop.f32.mrb[0].mxu0
        %v4895 = vadd.f32 %v4734, %v4894
        %v4896 = vpop.f32.mrb[0].mxu0
        %4897 = vmatprep.mubr.bf16.mxu0 0
        %4898 = vmatmul.mubr.bf16.gmra.mrb[0].mxu0 %v4443
        %v4899 = vpop.f32.mrb[0].mxu0
        %v4900 = vadd.f32 %v4739, %v4899
        %v4901 = vpop.f32.mrb[0].mxu0
        %v4902 = vpop.f32.mrb[0].mxu0
        %v4903 = vadd.f32 %v4742, %v4902
        %v4904 = vpop.f32.mrb[0].mxu0
        %4905 = vmatprep.mubr.bf16.mxu0 0
        %4906 = vmatmul.mubr.bf16.gmra.mrb[0].mxu0 %v4445
        %v4907 = vpop.f32.mrb[0].mxu0
        %v4908 = vadd.f32 %v4747, %v4907
        %v4909 = vpop.f32.mrb[0].mxu0
        %v4910 = vpop.f32.mrb[0].mxu0
        %v4911 = vadd.f32 %v4750, %v4910
        %v4912 = vpop.f32.mrb[0].mxu0
        %4913 = vmatprep.mubr.bf16.mxu0 0
        %4914 = vmatmul.mubr.bf16.gmra.mrb[0].mxu0 %v4447
        %v4915 = vpop.f32.mrb[0].mxu0
        %v4916 = vadd.f32 %v4755, %v4915
        %v4917 = vpop.f32.mrb[0].mxu0
        %v4918 = vpop.f32.mrb[0].mxu0
        %v4919 = vadd.f32 %v4758, %v4918
        %v4920 = vpop.f32.mrb[0].mxu0
        %4921 = vmatprep.mubr.bf16.mxu0 0
        %4922 = vmatmul.mubr.bf16.gmra.mrb[0].mxu0 %v4450
        %v4923 = vpop.f32.mrb[0].mxu0
        %v4924 = vadd.f32 %v4763, %v4923
        %v4925 = vpop.f32.mrb[0].mxu0
        %v4926 = vpop.f32.mrb[0].mxu0
        %v4927 = vadd.f32 %v4766, %v4926
        %v4928 = vpop.f32.mrb[0].mxu0
        %4929 = vmatprep.mubr.bf16.mxu0 0
        %4930 = vmatmul.mubr.bf16.gmra.mrb[0].mxu0 %v4453
        %v4931 = vpop.f32.mrb[0].mxu0
        %v4932 = vadd.f32 %v4771, %v4931
        %v4933 = vpop.f32.mrb[0].mxu0
        %v4934 = vpop.f32.mrb[0].mxu0
        %v4935 = vadd.f32 %v4774, %v4934
        %v4936 = vpop.f32.mrb[0].mxu0
        %4937 = vdwg.mxu0
        %v4938 = vld [vmem:[#allocation11] sm:$0x1]
        %v4940 = vlaneseq
        %v4941 = vshrl.u32 %v4940, 7
        %v4942 = vsub.s32 0, %v4941
        %v4943 = vrot.slane %v4938, %v4942
        %v4945 = vmul.f32 %v4812, %v4943
        %v4946 = vmul.f32 %v4815, %v4943
        %v4947 = vmul.f32 %v4820, %v4943
        %v4948 = vmul.f32 %v4823, %v4943
        %v4949 = vmul.f32 %v4828, %v4943
        %v4950 = vmul.f32 %v4831, %v4943
        %v4951 = vmul.f32 %v4836, %v4943
        %v4952 = vmul.f32 %v4839, %v4943
        %v4953 = vmul.f32 %v4844, %v4943
        %v4954 = vmul.f32 %v4847, %v4943
        %v4955 = vmul.f32 %v4852, %v4943
        %v4956 = vmul.f32 %v4855, %v4943
        %v4957 = vmul.f32 %v4860, %v4943
        %v4958 = vmul.f32 %v4863, %v4943
        %v4959 = vmul.f32 %v4868, %v4943
        %v4960 = vmul.f32 %v4871, %v4943
        %v4961 = vmul.f32 %v4876, %v4943
        %v4962 = vmul.f32 %v4879, %v4943
        %v4963 = vmul.f32 %v4884, %v4943
        %v4964 = vmul.f32 %v4887, %v4943
        %v4965 = vmul.f32 %v4892, %v4943
        %v4966 = vmul.f32 %v4895, %v4943
        %v4967 = vmul.f32 %v4900, %v4943
        %v4968 = vmul.f32 %v4903, %v4943
        %v4969 = vmul.f32 %v4908, %v4943
        %v4970 = vmul.f32 %v4911, %v4943
        %v4971 = vmul.f32 %v4916, %v4943
        %v4972 = vmul.f32 %v4919, %v4943
        %v4973 = vmul.f32 %v4924, %v4943
        %v4974 = vmul.f32 %v4927, %v4943
        %v4975 = vmul.f32 %v4932, %v4943
        %v4976 = vmul.f32 %v4935, %v4943
        %v4977 = vld [vmem:[#allocation13] sm:$0x1]
        %v4979 = vlaneseq
        %v4980 = vshrl.u32 %v4979, 7
        %v4981 = vsub.s32 0, %v4980
        %v4982 = vrot.slane %v4977, %v4981
        %v4984 = vadd.f32 %v4945, %v4982
        %v4985 = vadd.f32 %v4946, %v4982
        %v4986 = vadd.f32 %v4947, %v4982
        %v4987 = vadd.f32 %v4948, %v4982
        %v4988 = vadd.f32 %v4949, %v4982
        %v4989 = vadd.f32 %v4950, %v4982
        %v4990 = vadd.f32 %v4951, %v4982
        %v4991 = vadd.f32 %v4952, %v4982
        %v4992 = vadd.f32 %v4953, %v4982
        %v4993 = vadd.f32 %v4954, %v4982
        %v4994 = vadd.f32 %v4955, %v4982
        %v4995 = vadd.f32 %v4956, %v4982
        %v4996 = vadd.f32 %v4957, %v4982
        %v4997 = vadd.f32 %v4958, %v4982
        %v4998 = vadd.f32 %v4959, %v4982
        %v4999 = vadd.f32 %v4960, %v4982
        %v5000 = vadd.f32 %v4961, %v4982
        %v5001 = vadd.f32 %v4962, %v4982
        %v5002 = vadd.f32 %v4963, %v4982
        %v5003 = vadd.f32 %v4964, %v4982
        %v5004 = vadd.f32 %v4965, %v4982
        %v5005 = vadd.f32 %v4966, %v4982
        %v5006 = vadd.f32 %v4967, %v4982
        %v5007 = vadd.f32 %v4968, %v4982
        %v5008 = vadd.f32 %v4969, %v4982
        %v5009 = vadd.f32 %v4970, %v4982
        %v5010 = vadd.f32 %v4971, %v4982
        %v5011 = vadd.f32 %v4972, %v4982
        %v5012 = vadd.f32 %v4973, %v4982
        %v5013 = vadd.f32 %v4974, %v4982
        %v5014 = vadd.f32 %v4975, %v4982
        %v5015 = vadd.f32 %v4976, %v4982
        %v5016 = vxor.u32 %v4984, 2147483648
        %v5017 = vxor.u32 %v4985, 2147483648
        %v5018 = vxor.u32 %v4986, 2147483648
        %v5019 = vxor.u32 %v4987, 2147483648
        %v5020 = vxor.u32 %v4988, 2147483648
        %v5021 = vxor.u32 %v4989, 2147483648
        %v5022 = vxor.u32 %v4990, 2147483648
        %v5023 = vxor.u32 %v4991, 2147483648
        %v5024 = vxor.u32 %v4992, 2147483648
        %v5025 = vxor.u32 %v4993, 2147483648
        %v5026 = vxor.u32 %v4994, 2147483648
        %v5027 = vxor.u32 %v4995, 2147483648
        %v5028 = vxor.u32 %v4996, 2147483648
        %v5029 = vxor.u32 %v4997, 2147483648
        %v5030 = vxor.u32 %v4998, 2147483648
        %v5031 = vxor.u32 %v4999, 2147483648
        %v5032 = vxor.u32 %v5000, 2147483648
        %v5033 = vxor.u32 %v5001, 2147483648
        %v5034 = vxor.u32 %v5002, 2147483648
        %v5035 = vxor.u32 %v5003, 2147483648
        %v5036 = vxor.u32 %v5004, 2147483648
        %v5037 = vxor.u32 %v5005, 2147483648
        %v5038 = vxor.u32 %v5006, 2147483648
        %v5039 = vxor.u32 %v5007, 2147483648
        %v5040 = vxor.u32 %v5008, 2147483648
        %v5041 = vxor.u32 %v5009, 2147483648
        %v5042 = vxor.u32 %v5010, 2147483648
        %v5043 = vxor.u32 %v5011, 2147483648
        %v5044 = vxor.u32 %v5012, 2147483648
        %v5045 = vxor.u32 %v5013, 2147483648
        %v5046 = vxor.u32 %v5014, 2147483648
        %v5047 = vxor.u32 %v5015, 2147483648
        %v5048 = vmul.f32 %v5016, 1.442695
        %v5049 = vpow.pop %v5048
        %v5050 = vmul.f32 %v5017, 1.442695
        %v5051 = vpow.pop %v5050
        %v5052 = vmul.f32 %v5018, 1.442695
        %v5053 = vpow.pop %v5052
        %v5054 = vmul.f32 %v5019, 1.442695
        %v5055 = vpow.pop %v5054
        %v5056 = vmul.f32 %v5020, 1.442695
        %v5057 = vpow.pop %v5056
        %v5058 = vmul.f32 %v5021, 1.442695
        %v5059 = vpow.pop %v5058
        %v5060 = vmul.f32 %v5022, 1.442695
        %v5061 = vpow.pop %v5060
        %v5062 = vmul.f32 %v5023, 1.442695
        %v5063 = vpow.pop %v5062
        %v5064 = vmul.f32 %v5024, 1.442695
        %v5065 = vpow.pop %v5064
        %v5066 = vmul.f32 %v5025, 1.442695
        %v5067 = vpow.pop %v5066
        %v5068 = vmul.f32 %v5026, 1.442695
        %v5069 = vpow.pop %v5068
        %v5070 = vmul.f32 %v5027, 1.442695
        %v5071 = vpow.pop %v5070
        %v5072 = vmul.f32 %v5028, 1.442695
        %v5073 = vpow.pop %v5072
        %v5074 = vmul.f32 %v5029, 1.442695
        %v5075 = vpow.pop %v5074
        %v5076 = vmul.f32 %v5030, 1.442695
        %v5077 = vpow.pop %v5076
        %v5078 = vmul.f32 %v5031, 1.442695
        %v5079 = vpow.pop %v5078
        %v5080 = vmul.f32 %v5032, 1.442695
        %v5081 = vpow.pop %v5080
        %v5082 = vmul.f32 %v5033, 1.442695
        %v5083 = vpow.pop %v5082
        %v5084 = vmul.f32 %v5034, 1.442695
        %v5085 = vpow.pop %v5084
        %v5086 = vmul.f32 %v5035, 1.442695
        %v5087 = vpow.pop %v5086
        %v5088 = vmul.f32 %v5036, 1.442695
        %v5089 = vpow.pop %v5088
        %v5090 = vmul.f32 %v5037, 1.442695
        %v5091 = vpow.pop %v5090
        %v5092 = vmul.f32 %v5038, 1.442695
        %v5093 = vpow.pop %v5092
        %v5094 = vmul.f32 %v5039, 1.442695
        %v5095 = vpow.pop %v5094
        %v5096 = vmul.f32 %v5040, 1.442695
        %v5097 = vpow.pop %v5096
        %v5098 = vmul.f32 %v5041, 1.442695
        %v5099 = vpow.pop %v5098
        %v5100 = vmul.f32 %v5042, 1.442695
        %v5101 = vpow.pop %v5100
        %v5102 = vmul.f32 %v5043, 1.442695
        %v5103 = vpow.pop %v5102
        %v5104 = vmul.f32 %v5044, 1.442695
        %v5105 = vpow.pop %v5104
        %v5106 = vmul.f32 %v5045, 1.442695
        %v5107 = vpow.pop %v5106
        %v5108 = vmul.f32 %v5046, 1.442695
        %v5109 = vpow.pop %v5108
        %v5110 = vmul.f32 %v5047, 1.442695
        %v5111 = vpow.pop %v5110
        %v5112 = vadd.f32 %v5049, 1.0
        %v5113 = vadd.f32 %v5051, 1.0
        %v5114 = vadd.f32 %v5053, 1.0
        %v5115 = vadd.f32 %v5055, 1.0
        %v5116 = vadd.f32 %v5057, 1.0
        %v5117 = vadd.f32 %v5059, 1.0
        %v5118 = vadd.f32 %v5061, 1.0
        %v5119 = vadd.f32 %v5063, 1.0
        %v5120 = vadd.f32 %v5065, 1.0
        %v5121 = vadd.f32 %v5067, 1.0
        %v5122 = vadd.f32 %v5069, 1.0
        %v5123 = vadd.f32 %v5071, 1.0
        %v5124 = vadd.f32 %v5073, 1.0
        %v5125 = vadd.f32 %v5075, 1.0
        %v5126 = vadd.f32 %v5077, 1.0
        %v5127 = vadd.f32 %v5079, 1.0
        %v5128 = vadd.f32 %v5081, 1.0
        %v5129 = vadd.f32 %v5083, 1.0
        %v5130 = vadd.f32 %v5085, 1.0
        %v5131 = vadd.f32 %v5087, 1.0
        %v5132 = vadd.f32 %v5089, 1.0
        %v5133 = vadd.f32 %v5091, 1.0
        %v5134 = vadd.f32 %v5093, 1.0
        %v5135 = vadd.f32 %v5095, 1.0
        %v5136 = vadd.f32 %v5097, 1.0
        %v5137 = vadd.f32 %v5099, 1.0
        %v5138 = vadd.f32 %v5101, 1.0
        %v5139 = vadd.f32 %v5103, 1.0
        %v5140 = vadd.f32 %v5105, 1.0
        %v5141 = vadd.f32 %v5107, 1.0
        %v5142 = vadd.f32 %v5109, 1.0
        %v5143 = vadd.f32 %v5111, 1.0
        %v5144 = vrcp.pop %v5112
        %v5145 = vmul.f32 1.0, %v5144
        %v5146 = vrcp.pop %v5113
        %v5147 = vmul.f32 1.0, %v5146
        %v5148 = vrcp.pop %v5114
        %v5149 = vmul.f32 1.0, %v5148
        %v5150 = vrcp.pop %v5115
        %v5151 = vmul.f32 1.0, %v5150
        %v5152 = vrcp.pop %v5116
        %v5153 = vmul.f32 1.0, %v5152
        %v5154 = vrcp.pop %v5117
        %v5155 = vmul.f32 1.0, %v5154
        %v5156 = vrcp.pop %v5118
        %v5157 = vmul.f32 1.0, %v5156
        %v5158 = vrcp.pop %v5119
        %v5159 = vmul.f32 1.0, %v5158
        %v5160 = vrcp.pop %v5120
        %v5161 = vmul.f32 1.0, %v5160
        %v5162 = vrcp.pop %v5121
        %v5163 = vmul.f32 1.0, %v5162
        %v5164 = vrcp.pop %v5122
        %v5165 = vmul.f32 1.0, %v5164
        %v5166 = vrcp.pop %v5123
        %v5167 = vmul.f32 1.0, %v5166
        %v5168 = vrcp.pop %v5124
        %v5169 = vmul.f32 1.0, %v5168
        %v5170 = vrcp.pop %v5125
        %v5171 = vmul.f32 1.0, %v5170
        %v5172 = vrcp.pop %v5126
        %v5173 = vmul.f32 1.0, %v5172
        %v5174 = vrcp.pop %v5127
        %v5175 = vmul.f32 1.0, %v5174
        %v5176 = vrcp.pop %v5128
        %v5177 = vmul.f32 1.0, %v5176
        %v5178 = vrcp.pop %v5129
        %v5179 = vmul.f32 1.0, %v5178
        %v5180 = vrcp.pop %v5130
        %v5181 = vmul.f32 1.0, %v5180
        %v5182 = vrcp.pop %v5131
        %v5183 = vmul.f32 1.0, %v5182
        %v5184 = vrcp.pop %v5132
        %v5185 = vmul.f32 1.0, %v5184
        %v5186 = vrcp.pop %v5133
        %v5187 = vmul.f32 1.0, %v5186
        %v5188 = vrcp.pop %v5134
        %v5189 = vmul.f32 1.0, %v5188
        %v5190 = vrcp.pop %v5135
        %v5191 = vmul.f32 1.0, %v5190
        %v5192 = vrcp.pop %v5136
        %v5193 = vmul.f32 1.0, %v5192
        %v5194 = vrcp.pop %v5137
        %v5195 = vmul.f32 1.0, %v5194
        %v5196 = vrcp.pop %v5138
        %v5197 = vmul.f32 1.0, %v5196
        %v5198 = vrcp.pop %v5139
        %v5199 = vmul.f32 1.0, %v5198
        %v5200 = vrcp.pop %v5140
        %v5201 = vmul.f32 1.0, %v5200
        %v5202 = vrcp.pop %v5141
        %v5203 = vmul.f32 1.0, %v5202
        %v5204 = vrcp.pop %v5142
        %v5205 = vmul.f32 1.0, %v5204
        %v5206 = vrcp.pop %v5143
        %v5207 = vmul.f32 1.0, %v5206
        %v5208 = vmul.f32 %v4984, %v5145
        %v5209 = vmul.f32 %v4985, %v5147
        %v5210 = vmul.f32 %v4986, %v5149
        %v5211 = vmul.f32 %v4987, %v5151
        %v5212 = vmul.f32 %v4988, %v5153
        %v5213 = vmul.f32 %v4989, %v5155
        %v5214 = vmul.f32 %v4990, %v5157
        %v5215 = vmul.f32 %v4991, %v5159
        %v5216 = vmul.f32 %v4992, %v5161
        %v5217 = vmul.f32 %v4993, %v5163
        %v5218 = vmul.f32 %v4994, %v5165
        %v5219 = vmul.f32 %v4995, %v5167
        %v5220 = vmul.f32 %v4996, %v5169
        %v5221 = vmul.f32 %v4997, %v5171
        %v5222 = vmul.f32 %v4998, %v5173
        %v5223 = vmul.f32 %v4999, %v5175
        %v5224 = vmul.f32 %v5000, %v5177
        %v5225 = vmul.f32 %v5001, %v5179
        %v5226 = vmul.f32 %v5002, %v5181
        %v5227 = vmul.f32 %v5003, %v5183
        %v5228 = vmul.f32 %v5004, %v5185
        %v5229 = vmul.f32 %v5005, %v5187
        %v5230 = vmul.f32 %v5006, %v5189
        %v5231 = vmul.f32 %v5007, %v5191
        %v5232 = vmul.f32 %v5008, %v5193
        %v5233 = vmul.f32 %v5009, %v5195
        %v5234 = vmul.f32 %v5010, %v5197
        %v5235 = vmul.f32 %v5011, %v5199
        %v5236 = vmul.f32 %v5012, %v5201
        %v5237 = vmul.f32 %v5013, %v5203
        %v5238 = vmul.f32 %v5014, %v5205
        %v5239 = vmul.f32 %v5015, %v5207
        %vm5288 = vcmask 1045504
        %v5289 = vrot.slane %v401, 2
        %v5290 = vrot.slane %v402, 2
        %v5291 = vsel %vm5288, %v5289, %v5290
        %v5292 = vrot.slane %v403, 2
        %v5293 = vsel %vm5288, %v5290, %v5292
        %v5294 = vrot.slane %v404, 2
        %v5295 = vrot.slane %v405, 2
        %v5296 = vsel %vm5288, %v5294, %v5295
        %v5297 = vrot.slane %v406, 2
        %v5298 = vsel %vm5288, %v5295, %v5297
        %v5299 = vrot.slane %v407, 2
        %v5300 = vrot.slane %v408, 2
        %v5301 = vsel %vm5288, %v5299, %v5300
        %v5302 = vrot.slane %v409, 2
        %v5303 = vsel %vm5288, %v5300, %v5302
        %v5304 = vrot.slane %v410, 2
        %v5305 = vrot.slane %v411, 2
        %v5306 = vsel %vm5288, %v5304, %v5305
        %v5307 = vrot.slane %v412, 2
        %v5308 = vsel %vm5288, %v5305, %v5307
        %v5309 = vrot.slane %v413, 2
        %v5310 = vrot.slane %v414, 2
        %v5311 = vsel %vm5288, %v5309, %v5310
        %v5312 = vrot.slane %v415, 2
        %v5313 = vsel %vm5288, %v5310, %v5312
        %v5314 = vrot.slane %v416, 2
        %v5315 = vrot.slane %v417, 2
        %v5316 = vsel %vm5288, %v5314, %v5315
        %v5317 = vrot.slane %v418, 2
        %v5318 = vsel %vm5288, %v5315, %v5317
        %v5319 = vrot.slane %v419, 2
        %v5320 = vrot.slane %v420, 2
        %v5321 = vsel %vm5288, %v5319, %v5320
        %v5322 = vrot.slane %v421, 2
        %v5323 = vsel %vm5288, %v5320, %v5322
        %v5324 = vrot.slane %v422, 2
        %v5325 = vrot.slane %v423, 2
        %v5326 = vsel %vm5288, %v5324, %v5325
        %v5327 = vrot.slane %v424, 2
        %v5328 = vsel %vm5288, %v5325, %v5327
        %v5329 = vrot.slane %v425, 2
        %v5330 = vrot.slane %v426, 2
        %v5331 = vsel %vm5288, %v5329, %v5330
        %v5332 = vrot.slane %v427, 2
        %v5333 = vsel %vm5288, %v5330, %v5332
        %v5334 = vrot.slane %v428, 2
        %v5335 = vrot.slane %v429, 2
        %v5336 = vsel %vm5288, %v5334, %v5335
        %v5337 = vrot.slane %v430, 2
        %v5338 = vsel %vm5288, %v5335, %v5337
        %v5339 = vrot.slane %v431, 2
        %v5340 = vrot.slane %v432, 2
        %v5341 = vsel %vm5288, %v5339, %v5340
        %v5342 = vrot.slane %v433, 2
        %v5343 = vsel %vm5288, %v5340, %v5342
        %v5344 = vrot.slane %v434, 2
        %v5345 = vrot.slane %v435, 2
        %v5346 = vsel %vm5288, %v5344, %v5345
        %v5347 = vrot.slane %v436, 2
        %v5348 = vsel %vm5288, %v5345, %v5347
        %v5349 = vrot.slane %v437, 2
        %v5350 = vrot.slane %v438, 2
        %v5351 = vsel %vm5288, %v5349, %v5350
        %v5352 = vrot.slane %v439, 2
        %v5353 = vsel %vm5288, %v5350, %v5352
        %v5354 = vrot.slane %v440, 2
        %v5355 = vrot.slane %v441, 2
        %v5356 = vsel %vm5288, %v5354, %v5355
        %v5357 = vrot.slane %v442, 2
        %v5358 = vsel %vm5288, %v5355, %v5357
        %v5359 = vrot.slane %v443, 2
        %v5360 = vrot.slane %v444, 2
        %v5361 = vsel %vm5288, %v5359, %v5360
        %v5362 = vrot.slane %v445, 2
        %v5363 = vsel %vm5288, %v5360, %v5362
        %v5364 = vrot.slane %v446, 2
        %v5365 = vrot.slane %v447, 2
        %v5366 = vsel %vm5288, %v5364, %v5365
        %v5367 = vrot.slane %v448, 2
        %v5368 = vsel %vm5288, %v5365, %v5367
        %v5401 = vadd.f32 %v5208, %v5291
        %v5402 = vadd.f32 %v5209, %v5293
        %v5403 = vadd.f32 %v5210, %v5296
        %v5404 = vadd.f32 %v5211, %v5298
        %v5405 = vadd.f32 %v5212, %v5301
        %v5406 = vadd.f32 %v5213, %v5303
        %v5407 = vadd.f32 %v5214, %v5306
        %v5408 = vadd.f32 %v5215, %v5308
        %v5409 = vadd.f32 %v5216, %v5311
        %v5410 = vadd.f32 %v5217, %v5313
        %v5411 = vadd.f32 %v5218, %v5316
        %v5412 = vadd.f32 %v5219, %v5318
        %v5413 = vadd.f32 %v5220, %v5321
        %v5414 = vadd.f32 %v5221, %v5323
        %v5415 = vadd.f32 %v5222, %v5326
        %v5416 = vadd.f32 %v5223, %v5328
        %v5417 = vadd.f32 %v5224, %v5331
        %v5418 = vadd.f32 %v5225, %v5333
        %v5419 = vadd.f32 %v5226, %v5336
        %v5420 = vadd.f32 %v5227, %v5338
        %v5421 = vadd.f32 %v5228, %v5341
        %v5422 = vadd.f32 %v5229, %v5343
        %v5423 = vadd.f32 %v5230, %v5346
        %v5424 = vadd.f32 %v5231, %v5348
        %v5425 = vadd.f32 %v5232, %v5351
        %v5426 = vadd.f32 %v5233, %v5353
        %v5427 = vadd.f32 %v5234, %v5356
        %v5428 = vadd.f32 %v5235, %v5358
        %v5429 = vadd.f32 %v5236, %v5361
        %v5430 = vadd.f32 %v5237, %v5363
        %v5431 = vadd.f32 %v5238, %v5366
        %v5432 = vadd.f32 %v5239, %v5368
        %5433 = vst [vmem:[%s389] sm:$0xff] %v5401
        %5434 = vst [vmem:[%s389 + $0x8] sm:$0xff] %v5402
        %5435 = vst [vmem:[%s389 + $0x10] sm:$0xff] %v5403
        %5436 = vst [vmem:[%s389 + $0x18] sm:$0xff] %v5404
        %5437 = vst [vmem:[%s389 + $0x20] sm:$0xff] %v5405
        %5438 = vst [vmem:[%s389 + $0x28] sm:$0xff] %v5406
        %5439 = vst [vmem:[%s389 + $0x30] sm:$0xff] %v5407
        %5440 = vst [vmem:[%s389 + $0x38] sm:$0xff] %v5408
        %5441 = vst [vmem:[%s389 + $0x40] sm:$0xff] %v5409
        %5442 = vst [vmem:[%s389 + $0x48] sm:$0xff] %v5410
        %5443 = vst [vmem:[%s389 + $0x50] sm:$0xff] %v5411
        %5444 = vst [vmem:[%s389 + $0x58] sm:$0xff] %v5412
        %5445 = vst [vmem:[%s389 + $0x60] sm:$0xff] %v5413
        %5446 = vst [vmem:[%s389 + $0x68] sm:$0xff] %v5414
        %5447 = vst [vmem:[%s389 + $0x70] sm:$0xff] %v5415
        %5448 = vst [vmem:[%s389 + $0x78] sm:$0xff] %v5416
        %5449 = vst [vmem:[%s389 + $0x80] sm:$0xff] %v5417
        %5450 = vst [vmem:[%s389 + $0x88] sm:$0xff] %v5418
        %5451 = vst [vmem:[%s389 + $0x90] sm:$0xff] %v5419
        %5452 = vst [vmem:[%s389 + $0x98] sm:$0xff] %v5420
        %5453 = vst [vmem:[%s389 + $0xa0] sm:$0xff] %v5421
        %5454 = vst [vmem:[%s389 + $0xa8] sm:$0xff] %v5422
        %5455 = vst [vmem:[%s389 + $0xb0] sm:$0xff] %v5423
        %5456 = vst [vmem:[%s389 + $0xb8] sm:$0xff] %v5424
        %5457 = vst [vmem:[%s389 + $0xc0] sm:$0xff] %v5425
        %5458 = vst [vmem:[%s389 + $0xc8] sm:$0xff] %v5426
        %5459 = vst [vmem:[%s389 + $0xd0] sm:$0xff] %v5427
        %5460 = vst [vmem:[%s389 + $0xd8] sm:$0xff] %v5428
        %5461 = vst [vmem:[%s389 + $0xe0] sm:$0xff] %v5429
        %5462 = vst [vmem:[%s389 + $0xe8] sm:$0xff] %v5430
        %5463 = vst [vmem:[%s389 + $0xf0] sm:$0xff] %v5431
        %5464 = vst [vmem:[%s389 + $0xf8] sm:$0xff] %v5432
        %s5465 = sand.u32 %s201, 1
        %s5466 = scalar_lea.sflag [#allocation4], %s5465
        %s5467 = sand.u32 %s201, 1
        %s5468 = smul.addr %s5467, 256
        %s5469 = scalar_lea.vmem [#allocation14], %s5468
        // Predicated region
        $region77: #{residual_forward.1} parent=47 // pred_check
          %p5470 = pneg %p211
        $region78: #{residual_forward.1} parent=47 // pred_check_branch
          %5472 = sbr.rel (%p5470) target = $region80
        $region79: #{residual_forward.1} parent=47 // pred_region
          %s5473 = smul.u32 16, %s32
          %s5475 = ssub.s32 4096, 4096
          %5476 = vsyncadd %s5466, %s5475
          %s5477 = smul.addr %s5473, 2
          %s5478 = smul.addr %s31, 32
          %s5479 = sadd.s32 %s5477, %s5478
          %s5480 = smul.addr %s5479, 128
          %s5481 = scalar_lea.hbm %s7, %s5480
          %s5482 = sshll.u32 %s5469, 4
          %s5483 = int_to_ptr.vmem [resolvable:$true] %s5482
          %5488 = dma.vmem_to_hbm [thread:$0]  %s5483, 4096, %s5481, %s5466, 128, 128, 8
        $region80: #{residual_forward.1} parent=47 // pred_fallthru
          _
      $region48: #{residual_forward.1} parent=5 // pred_fallthru
        _
      %p5489 = scmp.le.s32.totalorder 2, %s22
      // Predicated region
      $region81: #{residual_forward.1} parent=5 // pred_check
        %p5490 = pneg %p5489
      $region82: #{residual_forward.1} parent=5 // pred_check_branch
        %5492 = sbr.rel (%p5490) target = $region84
      $region83: #{residual_forward.1} parent=5 // pred_region
        %s5493 = ssub.s32 %s22, 2
        // Predicated region
        $region85: #{residual_forward.1} parent=83 // pred_check
          %p5494 = pneg %p217
        $region86: #{residual_forward.1} parent=83 // pred_check_branch
          %5496 = sbr.rel (%p5494) target = $region88
        $region87: #{residual_forward.1} parent=83 // pred_region
          %s5497 = sand.u32 %s202, 1
          %s5498 = scalar_lea.sflag [#allocation4], %s5497
          %s5499 = sand.u32 %s202, 1
          %s5500 = smul.addr %s5499, 256
          %s5501 = scalar_lea.vmem [#allocation14], %s5500
          %5502 = dma.done %s5498, 4096
        $region88: #{residual_forward.1} parent=83 // pred_fallthru
          _
      $region84: #{residual_forward.1} parent=5 // pred_fallthru
        _
    $region6: #{residual_forward.1} parent=1 // loop_footer
      %s26 = sadd.s32 1, %s22
    $region7: #{residual_forward.1} parent=1 // loop_footer_branch
      %21 = sbr.rel target = $region3
    $region8: #{residual_forward.1} parent=1 // loop_exit
      _
    %5503 = vsyncpa [#allocation3], 1
    %s5504 = scalar_lea.sflag [#allocation3], 1
    %5505 = vsyncpa %s5504, 1
    %5506 = vsyncpa [#allocation6], 1
    %5507 = vsyncpa [#allocation9], 1
    %5508 = vsyncpa [#allocation12], 1
    %5509 = vsyncpa [#allocation4], 1
    %s5510 = scalar_lea.sflag [#allocation4], 1
    %5511 = vsyncpa %s5510, 1

</llo_original>
